<compile_context>
chip_gen: v7x
topology: tpu7x:2x2x1
jax: 0.10.0
libtpu: 0.0.40
codegen_flags: <defaults>
</compile_context>

<pallas_src>
import functools

import jax
import jax.numpy as jnp
from jax import lax
from jax.experimental import pallas as pl
from jax.experimental.pallas import tpu as pltpu


# ----------------------------- Pallas kernel -------------------------------


def lstm_kernel(
    xc_ref,     # (T, Bp, 4H)  hoisted layer-1 input contribution (g-block pre-scaled)
    whh1_ref,   # (H, 4H)      lstm1 W_hh^T (g-block pre-scaled)
    wih2_ref,   # (H, 4H)      lstm2 W_ih^T (g-block pre-scaled)
    whh2_ref,   # (H, 4H)      lstm2 W_hh^T (g-block pre-scaled)
    b2_ref,     # (1, 4H)      lstm2 b_ih + b_hh (g-block pre-scaled)
    wfold_ref,  # (H, 4H)      W_lin^T @ W_ih1^T   (autoregressive fold)
    bfold_ref,  # (1, 4H)      b_lin*W_ih1^T + b1  (autoregressive fold)
    wlin_ref,   # (1, H)       linear weight (unscaled)
    blin_ref,   # (1, 1)       linear bias
    out_ref,    # (T+F, Bp)    time-major output
    h2_all,     # (T+F, Bp, H) VMEM scratch: h2 history (deferred linear head)
    *,
    seq_len,
    future,
    hidden,
):
    Bp = xc_ref.shape[1]
    H = hidden

    def gate_update(gates, c):
        # Single EUP push over the full (Bp, 4H) tile; the g-block columns of
        # every gate weight/bias were pre-scaled by 2 in the wrapper so that
        # tanh(z) == 2 * sigmoid(2 * z) - 1.
        s = jax.nn.sigmoid(gates)
        i = s[:, 0 * H:1 * H]
        f = s[:, 1 * H:2 * H]
        g = 2.0 * s[:, 2 * H:3 * H] - 1.0
        o = s[:, 3 * H:4 * H]
        c_new = f * c + i * g
        h_new = o * jnp.tanh(c_new)
        return h_new, c_new

    # Weights needed in BOTH phases: load once, keep live (13 vregs at H=32).
    whh1 = whh1_ref[...]
    wih2 = wih2_ref[...]
    whh2 = whh2_ref[...]
    b2 = b2_ref[...]

    def layer2_and_store(h1, h2_prev, c2, out_t):
        gates2 = (jnp.dot(h1, wih2, preferred_element_type=jnp.float32)
                  + jnp.dot(h2_prev, whh2, preferred_element_type=jnp.float32)
                  + b2)
        h2, c2 = gate_update(gates2, c2)
        h2_all[out_t] = h2            # write-only scratch: no loop dependence
        return h2, c2

    # ---- phase 1: teacher-forced over the real inputs ----------------------
    def tf_body(t, carry):
        h1, c1, h2, c2 = carry
        gates1 = xc_ref[t] + jnp.dot(h1, whh1,
                                     preferred_element_type=jnp.float32)
        h1, c1 = gate_update(gates1, c1)
        h2, c2 = layer2_and_store(h1, h2, c2, t)
        return (h1, c1, h2, c2)

    z = jnp.zeros((Bp, H), jnp.float32)
    carry = lax.fori_loop(0, seq_len, tf_body, (z, z, z, z), unroll=True)

    # ---- phase 2: autoregressive (linear head folded into layer-1) ---------
    if future > 0:
        # Fold weights are only needed here: load per-phase to keep the
        # teacher-forced live set small (per perf review).
        wfold = wfold_ref[...]
        bfold = bfold_ref[...]

        def ar_body(i, carry):
            h1, c1, h2, c2 = carry
            gates1 = (jnp.dot(h1, whh1, preferred_element_type=jnp.float32)
                      + jnp.dot(h2, wfold, preferred_element_type=jnp.float32)
                      + bfold)
            h1, c1 = gate_update(gates1, c1)
            h2, c2 = layer2_and_store(h1, h2, c2, seq_len + i)
            return (h1, c1, h2, c2)

        lax.fori_loop(0, future, ar_body, carry, unroll=True)

    # ---- deferred output head: one bulk contraction + one bulk store -------
    wlin = wlin_ref[...]                                        # (1, H)
    y = jnp.sum(h2_all[...] * wlin[None, :, :], axis=-1)        # (T+F, Bp)
    out_ref[...] = y + blin_ref[...]


# ------------------------------- wrapper ------------------------------------


def lstm_forward(x, params, future=0):
    """x: (B, T) float32 -> (B, T + future) float32."""
    x = jnp.asarray(x, jnp.float32)
    B, T = x.shape
    H = params["w_hh1"].shape[1]
    assert T >= 1, "sequence length must be >= 1"
    # The input hoist and the autoregressive fold hard-assume scalar I/O
    # (as implied by the PyTorch forward feeding `output` back into lstm1).
    assert params["w_ih1"].shape[1] == 1, "input_size must be 1"
    assert params["w_lin"].shape[0] == 1, "output_size must be 1"

    # Pad batch to the native 8-sublane f32 tile (per perf review #5).
    Bp = max(8, -(-B // 8) * 8)
    x_pad = jnp.zeros((Bp, T), jnp.float32).at[:B].set(x)

    f32 = jnp.float32
    ones_h = jnp.ones((H,), f32)
    # double the g-block columns so that tanh(z) == 2*sigmoid(2z) - 1 in-kernel
    gscale = jnp.concatenate([ones_h, ones_h, 2.0 * ones_h, ones_h])   # (4H,)

    wih1_row = params["w_ih1"].T[0] * gscale                           # (4H,)
    whh1_t = params["w_hh1"].T * gscale                                # (H, 4H)
    b1 = (params["b_ih1"] + params["b_hh1"]) * gscale                  # (4H,)

    wih2_t = params["w_ih2"].T * gscale                                # (H, 4H)
    whh2_t = params["w_hh2"].T * gscale                                # (H, 4H)
    b2 = ((params["b_ih2"] + params["b_hh2"]) * gscale)[None, :]       # (1, 4H)

    wlin = params["w_lin"]                                             # (1, H)
    blin = params["b_lin"]                                             # (1,)

    # Hoisted layer-1 input contribution (input_size == 1 -> outer product):
    #   xc[t, b, :] = x[b, t] * W_ih1_row + b1
    xc = x_pad.T[:, :, None] * wih1_row[None, None, :] + b1[None, None, :]

    # Autoregressive fold of the linear head into layer-1's input path:
    #   x_t = h2 @ W_lin^T + b_lin  =>
    #   x_t @ W_ih1^T = h2 @ (W_lin^T @ W_ih1^T) + b_lin * W_ih1^T
    w_fold = wlin.T @ wih1_row[None, :]                                # (H, 4H)
    b_fold = blin[:, None] * wih1_row[None, :] + b1[None, :]           # (1, 4H)

    vmem = pl.BlockSpec(memory_space=pltpu.MemorySpace.VMEM)
    out_tm = pl.pallas_call(
        functools.partial(lstm_kernel, seq_len=T, future=future, hidden=H),
        out_shape=jax.ShapeDtypeStruct((T + future, Bp), jnp.float32),
        in_specs=[vmem] * 9,
        out_specs=vmem,
        scratch_shapes=[
            pltpu.VMEM((T + future, Bp, H), jnp.float32),  # h2 history
        ],
    )(xc, whh1_t, wih2_t, whh2_t, b2, w_fold, b_fold, wlin, blin[None, :])
    return out_tm[:, :B].T  # (B, T + future), matches torch.cat(outputs, dim=1)


# --------------------------- parameters & reference --------------------------


def init_params(key, input_size, hidden_size, output_size):
    """Deterministic init mirroring PyTorch defaults: U(-1/sqrt(H), 1/sqrt(H))."""
    ks = jax.random.split(key, 10)
    bound = 1.0 / float(jnp.sqrt(jnp.float32(hidden_size)))

    def u(k, shape):
        return jax.random.uniform(k, shape, jnp.float32, -bound, bound)

    H = hidden_size
    return dict(
        w_ih1=u(ks[0], (4 * H, input_size)),
        w_hh1=u(ks[1], (4 * H, H)),
        b_ih1=u(ks[2], (4 * H,)),
        b_hh1=u(ks[3], (4 * H,)),
        w_ih2=u(ks[4], (4 * H, H)),
        w_hh2=u(ks[5], (4 * H, H)),
        b_ih2=u(ks[6], (4 * H,)),
        b_hh2=u(ks[7], (4 * H,)),
        w_lin=u(ks[8], (output_size, H)),
        b_lin=u(ks[9], (output_size,)),
    )


def lstm_reference(x, params, future=0):
    """Pure-JAX reference replicating the PyTorch forward (in float32)."""
    B, T = x.shape
    H = params["w_hh1"].shape[1]

    def cell(x_t, h, c, wih, whh, bih, bhh):
        gates = x_t @ wih.T + bih + h @ whh.T + bhh
        i, f, g, o = jnp.split(gates, 4, axis=1)
        i = jax.nn.sigmoid(i)
        f = jax.nn.sigmoid(f)
        g = jnp.tanh(g)
        o = jax.nn.sigmoid(o)
        c = f * c + i * g
        h = o * jnp.tanh(c)
        return h, c

    h1 = c1 = h2 = c2 = jnp.zeros((B, H), jnp.float32)
    y = jnp.zeros((B, 1), jnp.float32)
    outs = []
    for t in range(T + future):
        x_t = x[:, t:t + 1] if t < T else y
        h1, c1 = cell(x_t, h1, c1, params["w_ih1"], params["w_hh1"],
                      params["b_ih1"], params["b_hh1"])
        h2, c2 = cell(h1, h2, c2, params["w_ih2"], params["w_hh2"],
                      params["b_ih2"], params["b_hh2"])
        y = h2 @ params["w_lin"].T + params["b_lin"]
        outs.append(y)
    return jnp.concatenate(outs, axis=1)


# ----------------------------------- main ------------------------------------

if __name__ == "__main__":
    INPUT_SIZE = 1    # implied by input.split(1, dim=1) feeding the LSTMCell
    HIDDEN_SIZE = 32
    OUTPUT_SIZE = 1   # implied by feeding `output` back into lstm1
    B, T, FUTURE = 4, 8, 4

    key = jax.random.PRNGKey(0)
    k_params, k_x = jax.random.split(key)
    params = init_params(k_params, INPUT_SIZE, HIDDEN_SIZE, OUTPUT_SIZE)
    x = jax.random.normal(k_x, (B, T), jnp.float32)

    out = lstm_forward(x, params, future=FUTURE)
    out = jax.block_until_ready(out)

    ref = lstm_reference(x, params, future=FUTURE)
    assert out.shape == (B, T + FUTURE), out.shape
    assert jnp.allclose(out, ref, rtol=2e-4, atol=2e-4), (
        float(jnp.max(jnp.abs(out - ref))))

    print("KERNEL_OK")
</pallas_src>

<mosaic_0001>
module attributes {stable_mosaic.version = 11 : i64} {
  func.func @lstm_kernel(%arg0: memref<8x8x128xf32, #tpu.memory_space<vmem>>, %arg1: memref<32x128xf32, #tpu.memory_space<vmem>>, %arg2: memref<32x128xf32, #tpu.memory_space<vmem>>, %arg3: memref<32x128xf32, #tpu.memory_space<vmem>>, %arg4: memref<1x128xf32, #tpu.memory_space<vmem>>, %arg5: memref<32x128xf32, #tpu.memory_space<vmem>>, %arg6: memref<1x128xf32, #tpu.memory_space<vmem>>, %arg7: memref<1x32xf32, #tpu.memory_space<vmem>>, %arg8: memref<1x1xf32, #tpu.memory_space<vmem>>, %arg9: memref<12x8xf32, #tpu.memory_space<vmem>>, %arg10: memref<12x8x32xf32, #tpu.memory_space<vmem>>) attributes {dimension_semantics = [], scalar_prefetch = 0 : i64, scratch_operands = 1 : i64, tpu.core_type = #tpu.core_type<tc>} {
    %c0 = arith.constant 0 : index
    %c0_0 = arith.constant 0 : index
    %0 = vector.load %arg1[%c0, %c0_0] : memref<32x128xf32, #tpu.memory_space<vmem>>, vector<32x128xf32>
    %c0_1 = arith.constant 0 : index
    %c0_2 = arith.constant 0 : index
    %1 = vector.load %arg2[%c0_1, %c0_2] : memref<32x128xf32, #tpu.memory_space<vmem>>, vector<32x128xf32>
    %c0_3 = arith.constant 0 : index
    %c0_4 = arith.constant 0 : index
    %2 = vector.load %arg3[%c0_3, %c0_4] : memref<32x128xf32, #tpu.memory_space<vmem>>, vector<32x128xf32>
    %c0_5 = arith.constant 0 : index
    %c0_6 = arith.constant 0 : index
    %3 = vector.load %arg4[%c0_5, %c0_6] : memref<1x128xf32, #tpu.memory_space<vmem>>, vector<1x128xf32>
    %cst = arith.constant 0.000000e+00 : f32
    %4 = vector.broadcast %cst : f32 to vector<8x32xf32>
    %c0_i32 = arith.constant 0 : i32
    %5 = arith.index_cast %c0_i32 : i32 to index
    %c0_7 = arith.constant 0 : index
    %c0_8 = arith.constant 0 : index
    %6 = vector.load %arg0[%5, %c0_7, %c0_8] : memref<8x8x128xf32, #tpu.memory_space<vmem>>, vector<1x8x128xf32>
    %7 = vector.shape_cast %6 : vector<1x8x128xf32> to vector<8x128xf32>
    %cst_9 = arith.constant dense<0.000000e+00> : vector<8x128xf32>
    %8 = tpu.matmul %4, %0, %cst_9 {dimension_numbers = #tpu.dot_dimension_numbers<[1], [0], [0], [1], [0, 0, 1, 1], [], []>} : vector<8x32xf32>, vector<32x128xf32>, vector<8x128xf32> -> vector<8x128xf32>
    %9 = arith.addf %7, %8 : vector<8x128xf32>
    %10 = arith.negf %9 : vector<8x128xf32>
    %11 = math.exp %10 : vector<8x128xf32>
    %cst_10 = arith.constant 1.000000e+00 : f32
    %12 = vector.broadcast %cst_10 : f32 to vector<8x128xf32>
    %13 = arith.addf %12, %11 : vector<8x128xf32>
    %14 = arith.divf %12, %13 : vector<8x128xf32>
    %15 = vector.extract_strided_slice %14 {offsets = [0, 0], sizes = [8, 32], strides = [1, 1]} : vector<8x128xf32> to vector<8x32xf32>
    %16 = vector.extract_strided_slice %14 {offsets = [0, 32], sizes = [8, 32], strides = [1, 1]} : vector<8x128xf32> to vector<8x32xf32>
    %17 = vector.extract_strided_slice %14 {offsets = [0, 64], sizes = [8, 32], strides = [1, 1]} : vector<8x128xf32> to vector<8x32xf32>
    %cst_11 = arith.constant 2.000000e+00 : f32
    %18 = vector.broadcast %cst_11 : f32 to vector<8x32xf32>
    %19 = arith.mulf %18, %17 : vector<8x32xf32>
    %cst_12 = arith.constant 1.000000e+00 : f32
    %20 = vector.broadcast %cst_12 : f32 to vector<8x32xf32>
    %21 = arith.subf %19, %20 : vector<8x32xf32>
    %22 = vector.extract_strided_slice %14 {offsets = [0, 96], sizes = [8, 32], strides = [1, 1]} : vector<8x128xf32> to vector<8x32xf32>
    %23 = arith.mulf %16, %4 : vector<8x32xf32>
    %24 = arith.mulf %15, %21 : vector<8x32xf32>
    %25 = arith.addf %23, %24 : vector<8x32xf32>
    %26 = math.tanh %25 : vector<8x32xf32>
    %27 = arith.mulf %22, %26 : vector<8x32xf32>
    %cst_13 = arith.constant dense<0.000000e+00> : vector<8x128xf32>
    %28 = tpu.matmul %27, %1, %cst_13 {dimension_numbers = #tpu.dot_dimension_numbers<[1], [0], [0], [1], [0, 0, 1, 1], [], []>} : vector<8x32xf32>, vector<32x128xf32>, vector<8x128xf32> -> vector<8x128xf32>
    %cst_14 = arith.constant dense<0.000000e+00> : vector<8x128xf32>
    %29 = tpu.matmul %4, %2, %cst_14 {dimension_numbers = #tpu.dot_dimension_numbers<[1], [0], [0], [1], [0, 0, 1, 1], [], []>} : vector<8x32xf32>, vector<32x128xf32>, vector<8x128xf32> -> vector<8x128xf32>
    %30 = arith.addf %28, %29 : vector<8x128xf32>
    %31 = vector.broadcast %3 : vector<1x128xf32> to vector<8x128xf32>
    %32 = arith.addf %30, %31 : vector<8x128xf32>
    %33 = arith.negf %32 : vector<8x128xf32>
    %34 = math.exp %33 : vector<8x128xf32>
    %cst_15 = arith.constant 1.000000e+00 : f32
    %35 = vector.broadcast %cst_15 : f32 to vector<8x128xf32>
    %36 = arith.addf %35, %34 : vector<8x128xf32>
    %37 = arith.divf %35, %36 : vector<8x128xf32>
    %38 = vector.extract_strided_slice %37 {offsets = [0, 0], sizes = [8, 32], strides = [1, 1]} : vector<8x128xf32> to vector<8x32xf32>
    %39 = vector.extract_strided_slice %37 {offsets = [0, 32], sizes = [8, 32], strides = [1, 1]} : vector<8x128xf32> to vector<8x32xf32>
    %40 = vector.extract_strided_slice %37 {offsets = [0, 64], sizes = [8, 32], strides = [1, 1]} : vector<8x128xf32> to vector<8x32xf32>
    %cst_16 = arith.constant 2.000000e+00 : f32
    %41 = vector.broadcast %cst_16 : f32 to vector<8x32xf32>
    %42 = arith.mulf %41, %40 : vector<8x32xf32>
    %cst_17 = arith.constant 1.000000e+00 : f32
    %43 = vector.broadcast %cst_17 : f32 to vector<8x32xf32>
    %44 = arith.subf %42, %43 : vector<8x32xf32>
    %45 = vector.extract_strided_slice %37 {offsets = [0, 96], sizes = [8, 32], strides = [1, 1]} : vector<8x128xf32> to vector<8x32xf32>
    %46 = arith.mulf %39, %4 : vector<8x32xf32>
    %47 = arith.mulf %38, %44 : vector<8x32xf32>
    %48 = arith.addf %46, %47 : vector<8x32xf32>
    %49 = math.tanh %48 : vector<8x32xf32>
    %50 = arith.mulf %45, %49 : vector<8x32xf32>
    %51 = arith.index_cast %c0_i32 : i32 to index
    %c0_18 = arith.constant 0 : index
    %c0_19 = arith.constant 0 : index
    %52 = vector.load %arg10[%51, %c0_18, %c0_19] : memref<12x8x32xf32, #tpu.memory_space<vmem>>, vector<1x8x32xf32>
    %53 = vector.shape_cast %52 : vector<1x8x32xf32> to vector<8x32xf32>
    %54 = vector.shape_cast %50 : vector<8x32xf32> to vector<1x8x32xf32>
    tpu.vector_store %arg10[%51, %c0_18, %c0_19], %54 {strides = array<i32>} : memref<12x8x32xf32, #tpu.memory_space<vmem>>, vector<1x8x32xf32>,
    %c1_i32 = arith.constant 1 : i32
    %55 = arith.index_cast %c1_i32 : i32 to index
    %c0_20 = arith.constant 0 : index
    %c0_21 = arith.constant 0 : index
    %56 = vector.load %arg0[%55, %c0_20, %c0_21] : memref<8x8x128xf32, #tpu.memory_space<vmem>>, vector<1x8x128xf32>
    %57 = vector.shape_cast %56 : vector<1x8x128xf32> to vector<8x128xf32>
    %cst_22 = arith.constant dense<0.000000e+00> : vector<8x128xf32>
    %58 = tpu.matmul %27, %0, %cst_22 {dimension_numbers = #tpu.dot_dimension_numbers<[1], [0], [0], [1], [0, 0, 1, 1], [], []>} : vector<8x32xf32>, vector<32x128xf32>, vector<8x128xf32> -> vector<8x128xf32>
    %59 = arith.addf %57, %58 : vector<8x128xf32>
    %60 = arith.negf %59 : vector<8x128xf32>
    %61 = math.exp %60 : vector<8x128xf32>
    %cst_23 = arith.constant 1.000000e+00 : f32
    %62 = vector.broadcast %cst_23 : f32 to vector<8x128xf32>
    %63 = arith.addf %62, %61 : vector<8x128xf32>
    %64 = arith.divf %62, %63 : vector<8x128xf32>
    %65 = vector.extract_strided_slice %64 {offsets = [0, 0], sizes = [8, 32], strides = [1, 1]} : vector<8x128xf32> to vector<8x32xf32>
    %66 = vector.extract_strided_slice %64 {offsets = [0, 32], sizes = [8, 32], strides = [1, 1]} : vector<8x128xf32> to vector<8x32xf32>
    %67 = vector.extract_strided_slice %64 {offsets = [0, 64], sizes = [8, 32], strides = [1, 1]} : vector<8x128xf32> to vector<8x32xf32>
    %cst_24 = arith.constant 2.000000e+00 : f32
    %68 = vector.broadcast %cst_24 : f32 to vector<8x32xf32>
    %69 = arith.mulf %68, %67 : vector<8x32xf32>
    %cst_25 = arith.constant 1.000000e+00 : f32
    %70 = vector.broadcast %cst_25 : f32 to vector<8x32xf32>
    %71 = arith.subf %69, %70 : vector<8x32xf32>
    %72 = vector.extract_strided_slice %64 {offsets = [0, 96], sizes = [8, 32], strides = [1, 1]} : vector<8x128xf32> to vector<8x32xf32>
    %73 = arith.mulf %66, %25 : vector<8x32xf32>
    %74 = arith.mulf %65, %71 : vector<8x32xf32>
    %75 = arith.addf %73, %74 : vector<8x32xf32>
    %76 = math.tanh %75 : vector<8x32xf32>
    %77 = arith.mulf %72, %76 : vector<8x32xf32>
    %cst_26 = arith.constant dense<0.000000e+00> : vector<8x128xf32>
    %78 = tpu.matmul %77, %1, %cst_26 {dimension_numbers = #tpu.dot_dimension_numbers<[1], [0], [0], [1], [0, 0, 1, 1], [], []>} : vector<8x32xf32>, vector<32x128xf32>, vector<8x128xf32> -> vector<8x128xf32>
    %cst_27 = arith.constant dense<0.000000e+00> : vector<8x128xf32>
    %79 = tpu.matmul %50, %2, %cst_27 {dimension_numbers = #tpu.dot_dimension_numbers<[1], [0], [0], [1], [0, 0, 1, 1], [], []>} : vector<8x32xf32>, vector<32x128xf32>, vector<8x128xf32> -> vector<8x128xf32>
    %80 = arith.addf %78, %79 : vector<8x128xf32>
    %81 = vector.broadcast %3 : vector<1x128xf32> to vector<8x128xf32>
    %82 = arith.addf %80, %81 : vector<8x128xf32>
    %83 = arith.negf %82 : vector<8x128xf32>
    %84 = math.exp %83 : vector<8x128xf32>
    %cst_28 = arith.constant 1.000000e+00 : f32
    %85 = vector.broadcast %cst_28 : f32 to vector<8x128xf32>
    %86 = arith.addf %85, %84 : vector<8x128xf32>
    %87 = arith.divf %85, %86 : vector<8x128xf32>
    %88 = vector.extract_strided_slice %87 {offsets = [0, 0], sizes = [8, 32], strides = [1, 1]} : vector<8x128xf32> to vector<8x32xf32>
    %89 = vector.extract_strided_slice %87 {offsets = [0, 32], sizes = [8, 32], strides = [1, 1]} : vector<8x128xf32> to vector<8x32xf32>
    %90 = vector.extract_strided_slice %87 {offsets = [0, 64], sizes = [8, 32], strides = [1, 1]} : vector<8x128xf32> to vector<8x32xf32>
    %cst_29 = arith.constant 2.000000e+00 : f32
    %91 = vector.broadcast %cst_29 : f32 to vector<8x32xf32>
    %92 = arith.mulf %91, %90 : vector<8x32xf32>
    %cst_30 = arith.constant 1.000000e+00 : f32
    %93 = vector.broadcast %cst_30 : f32 to vector<8x32xf32>
    %94 = arith.subf %92, %93 : vector<8x32xf32>
    %95 = vector.extract_strided_slice %87 {offsets = [0, 96], sizes = [8, 32], strides = [1, 1]} : vector<8x128xf32> to vector<8x32xf32>
    %96 = arith.mulf %89, %48 : vector<8x32xf32>
    %97 = arith.mulf %88, %94 : vector<8x32xf32>
    %98 = arith.addf %96, %97 : vector<8x32xf32>
    %99 = math.tanh %98 : vector<8x32xf32>
    %100 = arith.mulf %95, %99 : vector<8x32xf32>
    %101 = arith.index_cast %c1_i32 : i32 to index
    %c0_31 = arith.constant 0 : index
    %c0_32 = arith.constant 0 : index
    %102 = vector.load %arg10[%101, %c0_31, %c0_32] : memref<12x8x32xf32, #tpu.memory_space<vmem>>, vector<1x8x32xf32>
    %103 = vector.shape_cast %102 : vector<1x8x32xf32> to vector<8x32xf32>
    %104 = vector.shape_cast %100 : vector<8x32xf32> to vector<1x8x32xf32>
    tpu.vector_store %arg10[%101, %c0_31, %c0_32], %104 {strides = array<i32>} : memref<12x8x32xf32, #tpu.memory_space<vmem>>, vector<1x8x32xf32>,
    %c2_i32 = arith.constant 2 : i32
    %105 = arith.index_cast %c2_i32 : i32 to index
    %c0_33 = arith.constant 0 : index
    %c0_34 = arith.constant 0 : index
    %106 = vector.load %arg0[%105, %c0_33, %c0_34] : memref<8x8x128xf32, #tpu.memory_space<vmem>>, vector<1x8x128xf32>
    %107 = vector.shape_cast %106 : vector<1x8x128xf32> to vector<8x128xf32>
    %cst_35 = arith.constant dense<0.000000e+00> : vector<8x128xf32>
    %108 = tpu.matmul %77, %0, %cst_35 {dimension_numbers = #tpu.dot_dimension_numbers<[1], [0], [0], [1], [0, 0, 1, 1], [], []>} : vector<8x32xf32>, vector<32x128xf32>, vector<8x128xf32> -> vector<8x128xf32>
    %109 = arith.addf %107, %108 : vector<8x128xf32>
    %110 = arith.negf %109 : vector<8x128xf32>
    %111 = math.exp %110 : vector<8x128xf32>
    %cst_36 = arith.constant 1.000000e+00 : f32
    %112 = vector.broadcast %cst_36 : f32 to vector<8x128xf32>
    %113 = arith.addf %112, %111 : vector<8x128xf32>
    %114 = arith.divf %112, %113 : vector<8x128xf32>
    %115 = vector.extract_strided_slice %114 {offsets = [0, 0], sizes = [8, 32], strides = [1, 1]} : vector<8x128xf32> to vector<8x32xf32>
    %116 = vector.extract_strided_slice %114 {offsets = [0, 32], sizes = [8, 32], strides = [1, 1]} : vector<8x128xf32> to vector<8x32xf32>
    %117 = vector.extract_strided_slice %114 {offsets = [0, 64], sizes = [8, 32], strides = [1, 1]} : vector<8x128xf32> to vector<8x32xf32>
    %cst_37 = arith.constant 2.000000e+00 : f32
    %118 = vector.broadcast %cst_37 : f32 to vector<8x32xf32>
    %119 = arith.mulf %118, %117 : vector<8x32xf32>
    %cst_38 = arith.constant 1.000000e+00 : f32
    %120 = vector.broadcast %cst_38 : f32 to vector<8x32xf32>
    %121 = arith.subf %119, %120 : vector<8x32xf32>
    %122 = vector.extract_strided_slice %114 {offsets = [0, 96], sizes = [8, 32], strides = [1, 1]} : vector<8x128xf32> to vector<8x32xf32>
    %123 = arith.mulf %116, %75 : vector<8x32xf32>
    %124 = arith.mulf %115, %121 : vector<8x32xf32>
    %125 = arith.addf %123, %124 : vector<8x32xf32>
    %126 = math.tanh %125 : vector<8x32xf32>
    %127 = arith.mulf %122, %126 : vector<8x32xf32>
    %cst_39 = arith.constant dense<0.000000e+00> : vector<8x128xf32>
    %128 = tpu.matmul %127, %1, %cst_39 {dimension_numbers = #tpu.dot_dimension_numbers<[1], [0], [0], [1], [0, 0, 1, 1], [], []>} : vector<8x32xf32>, vector<32x128xf32>, vector<8x128xf32> -> vector<8x128xf32>
    %cst_40 = arith.constant dense<0.000000e+00> : vector<8x128xf32>
    %129 = tpu.matmul %100, %2, %cst_40 {dimension_numbers = #tpu.dot_dimension_numbers<[1], [0], [0], [1], [0, 0, 1, 1], [], []>} : vector<8x32xf32>, vector<32x128xf32>, vector<8x128xf32> -> vector<8x128xf32>
    %130 = arith.addf %128, %129 : vector<8x128xf32>
    %131 = vector.broadcast %3 : vector<1x128xf32> to vector<8x128xf32>
    %132 = arith.addf %130, %131 : vector<8x128xf32>
    %133 = arith.negf %132 : vector<8x128xf32>
    %134 = math.exp %133 : vector<8x128xf32>
    %cst_41 = arith.constant 1.000000e+00 : f32
    %135 = vector.broadcast %cst_41 : f32 to vector<8x128xf32>
    %136 = arith.addf %135, %134 : vector<8x128xf32>
    %137 = arith.divf %135, %136 : vector<8x128xf32>
    %138 = vector.extract_strided_slice %137 {offsets = [0, 0], sizes = [8, 32], strides = [1, 1]} : vector<8x128xf32> to vector<8x32xf32>
    %139 = vector.extract_strided_slice %137 {offsets = [0, 32], sizes = [8, 32], strides = [1, 1]} : vector<8x128xf32> to vector<8x32xf32>
    %140 = vector.extract_strided_slice %137 {offsets = [0, 64], sizes = [8, 32], strides = [1, 1]} : vector<8x128xf32> to vector<8x32xf32>
    %cst_42 = arith.constant 2.000000e+00 : f32
    %141 = vector.broadcast %cst_42 : f32 to vector<8x32xf32>
    %142 = arith.mulf %141, %140 : vector<8x32xf32>
    %cst_43 = arith.constant 1.000000e+00 : f32
    %143 = vector.broadcast %cst_43 : f32 to vector<8x32xf32>
    %144 = arith.subf %142, %143 : vector<8x32xf32>
    %145 = vector.extract_strided_slice %137 {offsets = [0, 96], sizes = [8, 32], strides = [1, 1]} : vector<8x128xf32> to vector<8x32xf32>
    %146 = arith.mulf %139, %98 : vector<8x32xf32>
    %147 = arith.mulf %138, %144 : vector<8x32xf32>
    %148 = arith.addf %146, %147 : vector<8x32xf32>
    %149 = math.tanh %148 : vector<8x32xf32>
    %150 = arith.mulf %145, %149 : vector<8x32xf32>
    %151 = arith.index_cast %c2_i32 : i32 to index
    %c0_44 = arith.constant 0 : index
    %c0_45 = arith.constant 0 : index
    %152 = vector.load %arg10[%151, %c0_44, %c0_45] : memref<12x8x32xf32, #tpu.memory_space<vmem>>, vector<1x8x32xf32>
    %153 = vector.shape_cast %152 : vector<1x8x32xf32> to vector<8x32xf32>
    %154 = vector.shape_cast %150 : vector<8x32xf32> to vector<1x8x32xf32>
    tpu.vector_store %arg10[%151, %c0_44, %c0_45], %154 {strides = array<i32>} : memref<12x8x32xf32, #tpu.memory_space<vmem>>, vector<1x8x32xf32>,
    %c3_i32 = arith.constant 3 : i32
    %155 = arith.index_cast %c3_i32 : i32 to index
    %c0_46 = arith.constant 0 : index
    %c0_47 = arith.constant 0 : index
    %156 = vector.load %arg0[%155, %c0_46, %c0_47] : memref<8x8x128xf32, #tpu.memory_space<vmem>>, vector<1x8x128xf32>
    %157 = vector.shape_cast %156 : vector<1x8x128xf32> to vector<8x128xf32>
    %cst_48 = arith.constant dense<0.000000e+00> : vector<8x128xf32>
    %158 = tpu.matmul %127, %0, %cst_48 {dimension_numbers = #tpu.dot_dimension_numbers<[1], [0], [0], [1], [0, 0, 1, 1], [], []>} : vector<8x32xf32>, vector<32x128xf32>, vector<8x128xf32> -> vector<8x128xf32>
    %159 = arith.addf %157, %158 : vector<8x128xf32>
    %160 = arith.negf %159 : vector<8x128xf32>
    %161 = math.exp %160 : vector<8x128xf32>
    %cst_49 = arith.constant 1.000000e+00 : f32
    %162 = vector.broadcast %cst_49 : f32 to vector<8x128xf32>
    %163 = arith.addf %162, %161 : vector<8x128xf32>
    %164 = arith.divf %162, %163 : vector<8x128xf32>
    %165 = vector.extract_strided_slice %164 {offsets = [0, 0], sizes = [8, 32], strides = [1, 1]} : vector<8x128xf32> to vector<8x32xf32>
    %166 = vector.extract_strided_slice %164 {offsets = [0, 32], sizes = [8, 32], strides = [1, 1]} : vector<8x128xf32> to vector<8x32xf32>
    %167 = vector.extract_strided_slice %164 {offsets = [0, 64], sizes = [8, 32], strides = [1, 1]} : vector<8x128xf32> to vector<8x32xf32>
    %cst_50 = arith.constant 2.000000e+00 : f32
    %168 = vector.broadcast %cst_50 : f32 to vector<8x32xf32>
    %169 = arith.mulf %168, %167 : vector<8x32xf32>
    %cst_51 = arith.constant 1.000000e+00 : f32
    %170 = vector.broadcast %cst_51 : f32 to vector<8x32xf32>
    %171 = arith.subf %169, %170 : vector<8x32xf32>
    %172 = vector.extract_strided_slice %164 {offsets = [0, 96], sizes = [8, 32], strides = [1, 1]} : vector<8x128xf32> to vector<8x32xf32>
    %173 = arith.mulf %166, %125 : vector<8x32xf32>
    %174 = arith.mulf %165, %171 : vector<8x32xf32>
    %175 = arith.addf %173, %174 : vector<8x32xf32>
    %176 = math.tanh %175 : vector<8x32xf32>
    %177 = arith.mulf %172, %176 : vector<8x32xf32>
    %cst_52 = arith.constant dense<0.000000e+00> : vector<8x128xf32>
    %178 = tpu.matmul %177, %1, %cst_52 {dimension_numbers = #tpu.dot_dimension_numbers<[1], [0], [0], [1], [0, 0, 1, 1], [], []>} : vector<8x32xf32>, vector<32x128xf32>, vector<8x128xf32> -> vector<8x128xf32>
    %cst_53 = arith.constant dense<0.000000e+00> : vector<8x128xf32>
    %179 = tpu.matmul %150, %2, %cst_53 {dimension_numbers = #tpu.dot_dimension_numbers<[1], [0], [0], [1], [0, 0, 1, 1], [], []>} : vector<8x32xf32>, vector<32x128xf32>, vector<8x128xf32> -> vector<8x128xf32>
    %180 = arith.addf %178, %179 : vector<8x128xf32>
    %181 = vector.broadcast %3 : vector<1x128xf32> to vector<8x128xf32>
    %182 = arith.addf %180, %181 : vector<8x128xf32>
    %183 = arith.negf %182 : vector<8x128xf32>
    %184 = math.exp %183 : vector<8x128xf32>
    %cst_54 = arith.constant 1.000000e+00 : f32
    %185 = vector.broadcast %cst_54 : f32 to vector<8x128xf32>
    %186 = arith.addf %185, %184 : vector<8x128xf32>
    %187 = arith.divf %185, %186 : vector<8x128xf32>
    %188 = vector.extract_strided_slice %187 {offsets = [0, 0], sizes = [8, 32], strides = [1, 1]} : vector<8x128xf32> to vector<8x32xf32>
    %189 = vector.extract_strided_slice %187 {offsets = [0, 32], sizes = [8, 32], strides = [1, 1]} : vector<8x128xf32> to vector<8x32xf32>
    %190 = vector.extract_strided_slice %187 {offsets = [0, 64], sizes = [8, 32], strides = [1, 1]} : vector<8x128xf32> to vector<8x32xf32>
    %cst_55 = arith.constant 2.000000e+00 : f32
    %191 = vector.broadcast %cst_55 : f32 to vector<8x32xf32>
    %192 = arith.mulf %191, %190 : vector<8x32xf32>
    %cst_56 = arith.constant 1.000000e+00 : f32
    %193 = vector.broadcast %cst_56 : f32 to vector<8x32xf32>
    %194 = arith.subf %192, %193 : vector<8x32xf32>
    %195 = vector.extract_strided_slice %187 {offsets = [0, 96], sizes = [8, 32], strides = [1, 1]} : vector<8x128xf32> to vector<8x32xf32>
    %196 = arith.mulf %189, %148 : vector<8x32xf32>
    %197 = arith.mulf %188, %194 : vector<8x32xf32>
    %198 = arith.addf %196, %197 : vector<8x32xf32>
    %199 = math.tanh %198 : vector<8x32xf32>
    %200 = arith.mulf %195, %199 : vector<8x32xf32>
    %201 = arith.index_cast %c3_i32 : i32 to index
    %c0_57 = arith.constant 0 : index
    %c0_58 = arith.constant 0 : index
    %202 = vector.load %arg10[%201, %c0_57, %c0_58] : memref<12x8x32xf32, #tpu.memory_space<vmem>>, vector<1x8x32xf32>
    %203 = vector.shape_cast %202 : vector<1x8x32xf32> to vector<8x32xf32>
    %204 = vector.shape_cast %200 : vector<8x32xf32> to vector<1x8x32xf32>
    tpu.vector_store %arg10[%201, %c0_57, %c0_58], %204 {strides = array<i32>} : memref<12x8x32xf32, #tpu.memory_space<vmem>>, vector<1x8x32xf32>,
    %c4_i32 = arith.constant 4 : i32
    %205 = arith.index_cast %c4_i32 : i32 to index
    %c0_59 = arith.constant 0 : index
    %c0_60 = arith.constant 0 : index
    %206 = vector.load %arg0[%205, %c0_59, %c0_60] : memref<8x8x128xf32, #tpu.memory_space<vmem>>, vector<1x8x128xf32>
    %207 = vector.shape_cast %206 : vector<1x8x128xf32> to vector<8x128xf32>
    %cst_61 = arith.constant dense<0.000000e+00> : vector<8x128xf32>
    %208 = tpu.matmul %177, %0, %cst_61 {dimension_numbers = #tpu.dot_dimension_numbers<[1], [0], [0], [1], [0, 0, 1, 1], [], []>} : vector<8x32xf32>, vector<32x128xf32>, vector<8x128xf32> -> vector<8x128xf32>
    %209 = arith.addf %207, %208 : vector<8x128xf32>
    %210 = arith.negf %209 : vector<8x128xf32>
    %211 = math.exp %210 : vector<8x128xf32>
    %cst_62 = arith.constant 1.000000e+00 : f32
    %212 = vector.broadcast %cst_62 : f32 to vector<8x128xf32>
    %213 = arith.addf %212, %211 : vector<8x128xf32>
    %214 = arith.divf %212, %213 : vector<8x128xf32>
    %215 = vector.extract_strided_slice %214 {offsets = [0, 0], sizes = [8, 32], strides = [1, 1]} : vector<8x128xf32> to vector<8x32xf32>
    %216 = vector.extract_strided_slice %214 {offsets = [0, 32], sizes = [8, 32], strides = [1, 1]} : vector<8x128xf32> to vector<8x32xf32>
    %217 = vector.extract_strided_slice %214 {offsets = [0, 64], sizes = [8, 32], strides = [1, 1]} : vector<8x128xf32> to vector<8x32xf32>
    %cst_63 = arith.constant 2.000000e+00 : f32
    %218 = vector.broadcast %cst_63 : f32 to vector<8x32xf32>
    %219 = arith.mulf %218, %217 : vector<8x32xf32>
    %cst_64 = arith.constant 1.000000e+00 : f32
    %220 = vector.broadcast %cst_64 : f32 to vector<8x32xf32>
    %221 = arith.subf %219, %220 : vector<8x32xf32>
    %222 = vector.extract_strided_slice %214 {offsets = [0, 96], sizes = [8, 32], strides = [1, 1]} : vector<8x128xf32> to vector<8x32xf32>
    %223 = arith.mulf %216, %175 : vector<8x32xf32>
    %224 = arith.mulf %215, %221 : vector<8x32xf32>
    %225 = arith.addf %223, %224 : vector<8x32xf32>
    %226 = math.tanh %225 : vector<8x32xf32>
    %227 = arith.mulf %222, %226 : vector<8x32xf32>
    %cst_65 = arith.constant dense<0.000000e+00> : vector<8x128xf32>
    %228 = tpu.matmul %227, %1, %cst_65 {dimension_numbers = #tpu.dot_dimension_numbers<[1], [0], [0], [1], [0, 0, 1, 1], [], []>} : vector<8x32xf32>, vector<32x128xf32>, vector<8x128xf32> -> vector<8x128xf32>
    %cst_66 = arith.constant dense<0.000000e+00> : vector<8x128xf32>
    %229 = tpu.matmul %200, %2, %cst_66 {dimension_numbers = #tpu.dot_dimension_numbers<[1], [0], [0], [1], [0, 0, 1, 1], [], []>} : vector<8x32xf32>, vector<32x128xf32>, vector<8x128xf32> -> vector<8x128xf32>
    %230 = arith.addf %228, %229 : vector<8x128xf32>
    %231 = vector.broadcast %3 : vector<1x128xf32> to vector<8x128xf32>
    %232 = arith.addf %230, %231 : vector<8x128xf32>
    %233 = arith.negf %232 : vector<8x128xf32>
    %234 = math.exp %233 : vector<8x128xf32>
    %cst_67 = arith.constant 1.000000e+00 : f32
    %235 = vector.broadcast %cst_67 : f32 to vector<8x128xf32>
    %236 = arith.addf %235, %234 : vector<8x128xf32>
    %237 = arith.divf %235, %236 : vector<8x128xf32>
    %238 = vector.extract_strided_slice %237 {offsets = [0, 0], sizes = [8, 32], strides = [1, 1]} : vector<8x128xf32> to vector<8x32xf32>
    %239 = vector.extract_strided_slice %237 {offsets = [0, 32], sizes = [8, 32], strides = [1, 1]} : vector<8x128xf32> to vector<8x32xf32>
    %240 = vector.extract_strided_slice %237 {offsets = [0, 64], sizes = [8, 32], strides = [1, 1]} : vector<8x128xf32> to vector<8x32xf32>
    %cst_68 = arith.constant 2.000000e+00 : f32
    %241 = vector.broadcast %cst_68 : f32 to vector<8x32xf32>
    %242 = arith.mulf %241, %240 : vector<8x32xf32>
    %cst_69 = arith.constant 1.000000e+00 : f32
    %243 = vector.broadcast %cst_69 : f32 to vector<8x32xf32>
    %244 = arith.subf %242, %243 : vector<8x32xf32>
    %245 = vector.extract_strided_slice %237 {offsets = [0, 96], sizes = [8, 32], strides = [1, 1]} : vector<8x128xf32> to vector<8x32xf32>
    %246 = arith.mulf %239, %198 : vector<8x32xf32>
    %247 = arith.mulf %238, %244 : vector<8x32xf32>
    %248 = arith.addf %246, %247 : vector<8x32xf32>
    %249 = math.tanh %248 : vector<8x32xf32>
    %250 = arith.mulf %245, %249 : vector<8x32xf32>
    %251 = arith.index_cast %c4_i32 : i32 to index
    %c0_70 = arith.constant 0 : index
    %c0_71 = arith.constant 0 : index
    %252 = vector.load %arg10[%251, %c0_70, %c0_71] : memref<12x8x32xf32, #tpu.memory_space<vmem>>, vector<1x8x32xf32>
    %253 = vector.shape_cast %252 : vector<1x8x32xf32> to vector<8x32xf32>
    %254 = vector.shape_cast %250 : vector<8x32xf32> to vector<1x8x32xf32>
    tpu.vector_store %arg10[%251, %c0_70, %c0_71], %254 {strides = array<i32>} : memref<12x8x32xf32, #tpu.memory_space<vmem>>, vector<1x8x32xf32>,
    %c5_i32 = arith.constant 5 : i32
    %255 = arith.index_cast %c5_i32 : i32 to index
    %c0_72 = arith.constant 0 : index
    %c0_73 = arith.constant 0 : index
    %256 = vector.load %arg0[%255, %c0_72, %c0_73] : memref<8x8x128xf32, #tpu.memory_space<vmem>>, vector<1x8x128xf32>
    %257 = vector.shape_cast %256 : vector<1x8x128xf32> to vector<8x128xf32>
    %cst_74 = arith.constant dense<0.000000e+00> : vector<8x128xf32>
    %258 = tpu.matmul %227, %0, %cst_74 {dimension_numbers = #tpu.dot_dimension_numbers<[1], [0], [0], [1], [0, 0, 1, 1], [], []>} : vector<8x32xf32>, vector<32x128xf32>, vector<8x128xf32> -> vector<8x128xf32>
    %259 = arith.addf %257, %258 : vector<8x128xf32>
    %260 = arith.negf %259 : vector<8x128xf32>
    %261 = math.exp %260 : vector<8x128xf32>
    %cst_75 = arith.constant 1.000000e+00 : f32
    %262 = vector.broadcast %cst_75 : f32 to vector<8x128xf32>
    %263 = arith.addf %262, %261 : vector<8x128xf32>
    %264 = arith.divf %262, %263 : vector<8x128xf32>
    %265 = vector.extract_strided_slice %264 {offsets = [0, 0], sizes = [8, 32], strides = [1, 1]} : vector<8x128xf32> to vector<8x32xf32>
    %266 = vector.extract_strided_slice %264 {offsets = [0, 32], sizes = [8, 32], strides = [1, 1]} : vector<8x128xf32> to vector<8x32xf32>
    %267 = vector.extract_strided_slice %264 {offsets = [0, 64], sizes = [8, 32], strides = [1, 1]} : vector<8x128xf32> to vector<8x32xf32>
    %cst_76 = arith.constant 2.000000e+00 : f32
    %268 = vector.broadcast %cst_76 : f32 to vector<8x32xf32>
    %269 = arith.mulf %268, %267 : vector<8x32xf32>
    %cst_77 = arith.constant 1.000000e+00 : f32
    %270 = vector.broadcast %cst_77 : f32 to vector<8x32xf32>
    %271 = arith.subf %269, %270 : vector<8x32xf32>
    %272 = vector.extract_strided_slice %264 {offsets = [0, 96], sizes = [8, 32], strides = [1, 1]} : vector<8x128xf32> to vector<8x32xf32>
    %273 = arith.mulf %266, %225 : vector<8x32xf32>
    %274 = arith.mulf %265, %271 : vector<8x32xf32>
    %275 = arith.addf %273, %274 : vector<8x32xf32>
    %276 = math.tanh %275 : vector<8x32xf32>
    %277 = arith.mulf %272, %276 : vector<8x32xf32>
    %cst_78 = arith.constant dense<0.000000e+00> : vector<8x128xf32>
    %278 = tpu.matmul %277, %1, %cst_78 {dimension_numbers = #tpu.dot_dimension_numbers<[1], [0], [0], [1], [0, 0, 1, 1], [], []>} : vector<8x32xf32>, vector<32x128xf32>, vector<8x128xf32> -> vector<8x128xf32>
    %cst_79 = arith.constant dense<0.000000e+00> : vector<8x128xf32>
    %279 = tpu.matmul %250, %2, %cst_79 {dimension_numbers = #tpu.dot_dimension_numbers<[1], [0], [0], [1], [0, 0, 1, 1], [], []>} : vector<8x32xf32>, vector<32x128xf32>, vector<8x128xf32> -> vector<8x128xf32>
    %280 = arith.addf %278, %279 : vector<8x128xf32>
    %281 = vector.broadcast %3 : vector<1x128xf32> to vector<8x128xf32>
    %282 = arith.addf %280, %281 : vector<8x128xf32>
    %283 = arith.negf %282 : vector<8x128xf32>
    %284 = math.exp %283 : vector<8x128xf32>
    %cst_80 = arith.constant 1.000000e+00 : f32
    %285 = vector.broadcast %cst_80 : f32 to vector<8x128xf32>
    %286 = arith.addf %285, %284 : vector<8x128xf32>
    %287 = arith.divf %285, %286 : vector<8x128xf32>
    %288 = vector.extract_strided_slice %287 {offsets = [0, 0], sizes = [8, 32], strides = [1, 1]} : vector<8x128xf32> to vector<8x32xf32>
    %289 = vector.extract_strided_slice %287 {offsets = [0, 32], sizes = [8, 32], strides = [1, 1]} : vector<8x128xf32> to vector<8x32xf32>
    %290 = vector.extract_strided_slice %287 {offsets = [0, 64], sizes = [8, 32], strides = [1, 1]} : vector<8x128xf32> to vector<8x32xf32>
    %cst_81 = arith.constant 2.000000e+00 : f32
    %291 = vector.broadcast %cst_81 : f32 to vector<8x32xf32>
    %292 = arith.mulf %291, %290 : vector<8x32xf32>
    %cst_82 = arith.constant 1.000000e+00 : f32
    %293 = vector.broadcast %cst_82 : f32 to vector<8x32xf32>
    %294 = arith.subf %292, %293 : vector<8x32xf32>
    %295 = vector.extract_strided_slice %287 {offsets = [0, 96], sizes = [8, 32], strides = [1, 1]} : vector<8x128xf32> to vector<8x32xf32>
    %296 = arith.mulf %289, %248 : vector<8x32xf32>
    %297 = arith.mulf %288, %294 : vector<8x32xf32>
    %298 = arith.addf %296, %297 : vector<8x32xf32>
    %299 = math.tanh %298 : vector<8x32xf32>
    %300 = arith.mulf %295, %299 : vector<8x32xf32>
    %301 = arith.index_cast %c5_i32 : i32 to index
    %c0_83 = arith.constant 0 : index
    %c0_84 = arith.constant 0 : index
    %302 = vector.load %arg10[%301, %c0_83, %c0_84] : memref<12x8x32xf32, #tpu.memory_space<vmem>>, vector<1x8x32xf32>
    %303 = vector.shape_cast %302 : vector<1x8x32xf32> to vector<8x32xf32>
    %304 = vector.shape_cast %300 : vector<8x32xf32> to vector<1x8x32xf32>
    tpu.vector_store %arg10[%301, %c0_83, %c0_84], %304 {strides = array<i32>} : memref<12x8x32xf32, #tpu.memory_space<vmem>>, vector<1x8x32xf32>,
    %c6_i32 = arith.constant 6 : i32
    %305 = arith.index_cast %c6_i32 : i32 to index
    %c0_85 = arith.constant 0 : index
    %c0_86 = arith.constant 0 : index
    %306 = vector.load %arg0[%305, %c0_85, %c0_86] : memref<8x8x128xf32, #tpu.memory_space<vmem>>, vector<1x8x128xf32>
    %307 = vector.shape_cast %306 : vector<1x8x128xf32> to vector<8x128xf32>
    %cst_87 = arith.constant dense<0.000000e+00> : vector<8x128xf32>
    %308 = tpu.matmul %277, %0, %cst_87 {dimension_numbers = #tpu.dot_dimension_numbers<[1], [0], [0], [1], [0, 0, 1, 1], [], []>} : vector<8x32xf32>, vector<32x128xf32>, vector<8x128xf32> -> vector<8x128xf32>
    %309 = arith.addf %307, %308 : vector<8x128xf32>
    %310 = arith.negf %309 : vector<8x128xf32>
    %311 = math.exp %310 : vector<8x128xf32>
    %cst_88 = arith.constant 1.000000e+00 : f32
    %312 = vector.broadcast %cst_88 : f32 to vector<8x128xf32>
    %313 = arith.addf %312, %311 : vector<8x128xf32>
    %314 = arith.divf %312, %313 : vector<8x128xf32>
    %315 = vector.extract_strided_slice %314 {offsets = [0, 0], sizes = [8, 32], strides = [1, 1]} : vector<8x128xf32> to vector<8x32xf32>
    %316 = vector.extract_strided_slice %314 {offsets = [0, 32], sizes = [8, 32], strides = [1, 1]} : vector<8x128xf32> to vector<8x32xf32>
    %317 = vector.extract_strided_slice %314 {offsets = [0, 64], sizes = [8, 32], strides = [1, 1]} : vector<8x128xf32> to vector<8x32xf32>
    %cst_89 = arith.constant 2.000000e+00 : f32
    %318 = vector.broadcast %cst_89 : f32 to vector<8x32xf32>
    %319 = arith.mulf %318, %317 : vector<8x32xf32>
    %cst_90 = arith.constant 1.000000e+00 : f32
    %320 = vector.broadcast %cst_90 : f32 to vector<8x32xf32>
    %321 = arith.subf %319, %320 : vector<8x32xf32>
    %322 = vector.extract_strided_slice %314 {offsets = [0, 96], sizes = [8, 32], strides = [1, 1]} : vector<8x128xf32> to vector<8x32xf32>
    %323 = arith.mulf %316, %275 : vector<8x32xf32>
    %324 = arith.mulf %315, %321 : vector<8x32xf32>
    %325 = arith.addf %323, %324 : vector<8x32xf32>
    %326 = math.tanh %325 : vector<8x32xf32>
    %327 = arith.mulf %322, %326 : vector<8x32xf32>
    %cst_91 = arith.constant dense<0.000000e+00> : vector<8x128xf32>
    %328 = tpu.matmul %327, %1, %cst_91 {dimension_numbers = #tpu.dot_dimension_numbers<[1], [0], [0], [1], [0, 0, 1, 1], [], []>} : vector<8x32xf32>, vector<32x128xf32>, vector<8x128xf32> -> vector<8x128xf32>
    %cst_92 = arith.constant dense<0.000000e+00> : vector<8x128xf32>
    %329 = tpu.matmul %300, %2, %cst_92 {dimension_numbers = #tpu.dot_dimension_numbers<[1], [0], [0], [1], [0, 0, 1, 1], [], []>} : vector<8x32xf32>, vector<32x128xf32>, vector<8x128xf32> -> vector<8x128xf32>
    %330 = arith.addf %328, %329 : vector<8x128xf32>
    %331 = vector.broadcast %3 : vector<1x128xf32> to vector<8x128xf32>
    %332 = arith.addf %330, %331 : vector<8x128xf32>
    %333 = arith.negf %332 : vector<8x128xf32>
    %334 = math.exp %333 : vector<8x128xf32>
    %cst_93 = arith.constant 1.000000e+00 : f32
    %335 = vector.broadcast %cst_93 : f32 to vector<8x128xf32>
    %336 = arith.addf %335, %334 : vector<8x128xf32>
    %337 = arith.divf %335, %336 : vector<8x128xf32>
    %338 = vector.extract_strided_slice %337 {offsets = [0, 0], sizes = [8, 32], strides = [1, 1]} : vector<8x128xf32> to vector<8x32xf32>
    %339 = vector.extract_strided_slice %337 {offsets = [0, 32], sizes = [8, 32], strides = [1, 1]} : vector<8x128xf32> to vector<8x32xf32>
    %340 = vector.extract_strided_slice %337 {offsets = [0, 64], sizes = [8, 32], strides = [1, 1]} : vector<8x128xf32> to vector<8x32xf32>
    %cst_94 = arith.constant 2.000000e+00 : f32
    %341 = vector.broadcast %cst_94 : f32 to vector<8x32xf32>
    %342 = arith.mulf %341, %340 : vector<8x32xf32>
    %cst_95 = arith.constant 1.000000e+00 : f32
    %343 = vector.broadcast %cst_95 : f32 to vector<8x32xf32>
    %344 = arith.subf %342, %343 : vector<8x32xf32>
    %345 = vector.extract_strided_slice %337 {offsets = [0, 96], sizes = [8, 32], strides = [1, 1]} : vector<8x128xf32> to vector<8x32xf32>
    %346 = arith.mulf %339, %298 : vector<8x32xf32>
    %347 = arith.mulf %338, %344 : vector<8x32xf32>
    %348 = arith.addf %346, %347 : vector<8x32xf32>
    %349 = math.tanh %348 : vector<8x32xf32>
    %350 = arith.mulf %345, %349 : vector<8x32xf32>
    %351 = arith.index_cast %c6_i32 : i32 to index
    %c0_96 = arith.constant 0 : index
    %c0_97 = arith.constant 0 : index
    %352 = vector.load %arg10[%351, %c0_96, %c0_97] : memref<12x8x32xf32, #tpu.memory_space<vmem>>, vector<1x8x32xf32>
    %353 = vector.shape_cast %352 : vector<1x8x32xf32> to vector<8x32xf32>
    %354 = vector.shape_cast %350 : vector<8x32xf32> to vector<1x8x32xf32>
    tpu.vector_store %arg10[%351, %c0_96, %c0_97], %354 {strides = array<i32>} : memref<12x8x32xf32, #tpu.memory_space<vmem>>, vector<1x8x32xf32>,
    %c7_i32 = arith.constant 7 : i32
    %355 = arith.index_cast %c7_i32 : i32 to index
    %c0_98 = arith.constant 0 : index
    %c0_99 = arith.constant 0 : index
    %356 = vector.load %arg0[%355, %c0_98, %c0_99] : memref<8x8x128xf32, #tpu.memory_space<vmem>>, vector<1x8x128xf32>
    %357 = vector.shape_cast %356 : vector<1x8x128xf32> to vector<8x128xf32>
    %cst_100 = arith.constant dense<0.000000e+00> : vector<8x128xf32>
    %358 = tpu.matmul %327, %0, %cst_100 {dimension_numbers = #tpu.dot_dimension_numbers<[1], [0], [0], [1], [0, 0, 1, 1], [], []>} : vector<8x32xf32>, vector<32x128xf32>, vector<8x128xf32> -> vector<8x128xf32>
    %359 = arith.addf %357, %358 : vector<8x128xf32>
    %360 = arith.negf %359 : vector<8x128xf32>
    %361 = math.exp %360 : vector<8x128xf32>
    %cst_101 = arith.constant 1.000000e+00 : f32
    %362 = vector.broadcast %cst_101 : f32 to vector<8x128xf32>
    %363 = arith.addf %362, %361 : vector<8x128xf32>
    %364 = arith.divf %362, %363 : vector<8x128xf32>
    %365 = vector.extract_strided_slice %364 {offsets = [0, 0], sizes = [8, 32], strides = [1, 1]} : vector<8x128xf32> to vector<8x32xf32>
    %366 = vector.extract_strided_slice %364 {offsets = [0, 32], sizes = [8, 32], strides = [1, 1]} : vector<8x128xf32> to vector<8x32xf32>
    %367 = vector.extract_strided_slice %364 {offsets = [0, 64], sizes = [8, 32], strides = [1, 1]} : vector<8x128xf32> to vector<8x32xf32>
    %cst_102 = arith.constant 2.000000e+00 : f32
    %368 = vector.broadcast %cst_102 : f32 to vector<8x32xf32>
    %369 = arith.mulf %368, %367 : vector<8x32xf32>
    %cst_103 = arith.constant 1.000000e+00 : f32
    %370 = vector.broadcast %cst_103 : f32 to vector<8x32xf32>
    %371 = arith.subf %369, %370 : vector<8x32xf32>
    %372 = vector.extract_strided_slice %364 {offsets = [0, 96], sizes = [8, 32], strides = [1, 1]} : vector<8x128xf32> to vector<8x32xf32>
    %373 = arith.mulf %366, %325 : vector<8x32xf32>
    %374 = arith.mulf %365, %371 : vector<8x32xf32>
    %375 = arith.addf %373, %374 : vector<8x32xf32>
    %376 = math.tanh %375 : vector<8x32xf32>
    %377 = arith.mulf %372, %376 : vector<8x32xf32>
    %cst_104 = arith.constant dense<0.000000e+00> : vector<8x128xf32>
    %378 = tpu.matmul %377, %1, %cst_104 {dimension_numbers = #tpu.dot_dimension_numbers<[1], [0], [0], [1], [0, 0, 1, 1], [], []>} : vector<8x32xf32>, vector<32x128xf32>, vector<8x128xf32> -> vector<8x128xf32>
    %cst_105 = arith.constant dense<0.000000e+00> : vector<8x128xf32>
    %379 = tpu.matmul %350, %2, %cst_105 {dimension_numbers = #tpu.dot_dimension_numbers<[1], [0], [0], [1], [0, 0, 1, 1], [], []>} : vector<8x32xf32>, vector<32x128xf32>, vector<8x128xf32> -> vector<8x128xf32>
    %380 = arith.addf %378, %379 : vector<8x128xf32>
    %381 = vector.broadcast %3 : vector<1x128xf32> to vector<8x128xf32>
    %382 = arith.addf %380, %381 : vector<8x128xf32>
    %383 = arith.negf %382 : vector<8x128xf32>
    %384 = math.exp %383 : vector<8x128xf32>
    %cst_106 = arith.constant 1.000000e+00 : f32
    %385 = vector.broadcast %cst_106 : f32 to vector<8x128xf32>
    %386 = arith.addf %385, %384 : vector<8x128xf32>
    %387 = arith.divf %385, %386 : vector<8x128xf32>
    %388 = vector.extract_strided_slice %387 {offsets = [0, 0], sizes = [8, 32], strides = [1, 1]} : vector<8x128xf32> to vector<8x32xf32>
    %389 = vector.extract_strided_slice %387 {offsets = [0, 32], sizes = [8, 32], strides = [1, 1]} : vector<8x128xf32> to vector<8x32xf32>
    %390 = vector.extract_strided_slice %387 {offsets = [0, 64], sizes = [8, 32], strides = [1, 1]} : vector<8x128xf32> to vector<8x32xf32>
    %cst_107 = arith.constant 2.000000e+00 : f32
    %391 = vector.broadcast %cst_107 : f32 to vector<8x32xf32>
    %392 = arith.mulf %391, %390 : vector<8x32xf32>
    %cst_108 = arith.constant 1.000000e+00 : f32
    %393 = vector.broadcast %cst_108 : f32 to vector<8x32xf32>
    %394 = arith.subf %392, %393 : vector<8x32xf32>
    %395 = vector.extract_strided_slice %387 {offsets = [0, 96], sizes = [8, 32], strides = [1, 1]} : vector<8x128xf32> to vector<8x32xf32>
    %396 = arith.mulf %389, %348 : vector<8x32xf32>
    %397 = arith.mulf %388, %394 : vector<8x32xf32>
    %398 = arith.addf %396, %397 : vector<8x32xf32>
    %399 = math.tanh %398 : vector<8x32xf32>
    %400 = arith.mulf %395, %399 : vector<8x32xf32>
    %401 = arith.index_cast %c7_i32 : i32 to index
    %c0_109 = arith.constant 0 : index
    %c0_110 = arith.constant 0 : index
    %402 = vector.load %arg10[%401, %c0_109, %c0_110] : memref<12x8x32xf32, #tpu.memory_space<vmem>>, vector<1x8x32xf32>
    %403 = vector.shape_cast %402 : vector<1x8x32xf32> to vector<8x32xf32>
    %404 = vector.shape_cast %400 : vector<8x32xf32> to vector<1x8x32xf32>
    tpu.vector_store %arg10[%401, %c0_109, %c0_110], %404 {strides = array<i32>} : memref<12x8x32xf32, #tpu.memory_space<vmem>>, vector<1x8x32xf32>,
    %c8_i32 = arith.constant 8 : i32
    %c0_111 = arith.constant 0 : index
    %c0_112 = arith.constant 0 : index
    %405 = vector.load %arg5[%c0_111, %c0_112] : memref<32x128xf32, #tpu.memory_space<vmem>>, vector<32x128xf32>
    %c0_113 = arith.constant 0 : index
    %c0_114 = arith.constant 0 : index
    %406 = vector.load %arg6[%c0_113, %c0_114] : memref<1x128xf32, #tpu.memory_space<vmem>>, vector<1x128xf32>
    %c0_i32_115 = arith.constant 0 : i32
    %cst_116 = arith.constant dense<0.000000e+00> : vector<8x128xf32>
    %407 = tpu.matmul %377, %0, %cst_116 {dimension_numbers = #tpu.dot_dimension_numbers<[1], [0], [0], [1], [0, 0, 1, 1], [], []>} : vector<8x32xf32>, vector<32x128xf32>, vector<8x128xf32> -> vector<8x128xf32>
    %cst_117 = arith.constant dense<0.000000e+00> : vector<8x128xf32>
    %408 = tpu.matmul %400, %405, %cst_117 {dimension_numbers = #tpu.dot_dimension_numbers<[1], [0], [0], [1], [0, 0, 1, 1], [], []>} : vector<8x32xf32>, vector<32x128xf32>, vector<8x128xf32> -> vector<8x128xf32>
    %409 = arith.addf %407, %408 : vector<8x128xf32>
    %410 = vector.broadcast %406 : vector<1x128xf32> to vector<8x128xf32>
    %411 = arith.addf %409, %410 : vector<8x128xf32>
    %412 = arith.negf %411 : vector<8x128xf32>
    %413 = math.exp %412 : vector<8x128xf32>
    %cst_118 = arith.constant 1.000000e+00 : f32
    %414 = vector.broadcast %cst_118 : f32 to vector<8x128xf32>
    %415 = arith.addf %414, %413 : vector<8x128xf32>
    %416 = arith.divf %414, %415 : vector<8x128xf32>
    %417 = vector.extract_strided_slice %416 {offsets = [0, 0], sizes = [8, 32], strides = [1, 1]} : vector<8x128xf32> to vector<8x32xf32>
    %418 = vector.extract_strided_slice %416 {offsets = [0, 32], sizes = [8, 32], strides = [1, 1]} : vector<8x128xf32> to vector<8x32xf32>
    %419 = vector.extract_strided_slice %416 {offsets = [0, 64], sizes = [8, 32], strides = [1, 1]} : vector<8x128xf32> to vector<8x32xf32>
    %cst_119 = arith.constant 2.000000e+00 : f32
    %420 = vector.broadcast %cst_119 : f32 to vector<8x32xf32>
    %421 = arith.mulf %420, %419 : vector<8x32xf32>
    %cst_120 = arith.constant 1.000000e+00 : f32
    %422 = vector.broadcast %cst_120 : f32 to vector<8x32xf32>
    %423 = arith.subf %421, %422 : vector<8x32xf32>
    %424 = vector.extract_strided_slice %416 {offsets = [0, 96], sizes = [8, 32], strides = [1, 1]} : vector<8x128xf32> to vector<8x32xf32>
    %425 = arith.mulf %418, %375 : vector<8x32xf32>
    %426 = arith.mulf %417, %423 : vector<8x32xf32>
    %427 = arith.addf %425, %426 : vector<8x32xf32>
    %428 = math.tanh %427 : vector<8x32xf32>
    %429 = arith.mulf %424, %428 : vector<8x32xf32>
    %c8_i32_121 = arith.constant 8 : i32
    %430 = arith.addi %c8_i32_121, %c0_i32_115 : i32
    %cst_122 = arith.constant dense<0.000000e+00> : vector<8x128xf32>
    %431 = tpu.matmul %429, %1, %cst_122 {dimension_numbers = #tpu.dot_dimension_numbers<[1], [0], [0], [1], [0, 0, 1, 1], [], []>} : vector<8x32xf32>, vector<32x128xf32>, vector<8x128xf32> -> vector<8x128xf32>
    %cst_123 = arith.constant dense<0.000000e+00> : vector<8x128xf32>
    %432 = tpu.matmul %400, %2, %cst_123 {dimension_numbers = #tpu.dot_dimension_numbers<[1], [0], [0], [1], [0, 0, 1, 1], [], []>} : vector<8x32xf32>, vector<32x128xf32>, vector<8x128xf32> -> vector<8x128xf32>
    %433 = arith.addf %431, %432 : vector<8x128xf32>
    %434 = vector.broadcast %3 : vector<1x128xf32> to vector<8x128xf32>
    %435 = arith.addf %433, %434 : vector<8x128xf32>
    %436 = arith.negf %435 : vector<8x128xf32>
    %437 = math.exp %436 : vector<8x128xf32>
    %cst_124 = arith.constant 1.000000e+00 : f32
    %438 = vector.broadcast %cst_124 : f32 to vector<8x128xf32>
    %439 = arith.addf %438, %437 : vector<8x128xf32>
    %440 = arith.divf %438, %439 : vector<8x128xf32>
    %441 = vector.extract_strided_slice %440 {offsets = [0, 0], sizes = [8, 32], strides = [1, 1]} : vector<8x128xf32> to vector<8x32xf32>
    %442 = vector.extract_strided_slice %440 {offsets = [0, 32], sizes = [8, 32], strides = [1, 1]} : vector<8x128xf32> to vector<8x32xf32>
    %443 = vector.extract_strided_slice %440 {offsets = [0, 64], sizes = [8, 32], strides = [1, 1]} : vector<8x128xf32> to vector<8x32xf32>
    %cst_125 = arith.constant 2.000000e+00 : f32
    %444 = vector.broadcast %cst_125 : f32 to vector<8x32xf32>
    %445 = arith.mulf %444, %443 : vector<8x32xf32>
    %cst_126 = arith.constant 1.000000e+00 : f32
    %446 = vector.broadcast %cst_126 : f32 to vector<8x32xf32>
    %447 = arith.subf %445, %446 : vector<8x32xf32>
    %448 = vector.extract_strided_slice %440 {offsets = [0, 96], sizes = [8, 32], strides = [1, 1]} : vector<8x128xf32> to vector<8x32xf32>
    %449 = arith.mulf %442, %398 : vector<8x32xf32>
    %450 = arith.mulf %441, %447 : vector<8x32xf32>
    %451 = arith.addf %449, %450 : vector<8x32xf32>
    %452 = math.tanh %451 : vector<8x32xf32>
    %453 = arith.mulf %448, %452 : vector<8x32xf32>
    %454 = arith.index_cast %430 : i32 to index
    %c0_127 = arith.constant 0 : index
    %c0_128 = arith.constant 0 : index
    %455 = vector.load %arg10[%454, %c0_127, %c0_128] : memref<12x8x32xf32, #tpu.memory_space<vmem>>, vector<1x8x32xf32>
    %456 = vector.shape_cast %455 : vector<1x8x32xf32> to vector<8x32xf32>
    %457 = vector.shape_cast %453 : vector<8x32xf32> to vector<1x8x32xf32>
    tpu.vector_store %arg10[%454, %c0_127, %c0_128], %457 {strides = array<i32>} : memref<12x8x32xf32, #tpu.memory_space<vmem>>, vector<1x8x32xf32>,
    %c1_i32_129 = arith.constant 1 : i32
    %cst_130 = arith.constant dense<0.000000e+00> : vector<8x128xf32>
    %458 = tpu.matmul %429, %0, %cst_130 {dimension_numbers = #tpu.dot_dimension_numbers<[1], [0], [0], [1], [0, 0, 1, 1], [], []>} : vector<8x32xf32>, vector<32x128xf32>, vector<8x128xf32> -> vector<8x128xf32>
    %cst_131 = arith.constant dense<0.000000e+00> : vector<8x128xf32>
    %459 = tpu.matmul %453, %405, %cst_131 {dimension_numbers = #tpu.dot_dimension_numbers<[1], [0], [0], [1], [0, 0, 1, 1], [], []>} : vector<8x32xf32>, vector<32x128xf32>, vector<8x128xf32> -> vector<8x128xf32>
    %460 = arith.addf %458, %459 : vector<8x128xf32>
    %461 = vector.broadcast %406 : vector<1x128xf32> to vector<8x128xf32>
    %462 = arith.addf %460, %461 : vector<8x128xf32>
    %463 = arith.negf %462 : vector<8x128xf32>
    %464 = math.exp %463 : vector<8x128xf32>
    %cst_132 = arith.constant 1.000000e+00 : f32
    %465 = vector.broadcast %cst_132 : f32 to vector<8x128xf32>
    %466 = arith.addf %465, %464 : vector<8x128xf32>
    %467 = arith.divf %465, %466 : vector<8x128xf32>
    %468 = vector.extract_strided_slice %467 {offsets = [0, 0], sizes = [8, 32], strides = [1, 1]} : vector<8x128xf32> to vector<8x32xf32>
    %469 = vector.extract_strided_slice %467 {offsets = [0, 32], sizes = [8, 32], strides = [1, 1]} : vector<8x128xf32> to vector<8x32xf32>
    %470 = vector.extract_strided_slice %467 {offsets = [0, 64], sizes = [8, 32], strides = [1, 1]} : vector<8x128xf32> to vector<8x32xf32>
    %cst_133 = arith.constant 2.000000e+00 : f32
    %471 = vector.broadcast %cst_133 : f32 to vector<8x32xf32>
    %472 = arith.mulf %471, %470 : vector<8x32xf32>
    %cst_134 = arith.constant 1.000000e+00 : f32
    %473 = vector.broadcast %cst_134 : f32 to vector<8x32xf32>
    %474 = arith.subf %472, %473 : vector<8x32xf32>
    %475 = vector.extract_strided_slice %467 {offsets = [0, 96], sizes = [8, 32], strides = [1, 1]} : vector<8x128xf32> to vector<8x32xf32>
    %476 = arith.mulf %469, %427 : vector<8x32xf32>
    %477 = arith.mulf %468, %474 : vector<8x32xf32>
    %478 = arith.addf %476, %477 : vector<8x32xf32>
    %479 = math.tanh %478 : vector<8x32xf32>
    %480 = arith.mulf %475, %479 : vector<8x32xf32>
    %c8_i32_135 = arith.constant 8 : i32
    %481 = arith.addi %c8_i32_135, %c1_i32_129 : i32
    %cst_136 = arith.constant dense<0.000000e+00> : vector<8x128xf32>
    %482 = tpu.matmul %480, %1, %cst_136 {dimension_numbers = #tpu.dot_dimension_numbers<[1], [0], [0], [1], [0, 0, 1, 1], [], []>} : vector<8x32xf32>, vector<32x128xf32>, vector<8x128xf32> -> vector<8x128xf32>
    %cst_137 = arith.constant dense<0.000000e+00> : vector<8x128xf32>
    %483 = tpu.matmul %453, %2, %cst_137 {dimension_numbers = #tpu.dot_dimension_numbers<[1], [0], [0], [1], [0, 0, 1, 1], [], []>} : vector<8x32xf32>, vector<32x128xf32>, vector<8x128xf32> -> vector<8x128xf32>
    %484 = arith.addf %482, %483 : vector<8x128xf32>
    %485 = vector.broadcast %3 : vector<1x128xf32> to vector<8x128xf32>
    %486 = arith.addf %484, %485 : vector<8x128xf32>
    %487 = arith.negf %486 : vector<8x128xf32>
    %488 = math.exp %487 : vector<8x128xf32>
    %cst_138 = arith.constant 1.000000e+00 : f32
    %489 = vector.broadcast %cst_138 : f32 to vector<8x128xf32>
    %490 = arith.addf %489, %488 : vector<8x128xf32>
    %491 = arith.divf %489, %490 : vector<8x128xf32>
    %492 = vector.extract_strided_slice %491 {offsets = [0, 0], sizes = [8, 32], strides = [1, 1]} : vector<8x128xf32> to vector<8x32xf32>
    %493 = vector.extract_strided_slice %491 {offsets = [0, 32], sizes = [8, 32], strides = [1, 1]} : vector<8x128xf32> to vector<8x32xf32>
    %494 = vector.extract_strided_slice %491 {offsets = [0, 64], sizes = [8, 32], strides = [1, 1]} : vector<8x128xf32> to vector<8x32xf32>
    %cst_139 = arith.constant 2.000000e+00 : f32
    %495 = vector.broadcast %cst_139 : f32 to vector<8x32xf32>
    %496 = arith.mulf %495, %494 : vector<8x32xf32>
    %cst_140 = arith.constant 1.000000e+00 : f32
    %497 = vector.broadcast %cst_140 : f32 to vector<8x32xf32>
    %498 = arith.subf %496, %497 : vector<8x32xf32>
    %499 = vector.extract_strided_slice %491 {offsets = [0, 96], sizes = [8, 32], strides = [1, 1]} : vector<8x128xf32> to vector<8x32xf32>
    %500 = arith.mulf %493, %451 : vector<8x32xf32>
    %501 = arith.mulf %492, %498 : vector<8x32xf32>
    %502 = arith.addf %500, %501 : vector<8x32xf32>
    %503 = math.tanh %502 : vector<8x32xf32>
    %504 = arith.mulf %499, %503 : vector<8x32xf32>
    %505 = arith.index_cast %481 : i32 to index
    %c0_141 = arith.constant 0 : index
    %c0_142 = arith.constant 0 : index
    %506 = vector.load %arg10[%505, %c0_141, %c0_142] : memref<12x8x32xf32, #tpu.memory_space<vmem>>, vector<1x8x32xf32>
    %507 = vector.shape_cast %506 : vector<1x8x32xf32> to vector<8x32xf32>
    %508 = vector.shape_cast %504 : vector<8x32xf32> to vector<1x8x32xf32>
    tpu.vector_store %arg10[%505, %c0_141, %c0_142], %508 {strides = array<i32>} : memref<12x8x32xf32, #tpu.memory_space<vmem>>, vector<1x8x32xf32>,
    %c2_i32_143 = arith.constant 2 : i32
    %cst_144 = arith.constant dense<0.000000e+00> : vector<8x128xf32>
    %509 = tpu.matmul %480, %0, %cst_144 {dimension_numbers = #tpu.dot_dimension_numbers<[1], [0], [0], [1], [0, 0, 1, 1], [], []>} : vector<8x32xf32>, vector<32x128xf32>, vector<8x128xf32> -> vector<8x128xf32>
    %cst_145 = arith.constant dense<0.000000e+00> : vector<8x128xf32>
    %510 = tpu.matmul %504, %405, %cst_145 {dimension_numbers = #tpu.dot_dimension_numbers<[1], [0], [0], [1], [0, 0, 1, 1], [], []>} : vector<8x32xf32>, vector<32x128xf32>, vector<8x128xf32> -> vector<8x128xf32>
    %511 = arith.addf %509, %510 : vector<8x128xf32>
    %512 = vector.broadcast %406 : vector<1x128xf32> to vector<8x128xf32>
    %513 = arith.addf %511, %512 : vector<8x128xf32>
    %514 = arith.negf %513 : vector<8x128xf32>
    %515 = math.exp %514 : vector<8x128xf32>
    %cst_146 = arith.constant 1.000000e+00 : f32
    %516 = vector.broadcast %cst_146 : f32 to vector<8x128xf32>
    %517 = arith.addf %516, %515 : vector<8x128xf32>
    %518 = arith.divf %516, %517 : vector<8x128xf32>
    %519 = vector.extract_strided_slice %518 {offsets = [0, 0], sizes = [8, 32], strides = [1, 1]} : vector<8x128xf32> to vector<8x32xf32>
    %520 = vector.extract_strided_slice %518 {offsets = [0, 32], sizes = [8, 32], strides = [1, 1]} : vector<8x128xf32> to vector<8x32xf32>
    %521 = vector.extract_strided_slice %518 {offsets = [0, 64], sizes = [8, 32], strides = [1, 1]} : vector<8x128xf32> to vector<8x32xf32>
    %cst_147 = arith.constant 2.000000e+00 : f32
    %522 = vector.broadcast %cst_147 : f32 to vector<8x32xf32>
    %523 = arith.mulf %522, %521 : vector<8x32xf32>
    %cst_148 = arith.constant 1.000000e+00 : f32
    %524 = vector.broadcast %cst_148 : f32 to vector<8x32xf32>
    %525 = arith.subf %523, %524 : vector<8x32xf32>
    %526 = vector.extract_strided_slice %518 {offsets = [0, 96], sizes = [8, 32], strides = [1, 1]} : vector<8x128xf32> to vector<8x32xf32>
    %527 = arith.mulf %520, %478 : vector<8x32xf32>
    %528 = arith.mulf %519, %525 : vector<8x32xf32>
    %529 = arith.addf %527, %528 : vector<8x32xf32>
    %530 = math.tanh %529 : vector<8x32xf32>
    %531 = arith.mulf %526, %530 : vector<8x32xf32>
    %c8_i32_149 = arith.constant 8 : i32
    %532 = arith.addi %c8_i32_149, %c2_i32_143 : i32
    %cst_150 = arith.constant dense<0.000000e+00> : vector<8x128xf32>
    %533 = tpu.matmul %531, %1, %cst_150 {dimension_numbers = #tpu.dot_dimension_numbers<[1], [0], [0], [1], [0, 0, 1, 1], [], []>} : vector<8x32xf32>, vector<32x128xf32>, vector<8x128xf32> -> vector<8x128xf32>
    %cst_151 = arith.constant dense<0.000000e+00> : vector<8x128xf32>
    %534 = tpu.matmul %504, %2, %cst_151 {dimension_numbers = #tpu.dot_dimension_numbers<[1], [0], [0], [1], [0, 0, 1, 1], [], []>} : vector<8x32xf32>, vector<32x128xf32>, vector<8x128xf32> -> vector<8x128xf32>
    %535 = arith.addf %533, %534 : vector<8x128xf32>
    %536 = vector.broadcast %3 : vector<1x128xf32> to vector<8x128xf32>
    %537 = arith.addf %535, %536 : vector<8x128xf32>
    %538 = arith.negf %537 : vector<8x128xf32>
    %539 = math.exp %538 : vector<8x128xf32>
    %cst_152 = arith.constant 1.000000e+00 : f32
    %540 = vector.broadcast %cst_152 : f32 to vector<8x128xf32>
    %541 = arith.addf %540, %539 : vector<8x128xf32>
    %542 = arith.divf %540, %541 : vector<8x128xf32>
    %543 = vector.extract_strided_slice %542 {offsets = [0, 0], sizes = [8, 32], strides = [1, 1]} : vector<8x128xf32> to vector<8x32xf32>
    %544 = vector.extract_strided_slice %542 {offsets = [0, 32], sizes = [8, 32], strides = [1, 1]} : vector<8x128xf32> to vector<8x32xf32>
    %545 = vector.extract_strided_slice %542 {offsets = [0, 64], sizes = [8, 32], strides = [1, 1]} : vector<8x128xf32> to vector<8x32xf32>
    %cst_153 = arith.constant 2.000000e+00 : f32
    %546 = vector.broadcast %cst_153 : f32 to vector<8x32xf32>
    %547 = arith.mulf %546, %545 : vector<8x32xf32>
    %cst_154 = arith.constant 1.000000e+00 : f32
    %548 = vector.broadcast %cst_154 : f32 to vector<8x32xf32>
    %549 = arith.subf %547, %548 : vector<8x32xf32>
    %550 = vector.extract_strided_slice %542 {offsets = [0, 96], sizes = [8, 32], strides = [1, 1]} : vector<8x128xf32> to vector<8x32xf32>
    %551 = arith.mulf %544, %502 : vector<8x32xf32>
    %552 = arith.mulf %543, %549 : vector<8x32xf32>
    %553 = arith.addf %551, %552 : vector<8x32xf32>
    %554 = math.tanh %553 : vector<8x32xf32>
    %555 = arith.mulf %550, %554 : vector<8x32xf32>
    %556 = arith.index_cast %532 : i32 to index
    %c0_155 = arith.constant 0 : index
    %c0_156 = arith.constant 0 : index
    %557 = vector.load %arg10[%556, %c0_155, %c0_156] : memref<12x8x32xf32, #tpu.memory_space<vmem>>, vector<1x8x32xf32>
    %558 = vector.shape_cast %557 : vector<1x8x32xf32> to vector<8x32xf32>
    %559 = vector.shape_cast %555 : vector<8x32xf32> to vector<1x8x32xf32>
    tpu.vector_store %arg10[%556, %c0_155, %c0_156], %559 {strides = array<i32>} : memref<12x8x32xf32, #tpu.memory_space<vmem>>, vector<1x8x32xf32>,
    %c3_i32_157 = arith.constant 3 : i32
    %cst_158 = arith.constant dense<0.000000e+00> : vector<8x128xf32>
    %560 = tpu.matmul %531, %0, %cst_158 {dimension_numbers = #tpu.dot_dimension_numbers<[1], [0], [0], [1], [0, 0, 1, 1], [], []>} : vector<8x32xf32>, vector<32x128xf32>, vector<8x128xf32> -> vector<8x128xf32>
    %cst_159 = arith.constant dense<0.000000e+00> : vector<8x128xf32>
    %561 = tpu.matmul %555, %405, %cst_159 {dimension_numbers = #tpu.dot_dimension_numbers<[1], [0], [0], [1], [0, 0, 1, 1], [], []>} : vector<8x32xf32>, vector<32x128xf32>, vector<8x128xf32> -> vector<8x128xf32>
    %562 = arith.addf %560, %561 : vector<8x128xf32>
    %563 = vector.broadcast %406 : vector<1x128xf32> to vector<8x128xf32>
    %564 = arith.addf %562, %563 : vector<8x128xf32>
    %565 = arith.negf %564 : vector<8x128xf32>
    %566 = math.exp %565 : vector<8x128xf32>
    %cst_160 = arith.constant 1.000000e+00 : f32
    %567 = vector.broadcast %cst_160 : f32 to vector<8x128xf32>
    %568 = arith.addf %567, %566 : vector<8x128xf32>
    %569 = arith.divf %567, %568 : vector<8x128xf32>
    %570 = vector.extract_strided_slice %569 {offsets = [0, 0], sizes = [8, 32], strides = [1, 1]} : vector<8x128xf32> to vector<8x32xf32>
    %571 = vector.extract_strided_slice %569 {offsets = [0, 32], sizes = [8, 32], strides = [1, 1]} : vector<8x128xf32> to vector<8x32xf32>
    %572 = vector.extract_strided_slice %569 {offsets = [0, 64], sizes = [8, 32], strides = [1, 1]} : vector<8x128xf32> to vector<8x32xf32>
    %cst_161 = arith.constant 2.000000e+00 : f32
    %573 = vector.broadcast %cst_161 : f32 to vector<8x32xf32>
    %574 = arith.mulf %573, %572 : vector<8x32xf32>
    %cst_162 = arith.constant 1.000000e+00 : f32
    %575 = vector.broadcast %cst_162 : f32 to vector<8x32xf32>
    %576 = arith.subf %574, %575 : vector<8x32xf32>
    %577 = vector.extract_strided_slice %569 {offsets = [0, 96], sizes = [8, 32], strides = [1, 1]} : vector<8x128xf32> to vector<8x32xf32>
    %578 = arith.mulf %571, %529 : vector<8x32xf32>
    %579 = arith.mulf %570, %576 : vector<8x32xf32>
    %580 = arith.addf %578, %579 : vector<8x32xf32>
    %581 = math.tanh %580 : vector<8x32xf32>
    %582 = arith.mulf %577, %581 : vector<8x32xf32>
    %c8_i32_163 = arith.constant 8 : i32
    %583 = arith.addi %c8_i32_163, %c3_i32_157 : i32
    %cst_164 = arith.constant dense<0.000000e+00> : vector<8x128xf32>
    %584 = tpu.matmul %582, %1, %cst_164 {dimension_numbers = #tpu.dot_dimension_numbers<[1], [0], [0], [1], [0, 0, 1, 1], [], []>} : vector<8x32xf32>, vector<32x128xf32>, vector<8x128xf32> -> vector<8x128xf32>
    %cst_165 = arith.constant dense<0.000000e+00> : vector<8x128xf32>
    %585 = tpu.matmul %555, %2, %cst_165 {dimension_numbers = #tpu.dot_dimension_numbers<[1], [0], [0], [1], [0, 0, 1, 1], [], []>} : vector<8x32xf32>, vector<32x128xf32>, vector<8x128xf32> -> vector<8x128xf32>
    %586 = arith.addf %584, %585 : vector<8x128xf32>
    %587 = vector.broadcast %3 : vector<1x128xf32> to vector<8x128xf32>
    %588 = arith.addf %586, %587 : vector<8x128xf32>
    %589 = arith.negf %588 : vector<8x128xf32>
    %590 = math.exp %589 : vector<8x128xf32>
    %cst_166 = arith.constant 1.000000e+00 : f32
    %591 = vector.broadcast %cst_166 : f32 to vector<8x128xf32>
    %592 = arith.addf %591, %590 : vector<8x128xf32>
    %593 = arith.divf %591, %592 : vector<8x128xf32>
    %594 = vector.extract_strided_slice %593 {offsets = [0, 0], sizes = [8, 32], strides = [1, 1]} : vector<8x128xf32> to vector<8x32xf32>
    %595 = vector.extract_strided_slice %593 {offsets = [0, 32], sizes = [8, 32], strides = [1, 1]} : vector<8x128xf32> to vector<8x32xf32>
    %596 = vector.extract_strided_slice %593 {offsets = [0, 64], sizes = [8, 32], strides = [1, 1]} : vector<8x128xf32> to vector<8x32xf32>
    %cst_167 = arith.constant 2.000000e+00 : f32
    %597 = vector.broadcast %cst_167 : f32 to vector<8x32xf32>
    %598 = arith.mulf %597, %596 : vector<8x32xf32>
    %cst_168 = arith.constant 1.000000e+00 : f32
    %599 = vector.broadcast %cst_168 : f32 to vector<8x32xf32>
    %600 = arith.subf %598, %599 : vector<8x32xf32>
    %601 = vector.extract_strided_slice %593 {offsets = [0, 96], sizes = [8, 32], strides = [1, 1]} : vector<8x128xf32> to vector<8x32xf32>
    %602 = arith.mulf %595, %553 : vector<8x32xf32>
    %603 = arith.mulf %594, %600 : vector<8x32xf32>
    %604 = arith.addf %602, %603 : vector<8x32xf32>
    %605 = math.tanh %604 : vector<8x32xf32>
    %606 = arith.mulf %601, %605 : vector<8x32xf32>
    %607 = arith.index_cast %583 : i32 to index
    %c0_169 = arith.constant 0 : index
    %c0_170 = arith.constant 0 : index
    %608 = vector.load %arg10[%607, %c0_169, %c0_170] : memref<12x8x32xf32, #tpu.memory_space<vmem>>, vector<1x8x32xf32>
    %609 = vector.shape_cast %608 : vector<1x8x32xf32> to vector<8x32xf32>
    %610 = vector.shape_cast %606 : vector<8x32xf32> to vector<1x8x32xf32>
    tpu.vector_store %arg10[%607, %c0_169, %c0_170], %610 {strides = array<i32>} : memref<12x8x32xf32, #tpu.memory_space<vmem>>, vector<1x8x32xf32>,
    %c4_i32_171 = arith.constant 4 : i32
    %c0_172 = arith.constant 0 : index
    %c0_173 = arith.constant 0 : index
    %611 = vector.load %arg7[%c0_172, %c0_173] : memref<1x32xf32, #tpu.memory_space<vmem>>, vector<1x32xf32>
    %c0_174 = arith.constant 0 : index
    %c0_175 = arith.constant 0 : index
    %c0_176 = arith.constant 0 : index
    %612 = vector.load %arg10[%c0_174, %c0_175, %c0_176] : memref<12x8x32xf32, #tpu.memory_space<vmem>>, vector<12x8x32xf32>
    %613 = vector.shape_cast %611 : vector<1x32xf32> to vector<1x1x32xf32>
    %614 = vector.broadcast %613 : vector<1x1x32xf32> to vector<12x8x32xf32>
    %615 = arith.mulf %612, %614 : vector<12x8x32xf32>
    %cst_177 = arith.constant dense<0.000000e+00> : vector<12x8xf32>
    %616 = vector.multi_reduction <add>, %615, %cst_177 [2] : vector<12x8x32xf32> to vector<12x8xf32>
    %c0_178 = arith.constant 0 : index
    %c0_179 = arith.constant 0 : index
    %617 = vector.load %arg8[%c0_178, %c0_179] : memref<1x1xf32, #tpu.memory_space<vmem>>, vector<1x1xf32>
    %618 = vector.broadcast %617 : vector<1x1xf32> to vector<12x8xf32>
    %619 = arith.addf %616, %618 : vector<12x8xf32>
    %c0_180 = arith.constant 0 : index
    %c0_181 = arith.constant 0 : index
    %620 = vector.load %arg9[%c0_180, %c0_181] : memref<12x8xf32, #tpu.memory_space<vmem>>, vector<12x8xf32>
    tpu.vector_store %arg9[%c0_180, %c0_181], %619 {strides = array<i32>} : memref<12x8xf32, #tpu.memory_space<vmem>>, vector<12x8xf32>,
    return
  }
}

</mosaic_0001>

<llo_original>
// kernel: tpu_custom_call.1
$region0: #{tpu_custom_call.1}
  #allocation0 [shape = 'u32[]', space=smem, size = 0x4, offset = 0x4, fixed_abs, tag = 'smem constant byte address 0x4 - core index']
  #allocation1 [shape = 'u32[144,128]{1,0:T(1,128)}', space=vmem, size = 0x12000, scoped, tag = 'internal scratch']
  #allocation2 [shape = 'f32[12,8,32]{2,1,0:T(8,128)}', space=vmem, size = 0xc000, scoped, tag = 'scratch operand']
  #allocation3 [shape = 'f32[1,1]{1,0:T(1,128)S(1)}', space=vmem, size = 0x200, scoped, tag = 'scoped memory for tpu_custom_call.1']
  %s0 = inlined_call_operand.hbm [shape: f32[8,8,128], index: 0, kind: input, shape index: {}]
  %s1 = inlined_call_operand.hbm [shape: f32[32,128], index: 1, kind: input, shape index: {}]
  %s2 = inlined_call_operand.hbm [shape: f32[32,128], index: 2, kind: input, shape index: {}]
  %s3 = inlined_call_operand.hbm [shape: f32[32,128], index: 3, kind: input, shape index: {}]
  %s4 = inlined_call_operand.vmem [shape: f32[1,128], index: 4, kind: input, shape index: {}]
  %s5 = inlined_call_operand.hbm [shape: f32[32,128], index: 5, kind: input, shape index: {}]
  %s6 = inlined_call_operand.vmem [shape: f32[1,128], index: 6, kind: input, shape index: {}]
  %s7 = inlined_call_operand.vmem [shape: f32[1,32], index: 7, kind: input, shape index: {}]
  %s8 = inlined_call_operand.<no memory space> [shape: f32[1,1], index: 8, kind: input, shape index: {}]
  %s9 = inlined_call_operand.vmem [shape: f32[12,8], index: 9, kind: output, shape index: {}]
  %s10 = sld [smem:[#allocation0]]
  $region66: #{tpu_custom_call.1} parent=0
    _
  %s12 = ssub.s32 1, %s10
  %s13 = scalar_select 0, %s12, %s10
  %v14 = vstv %s8
  %15 = vst [vmem:[#allocation3] sm:$0x1] %v14
  $region1: #{tpu_custom_call.1} parent=0
    #allocation4 [shape = 'u8[32768]{0}', space=vmem, size = 0x8000, scoped, tag = 'input window, operand 0, single buffered']
    #allocation5 [shape = 's32[1]{0}', space=sflag, size = 0x4, scoped, tag = 'scoped memory for tpu_custom_call.1']
    #allocation6 [shape = 'u8[16384]{0}', space=vmem, size = 0x4000, scoped, tag = 'input window, operand 1, single buffered']
    #allocation7 [shape = 's32[1]{0}', space=sflag, size = 0x4, scoped, tag = 'scoped memory for tpu_custom_call.1']
    #allocation8 [shape = 'u8[16384]{0}', space=vmem, size = 0x4000, scoped, tag = 'input window, operand 2, single buffered']
    #allocation9 [shape = 'u8[16384]{0}', space=vmem, size = 0x4000, scoped, tag = 'input window, operand 3, single buffered']
    #allocation10 [shape = 's32[1]{0}', space=sflag, size = 0x4, scoped, tag = 'scoped memory for tpu_custom_call.1']
    #allocation11 [shape = 'u8[16384]{0}', space=vmem, size = 0x4000, scoped, tag = 'input window, operand 5, single buffered']
    %16 = vsyncpa [#allocation5], 0
    %17 = vsyncpa [#allocation7], 0
    %18 = vsyncpa [#allocation10], 0
    // Predicated region
    $region2: #{tpu_custom_call.1} parent=1 // pred_check
      _
    $region3: #{tpu_custom_call.1} parent=1 // pred_check_branch
      %20 = sbr.rel (0) target = $region5
    $region4: #{tpu_custom_call.1} parent=1 // pred_region
      %s22 = ssub.s32 1024, 1024
      %23 = vsyncadd [#allocation5], %s22
      %s24 = sshll.u32 [#allocation4], 4
      %s25 = int_to_ptr.vmem [resolvable:$true] %s24
      %30 = dma.hbm_to_vmem [thread:$0]  %s0, 1024, %s25, [#allocation5], 128, 128, 8
    $region5: #{tpu_custom_call.1} parent=1 // pred_fallthru
      _
    // Predicated region
    $region6: #{tpu_custom_call.1} parent=1 // pred_check
      _
    $region7: #{tpu_custom_call.1} parent=1 // pred_check_branch
      %32 = sbr.rel (0) target = $region9
    $region8: #{tpu_custom_call.1} parent=1 // pred_region
      %s34 = ssub.s32 512, 512
      %35 = vsyncadd [#allocation7], %s34
      %s36 = sshll.u32 [#allocation6], 4
      %s37 = int_to_ptr.vmem [resolvable:$true] %s36
      %42 = dma.hbm_to_vmem [thread:$0]  %s1, 512, %s37, [#allocation7], 128, 128, 8
    $region9: #{tpu_custom_call.1} parent=1 // pred_fallthru
      _
    // Predicated region
    $region10: #{tpu_custom_call.1} parent=1 // pred_check
      _
    $region11: #{tpu_custom_call.1} parent=1 // pred_check_branch
      %44 = sbr.rel (0) target = $region13
    $region12: #{tpu_custom_call.1} parent=1 // pred_region
      %s46 = ssub.s32 512, 512
      %47 = vsyncadd [#allocation7], %s46
      %s48 = sshll.u32 [#allocation8], 4
      %s49 = int_to_ptr.vmem [resolvable:$true] %s48
      %54 = dma.hbm_to_vmem [thread:$0]  %s2, 512, %s49, [#allocation7], 128, 128, 8
    $region13: #{tpu_custom_call.1} parent=1 // pred_fallthru
      _
    // Predicated region
    $region14: #{tpu_custom_call.1} parent=1 // pred_check
      _
    $region15: #{tpu_custom_call.1} parent=1 // pred_check_branch
      %56 = sbr.rel (0) target = $region17
    $region16: #{tpu_custom_call.1} parent=1 // pred_region
      %s58 = ssub.s32 512, 512
      %59 = vsyncadd [#allocation10], %s58
      %s60 = sshll.u32 [#allocation9], 4
      %s61 = int_to_ptr.vmem [resolvable:$true] %s60
      %66 = dma.hbm_to_vmem [thread:$0]  %s3, 512, %s61, [#allocation10], 128, 128, 8
    $region17: #{tpu_custom_call.1} parent=1 // pred_fallthru
      _
    // Predicated region
    $region18: #{tpu_custom_call.1} parent=1 // pred_check
      _
    $region19: #{tpu_custom_call.1} parent=1 // pred_check_branch
      %68 = sbr.rel (0) target = $region21
    $region20: #{tpu_custom_call.1} parent=1 // pred_region
      _
    $region21: #{tpu_custom_call.1} parent=1 // pred_fallthru
      _
    // Predicated region
    $region22: #{tpu_custom_call.1} parent=1 // pred_check
      _
    $region23: #{tpu_custom_call.1} parent=1 // pred_check_branch
      %70 = sbr.rel (0) target = $region25
    $region24: #{tpu_custom_call.1} parent=1 // pred_region
      %s72 = ssub.s32 512, 512
      %73 = vsyncadd [#allocation10], %s72
      %s74 = sshll.u32 [#allocation11], 4
      %s75 = int_to_ptr.vmem [resolvable:$true] %s74
      %80 = dma.hbm_to_vmem [thread:$0]  %s5, 512, %s75, [#allocation10], 128, 128, 8
    $region25: #{tpu_custom_call.1} parent=1 // pred_fallthru
      _
    // Predicated region
    $region26: #{tpu_custom_call.1} parent=1 // pred_check
      _
    $region27: #{tpu_custom_call.1} parent=1 // pred_check_branch
      %82 = sbr.rel (0) target = $region29
    $region28: #{tpu_custom_call.1} parent=1 // pred_region
      _
    $region29: #{tpu_custom_call.1} parent=1 // pred_fallthru
      _
    // Predicated region
    $region30: #{tpu_custom_call.1} parent=1 // pred_check
      _
    $region31: #{tpu_custom_call.1} parent=1 // pred_check_branch
      %84 = sbr.rel (0) target = $region33
    $region32: #{tpu_custom_call.1} parent=1 // pred_region
      _
    $region33: #{tpu_custom_call.1} parent=1 // pred_fallthru
      _
    // Predicated region
    $region34: #{tpu_custom_call.1} parent=1 // pred_check
      _
    $region35: #{tpu_custom_call.1} parent=1 // pred_check_branch
      %86 = sbr.rel (0) target = $region37
    $region36: #{tpu_custom_call.1} parent=1 // pred_region
      _
    $region37: #{tpu_custom_call.1} parent=1 // pred_fallthru
      _
    // Predicated region
    $region38: #{tpu_custom_call.1} parent=1 // pred_check
      _
    $region39: #{tpu_custom_call.1} parent=1 // pred_check_branch
      %88 = sbr.rel (0) target = $region41
    $region40: #{tpu_custom_call.1} parent=1 // pred_region
      %89 = dma.done [#allocation5], 1024
    $region41: #{tpu_custom_call.1} parent=1 // pred_fallthru
      _
    // Predicated region
    $region42: #{tpu_custom_call.1} parent=1 // pred_check
      _
    $region43: #{tpu_custom_call.1} parent=1 // pred_check_branch
      %91 = sbr.rel (0) target = $region45
    $region44: #{tpu_custom_call.1} parent=1 // pred_region
      %92 = dma.done [#allocation7], 512
    $region45: #{tpu_custom_call.1} parent=1 // pred_fallthru
      _
    // Predicated region
    $region46: #{tpu_custom_call.1} parent=1 // pred_check
      _
    $region47: #{tpu_custom_call.1} parent=1 // pred_check_branch
      %94 = sbr.rel (0) target = $region49
    $region48: #{tpu_custom_call.1} parent=1 // pred_region
      %95 = dma.done [#allocation7], 512
    $region49: #{tpu_custom_call.1} parent=1 // pred_fallthru
      _
    // Predicated region
    $region50: #{tpu_custom_call.1} parent=1 // pred_check
      _
    $region51: #{tpu_custom_call.1} parent=1 // pred_check_branch
      %97 = sbr.rel (0) target = $region53
    $region52: #{tpu_custom_call.1} parent=1 // pred_region
      %98 = dma.done [#allocation10], 512
    $region53: #{tpu_custom_call.1} parent=1 // pred_fallthru
      _
    // Predicated region
    $region54: #{tpu_custom_call.1} parent=1 // pred_check
      _
    $region55: #{tpu_custom_call.1} parent=1 // pred_check_branch
      %100 = sbr.rel (0) target = $region57
    $region56: #{tpu_custom_call.1} parent=1 // pred_region
      %101 = dma.done [#allocation10], 512
    $region57: #{tpu_custom_call.1} parent=1 // pred_fallthru
      _
    %v102 = vld [vmem:[#allocation6] sm:$0xff]
    %v103 = vld [vmem:[#allocation6 + $0x8] sm:$0xff]
    %v104 = vld [vmem:[#allocation6 + $0x10] sm:$0xff]
    %v105 = vld [vmem:[#allocation6 + $0x18] sm:$0xff]
    %v106 = vld [vmem:[#allocation8] sm:$0xff]
    %v107 = vld [vmem:[#allocation8 + $0x8] sm:$0xff]
    %v108 = vld [vmem:[#allocation8 + $0x10] sm:$0xff]
    %v109 = vld [vmem:[#allocation8 + $0x18] sm:$0xff]
    %v110 = vld [vmem:[#allocation9] sm:$0xff]
    %v111 = vld [vmem:[#allocation9 + $0x8] sm:$0xff]
    %v112 = vld [vmem:[#allocation9 + $0x10] sm:$0xff]
    %v113 = vld [vmem:[#allocation9 + $0x18] sm:$0xff]
    %v114 = vld [vmem:[%s4] sm:$0x1]
    %v115 = vld [vmem:[#allocation4] sm:$0xff]
    %vm116 = vcmask 261120
    %v118 = vsel %vm116, 0.0, 0
    %120 = vmatprep.subr.mxu0 0.0
    %121 = vmatpush1.msra.mxu0 %v102
    %122 = vmatprep.subr.mxu0 0.0
    %123 = vmatpush1.msra.mxu0 %v103
    %124 = vmatprep.subr.mxu0 0.0
    %125 = vmatpush1.msra.mxu0 %v104
    %126 = vmatprep.subr.mxu0 0.0
    %127 = vmatpush1.msra.mxu0 %v105
    %128 = vmatprep.subr.mxu0 0.0
    %129 = vmatpush1.msra.mxu0 0.0
    %130 = vmatprep.subr.mxu0 0.0
    %131 = vmatpush1.msra.mxu0 0.0
    %132 = vmatprep.subr.mxu0 0.0
    %133 = vmatpush1.msra.mxu0 0.0
    %134 = vmatprep.subr.mxu0 0.0
    %135 = vmatpush1.msra.mxu0 0.0
    %136 = vmatprep.subr.mxu0 0.0
    %137 = vmatpush1.msra.mxu0 0.0
    %138 = vmatprep.subr.mxu0 0.0
    %139 = vmatpush1.msra.mxu0 0.0
    %140 = vmatprep.subr.mxu0 0.0
    %141 = vmatpush1.msra.mxu0 0.0
    %142 = vmatprep.subr.mxu0 0.0
    %143 = vmatpush1.msra.mxu0 0.0
    %144 = vmatprep.subr.mxu0 0.0
    %145 = vmatpush1.msra.mxu0 0.0
    %146 = vmatprep.subr.mxu0 0.0
    %147 = vmatpush1.msra.mxu0 0.0
    %148 = vmatprep.subr.mxu0 0.0
    %149 = vmatpush1.msra.mxu0 0.0
    %150 = vmatprep.subr.mxu0 0.0
    %151 = vmatpush1.msra.mxu0 0.0
    %152 = vmatprep.subr.mxu0 0.0
    %153 = vmatpush1.msra.mxu0 0.0
    %154 = vmatprep.subr.mxu0 0.0
    %155 = vmatpush1.msra.mxu0 0.0
    %156 = vmatprep.subr.mxu0 0.0
    %157 = vmatpush1.msra.mxu0 0.0
    %158 = vmatprep.subr.mxu0 0.0
    %159 = vmatpush1.msra.mxu0 0.0
    %160 = vmatprep.subr.mxu0 0.0
    %161 = vmatpush1.msra.mxu0 0.0
    %162 = vmatprep.subr.mxu0 0.0
    %163 = vmatpush1.msra.mxu0 0.0
    %164 = vmatprep.subr.mxu0 0.0
    %165 = vmatpush1.msra.mxu0 0.0
    %166 = vmatprep.subr.mxu0 0.0
    %167 = vmatpush1.msra.mxu0 0.0
    %168 = vmatprep.subr.mxu0 0.0
    %169 = vmatpush1.msra.mxu0 0.0
    %170 = vmatprep.subr.mxu0 0.0
    %171 = vmatpush1.msra.mxu0 0.0
    %172 = vmatprep.subr.mxu0 0.0
    %173 = vmatpush1.msra.mxu0 0.0
    %174 = vmatprep.subr.mxu0 0.0
    %175 = vmatpush1.msra.mxu0 0.0
    %176 = vmatprep.subr.mxu0 0.0
    %177 = vmatpush1.msra.mxu0 0.0
    %178 = vmatprep.subr.mxu0 0.0
    %179 = vmatpush1.msra.mxu0 0.0
    %180 = vmatprep.subr.mxu0 0.0
    %181 = vmatpush1.msra.mxu0 0.0
    %182 = vmatprep.subr.mxu0 0.0
    %183 = vmatpush1.msra.mxu0 0.0
    %184 = vmatprep.mubr.f32.mxu0 0.0
    %185 = vmatmul.mubr.f32.gmra.mrb[0].mxu0 %v118
    %v186 = vpop.f32.mrb[0].mxu0
    %v187 = vadd.f32 0.0, %v186
    %v188 = vpop.f32.mrb[0].mxu0
    %189 = vdwg.mxu0
    %v190 = vadd.f32 %v115, %v187
    %v191 = vxor.u32 %v190, 2147483648
    %v192 = vmul.f32 %v191, 1.442695
    %v193 = vpow.pop %v192
    %v194 = vadd.f32 %v193, 1.0
    %v195 = vrcp.pop %v194
    %v196 = vmul.f32 1.0, %v195
    %v197 = vmul.f32 %v196, 2.0
    %v198 = vsub.f32 %v197, 1.0
    %v199 = vmul.f32 %v196, 0.0
    %201 = vrot.lane.b32.xlu0 %v198, 64
    %v202 = vpop.permute.xlu0 %201
    %v204 = vmul.f32 %v196, %v202
    %206 = vrot.lane.b32.xlu0 %v204, 32
    %v207 = vpop.permute.xlu0 %206
    %v209 = vadd.f32 %v199, %v207
    %v210 = vtanh.pop %v209
    %212 = vrot.lane.b32.xlu0 %v210, 64
    %v213 = vpop.permute.xlu0 %212
    %v215 = vmul.f32 %v196, %v213
    %216 = vmatprep.subr.mxu0 0.0
    %217 = vmatpush1.msra.mxu0 %v110
    %218 = vmatprep.subr.mxu0 0.0
    %219 = vmatpush1.msra.mxu0 %v111
    %220 = vmatprep.subr.mxu0 0.0
    %221 = vmatpush1.msra.mxu0 %v112
    %222 = vmatprep.subr.mxu0 0.0
    %223 = vmatpush1.msra.mxu0 %v113
    %224 = vmatprep.subr.mxu0 0.0
    %225 = vmatpush1.msra.mxu0 0.0
    %226 = vmatprep.subr.mxu0 0.0
    %227 = vmatpush1.msra.mxu0 0.0
    %228 = vmatprep.subr.mxu0 0.0
    %229 = vmatpush1.msra.mxu0 0.0
    %230 = vmatprep.subr.mxu0 0.0
    %231 = vmatpush1.msra.mxu0 0.0
    %232 = vmatprep.subr.mxu0 0.0
    %233 = vmatpush1.msra.mxu0 0.0
    %234 = vmatprep.subr.mxu0 0.0
    %235 = vmatpush1.msra.mxu0 0.0
    %236 = vmatprep.subr.mxu0 0.0
    %237 = vmatpush1.msra.mxu0 0.0
    %238 = vmatprep.subr.mxu0 0.0
    %239 = vmatpush1.msra.mxu0 0.0
    %240 = vmatprep.subr.mxu0 0.0
    %241 = vmatpush1.msra.mxu0 0.0
    %242 = vmatprep.subr.mxu0 0.0
    %243 = vmatpush1.msra.mxu0 0.0
    %244 = vmatprep.subr.mxu0 0.0
    %245 = vmatpush1.msra.mxu0 0.0
    %246 = vmatprep.subr.mxu0 0.0
    %247 = vmatpush1.msra.mxu0 0.0
    %248 = vmatprep.subr.mxu0 0.0
    %249 = vmatpush1.msra.mxu0 0.0
    %250 = vmatprep.subr.mxu0 0.0
    %251 = vmatpush1.msra.mxu0 0.0
    %252 = vmatprep.subr.mxu0 0.0
    %253 = vmatpush1.msra.mxu0 0.0
    %254 = vmatprep.subr.mxu0 0.0
    %255 = vmatpush1.msra.mxu0 0.0
    %256 = vmatprep.subr.mxu0 0.0
    %257 = vmatpush1.msra.mxu0 0.0
    %258 = vmatprep.subr.mxu0 0.0
    %259 = vmatpush1.msra.mxu0 0.0
    %260 = vmatprep.subr.mxu0 0.0
    %261 = vmatpush1.msra.mxu0 0.0
    %262 = vmatprep.subr.mxu0 0.0
    %263 = vmatpush1.msra.mxu0 0.0
    %264 = vmatprep.subr.mxu0 0.0
    %265 = vmatpush1.msra.mxu0 0.0
    %266 = vmatprep.subr.mxu0 0.0
    %267 = vmatpush1.msra.mxu0 0.0
    %268 = vmatprep.subr.mxu0 0.0
    %269 = vmatpush1.msra.mxu0 0.0
    %270 = vmatprep.subr.mxu0 0.0
    %271 = vmatpush1.msra.mxu0 0.0
    %272 = vmatprep.subr.mxu0 0.0
    %273 = vmatpush1.msra.mxu0 0.0
    %274 = vmatprep.subr.mxu0 0.0
    %275 = vmatpush1.msra.mxu0 0.0
    %276 = vmatprep.subr.mxu0 0.0
    %277 = vmatpush1.msra.mxu0 0.0
    %278 = vmatprep.subr.mxu0 0.0
    %279 = vmatpush1.msra.mxu0 0.0
    %280 = vmatprep.mubr.f32.mxu0 0.0
    %281 = vmatmul.mubr.f32.gmra.mrb[0].mxu0 %v118
    %v282 = vpop.f32.mrb[0].mxu0
    %v283 = vadd.f32 0.0, %v282
    %v284 = vpop.f32.mrb[0].mxu0
    %285 = vdwg.mxu0
    %287 = vrot.lane.b32.xlu0 %v215, 32
    %v288 = vpop.permute.xlu0 %287
    %v289 = vsel %vm116, %v288, 0
    %291 = vmatprep.subr.mxu0 0.0
    %292 = vmatpush1.msra.mxu0 %v106
    %293 = vmatprep.subr.mxu0 0.0
    %294 = vmatpush1.msra.mxu0 %v107
    %295 = vmatprep.subr.mxu0 0.0
    %296 = vmatpush1.msra.mxu0 %v108
    %297 = vmatprep.subr.mxu0 0.0
    %298 = vmatpush1.msra.mxu0 %v109
    %299 = vmatprep.subr.mxu0 0.0
    %300 = vmatpush1.msra.mxu0 0.0
    %301 = vmatprep.subr.mxu0 0.0
    %302 = vmatpush1.msra.mxu0 0.0
    %303 = vmatprep.subr.mxu0 0.0
    %304 = vmatpush1.msra.mxu0 0.0
    %305 = vmatprep.subr.mxu0 0.0
    %306 = vmatpush1.msra.mxu0 0.0
    %307 = vmatprep.subr.mxu0 0.0
    %308 = vmatpush1.msra.mxu0 0.0
    %309 = vmatprep.subr.mxu0 0.0
    %310 = vmatpush1.msra.mxu0 0.0
    %311 = vmatprep.subr.mxu0 0.0
    %312 = vmatpush1.msra.mxu0 0.0
    %313 = vmatprep.subr.mxu0 0.0
    %314 = vmatpush1.msra.mxu0 0.0
    %315 = vmatprep.subr.mxu0 0.0
    %316 = vmatpush1.msra.mxu0 0.0
    %317 = vmatprep.subr.mxu0 0.0
    %318 = vmatpush1.msra.mxu0 0.0
    %319 = vmatprep.subr.mxu0 0.0
    %320 = vmatpush1.msra.mxu0 0.0
    %321 = vmatprep.subr.mxu0 0.0
    %322 = vmatpush1.msra.mxu0 0.0
    %323 = vmatprep.subr.mxu0 0.0
    %324 = vmatpush1.msra.mxu0 0.0
    %325 = vmatprep.subr.mxu0 0.0
    %326 = vmatpush1.msra.mxu0 0.0
    %327 = vmatprep.subr.mxu0 0.0
    %328 = vmatpush1.msra.mxu0 0.0
    %329 = vmatprep.subr.mxu0 0.0
    %330 = vmatpush1.msra.mxu0 0.0
    %331 = vmatprep.subr.mxu0 0.0
    %332 = vmatpush1.msra.mxu0 0.0
    %333 = vmatprep.subr.mxu0 0.0
    %334 = vmatpush1.msra.mxu0 0.0
    %335 = vmatprep.subr.mxu0 0.0
    %336 = vmatpush1.msra.mxu0 0.0
    %337 = vmatprep.subr.mxu0 0.0
    %338 = vmatpush1.msra.mxu0 0.0
    %339 = vmatprep.subr.mxu0 0.0
    %340 = vmatpush1.msra.mxu0 0.0
    %341 = vmatprep.subr.mxu0 0.0
    %342 = vmatpush1.msra.mxu0 0.0
    %343 = vmatprep.subr.mxu0 0.0
    %344 = vmatpush1.msra.mxu0 0.0
    %345 = vmatprep.subr.mxu0 0.0
    %346 = vmatpush1.msra.mxu0 0.0
    %347 = vmatprep.subr.mxu0 0.0
    %348 = vmatpush1.msra.mxu0 0.0
    %349 = vmatprep.subr.mxu0 0.0
    %350 = vmatpush1.msra.mxu0 0.0
    %351 = vmatprep.subr.mxu0 0.0
    %352 = vmatpush1.msra.mxu0 0.0
    %353 = vmatprep.subr.mxu0 0.0
    %354 = vmatpush1.msra.mxu0 0.0
    %355 = vmatprep.mubr.f32.mxu0 0.0
    %356 = vmatmul.mubr.f32.gmra.mrb[0].mxu0 %v289
    %v357 = vpop.f32.mrb[0].mxu0
    %v358 = vadd.f32 %v283, %v357
    %v359 = vpop.f32.mrb[0].mxu0
    %360 = vdwg.mxu0
    %v362 = vlaneseq
    %v363 = vshrl.u32 %v362, 7
    %v364 = vsub.s32 0, %v363
    %v365 = vrot.slane %v114, %v364
    %v367 = vadd.f32 %v358, %v365
    %v368 = vxor.u32 %v367, 2147483648
    %v369 = vmul.f32 %v368, 1.442695
    %v370 = vpow.pop %v369
    %v371 = vadd.f32 %v370, 1.0
    %v372 = vrcp.pop %v371
    %v373 = vmul.f32 1.0, %v372
    %v374 = vmul.f32 %v373, 2.0
    %v375 = vsub.f32 %v374, 1.0
    %v376 = vmul.f32 %v373, 0.0
    %378 = vrot.lane.b32.xlu0 %v375, 64
    %v379 = vpop.permute.xlu0 %378
    %v381 = vmul.f32 %v373, %v379
    %383 = vrot.lane.b32.xlu0 %v381, 32
    %v384 = vpop.permute.xlu0 %383
    %v386 = vadd.f32 %v376, %v384
    %v387 = vtanh.pop %v386
    %389 = vrot.lane.b32.xlu0 %v387, 64
    %v390 = vpop.permute.xlu0 %389
    %v392 = vmul.f32 %v373, %v390
    %394 = vrot.lane.b32.xlu0 %v392, 32
    %v395 = vpop.permute.xlu0 %394
    %397 = vst.msk [vmem:[#allocation2] sm:$0xff] %vm116, %v395
    %s398 = scalar_lea.vmem [#allocation4], 8
    %v399 = vld [vmem:[%s398] sm:$0xff]
    %400 = vmatprep.subr.mxu0 0.0
    %401 = vmatpush1.msra.mxu0 %v102
    %402 = vmatprep.subr.mxu0 0.0
    %403 = vmatpush1.msra.mxu0 %v103
    %404 = vmatprep.subr.mxu0 0.0
    %405 = vmatpush1.msra.mxu0 %v104
    %406 = vmatprep.subr.mxu0 0.0
    %407 = vmatpush1.msra.mxu0 %v105
    %408 = vmatprep.subr.mxu0 0.0
    %409 = vmatpush1.msra.mxu0 0.0
    %410 = vmatprep.subr.mxu0 0.0
    %411 = vmatpush1.msra.mxu0 0.0
    %412 = vmatprep.subr.mxu0 0.0
    %413 = vmatpush1.msra.mxu0 0.0
    %414 = vmatprep.subr.mxu0 0.0
    %415 = vmatpush1.msra.mxu0 0.0
    %416 = vmatprep.subr.mxu0 0.0
    %417 = vmatpush1.msra.mxu0 0.0
    %418 = vmatprep.subr.mxu0 0.0
    %419 = vmatpush1.msra.mxu0 0.0
    %420 = vmatprep.subr.mxu0 0.0
    %421 = vmatpush1.msra.mxu0 0.0
    %422 = vmatprep.subr.mxu0 0.0
    %423 = vmatpush1.msra.mxu0 0.0
    %424 = vmatprep.subr.mxu0 0.0
    %425 = vmatpush1.msra.mxu0 0.0
    %426 = vmatprep.subr.mxu0 0.0
    %427 = vmatpush1.msra.mxu0 0.0
    %428 = vmatprep.subr.mxu0 0.0
    %429 = vmatpush1.msra.mxu0 0.0
    %430 = vmatprep.subr.mxu0 0.0
    %431 = vmatpush1.msra.mxu0 0.0
    %432 = vmatprep.subr.mxu0 0.0
    %433 = vmatpush1.msra.mxu0 0.0
    %434 = vmatprep.subr.mxu0 0.0
    %435 = vmatpush1.msra.mxu0 0.0
    %436 = vmatprep.subr.mxu0 0.0
    %437 = vmatpush1.msra.mxu0 0.0
    %438 = vmatprep.subr.mxu0 0.0
    %439 = vmatpush1.msra.mxu0 0.0
    %440 = vmatprep.subr.mxu0 0.0
    %441 = vmatpush1.msra.mxu0 0.0
    %442 = vmatprep.subr.mxu0 0.0
    %443 = vmatpush1.msra.mxu0 0.0
    %444 = vmatprep.subr.mxu0 0.0
    %445 = vmatpush1.msra.mxu0 0.0
    %446 = vmatprep.subr.mxu0 0.0
    %447 = vmatpush1.msra.mxu0 0.0
    %448 = vmatprep.subr.mxu0 0.0
    %449 = vmatpush1.msra.mxu0 0.0
    %450 = vmatprep.subr.mxu0 0.0
    %451 = vmatpush1.msra.mxu0 0.0
    %452 = vmatprep.subr.mxu0 0.0
    %453 = vmatpush1.msra.mxu0 0.0
    %454 = vmatprep.subr.mxu0 0.0
    %455 = vmatpush1.msra.mxu0 0.0
    %456 = vmatprep.subr.mxu0 0.0
    %457 = vmatpush1.msra.mxu0 0.0
    %458 = vmatprep.subr.mxu0 0.0
    %459 = vmatpush1.msra.mxu0 0.0
    %460 = vmatprep.subr.mxu0 0.0
    %461 = vmatpush1.msra.mxu0 0.0
    %462 = vmatprep.subr.mxu0 0.0
    %463 = vmatpush1.msra.mxu0 0.0
    %464 = vmatprep.mubr.f32.mxu0 0.0
    %465 = vmatmul.mubr.f32.gmra.mrb[0].mxu0 %v289
    %v466 = vpop.f32.mrb[0].mxu0
    %v467 = vadd.f32 0.0, %v466
    %v468 = vpop.f32.mrb[0].mxu0
    %469 = vdwg.mxu0
    %v470 = vadd.f32 %v399, %v467
    %v471 = vxor.u32 %v470, 2147483648
    %v472 = vmul.f32 %v471, 1.442695
    %v473 = vpow.pop %v472
    %v474 = vadd.f32 %v473, 1.0
    %v475 = vrcp.pop %v474
    %v476 = vmul.f32 1.0, %v475
    %v477 = vmul.f32 %v476, 2.0
    %v478 = vsub.f32 %v477, 1.0
    %v479 = vmul.f32 %v476, %v209
    %481 = vrot.lane.b32.xlu0 %v478, 64
    %v482 = vpop.permute.xlu0 %481
    %v484 = vmul.f32 %v476, %v482
    %486 = vrot.lane.b32.xlu0 %v484, 32
    %v487 = vpop.permute.xlu0 %486
    %v489 = vadd.f32 %v479, %v487
    %v490 = vtanh.pop %v489
    %492 = vrot.lane.b32.xlu0 %v490, 64
    %v493 = vpop.permute.xlu0 %492
    %v495 = vmul.f32 %v476, %v493
    %v496 = vsel %vm116, %v395, 0
    %498 = vmatprep.subr.mxu0 0.0
    %499 = vmatpush1.msra.mxu0 %v110
    %500 = vmatprep.subr.mxu0 0.0
    %501 = vmatpush1.msra.mxu0 %v111
    %502 = vmatprep.subr.mxu0 0.0
    %503 = vmatpush1.msra.mxu0 %v112
    %504 = vmatprep.subr.mxu0 0.0
    %505 = vmatpush1.msra.mxu0 %v113
    %506 = vmatprep.subr.mxu0 0.0
    %507 = vmatpush1.msra.mxu0 0.0
    %508 = vmatprep.subr.mxu0 0.0
    %509 = vmatpush1.msra.mxu0 0.0
    %510 = vmatprep.subr.mxu0 0.0
    %511 = vmatpush1.msra.mxu0 0.0
    %512 = vmatprep.subr.mxu0 0.0
    %513 = vmatpush1.msra.mxu0 0.0
    %514 = vmatprep.subr.mxu0 0.0
    %515 = vmatpush1.msra.mxu0 0.0
    %516 = vmatprep.subr.mxu0 0.0
    %517 = vmatpush1.msra.mxu0 0.0
    %518 = vmatprep.subr.mxu0 0.0
    %519 = vmatpush1.msra.mxu0 0.0
    %520 = vmatprep.subr.mxu0 0.0
    %521 = vmatpush1.msra.mxu0 0.0
    %522 = vmatprep.subr.mxu0 0.0
    %523 = vmatpush1.msra.mxu0 0.0
    %524 = vmatprep.subr.mxu0 0.0
    %525 = vmatpush1.msra.mxu0 0.0
    %526 = vmatprep.subr.mxu0 0.0
    %527 = vmatpush1.msra.mxu0 0.0
    %528 = vmatprep.subr.mxu0 0.0
    %529 = vmatpush1.msra.mxu0 0.0
    %530 = vmatprep.subr.mxu0 0.0
    %531 = vmatpush1.msra.mxu0 0.0
    %532 = vmatprep.subr.mxu0 0.0
    %533 = vmatpush1.msra.mxu0 0.0
    %534 = vmatprep.subr.mxu0 0.0
    %535 = vmatpush1.msra.mxu0 0.0
    %536 = vmatprep.subr.mxu0 0.0
    %537 = vmatpush1.msra.mxu0 0.0
    %538 = vmatprep.subr.mxu0 0.0
    %539 = vmatpush1.msra.mxu0 0.0
    %540 = vmatprep.subr.mxu0 0.0
    %541 = vmatpush1.msra.mxu0 0.0
    %542 = vmatprep.subr.mxu0 0.0
    %543 = vmatpush1.msra.mxu0 0.0
    %544 = vmatprep.subr.mxu0 0.0
    %545 = vmatpush1.msra.mxu0 0.0
    %546 = vmatprep.subr.mxu0 0.0
    %547 = vmatpush1.msra.mxu0 0.0
    %548 = vmatprep.subr.mxu0 0.0
    %549 = vmatpush1.msra.mxu0 0.0
    %550 = vmatprep.subr.mxu0 0.0
    %551 = vmatpush1.msra.mxu0 0.0
    %552 = vmatprep.subr.mxu0 0.0
    %553 = vmatpush1.msra.mxu0 0.0
    %554 = vmatprep.subr.mxu0 0.0
    %555 = vmatpush1.msra.mxu0 0.0
    %556 = vmatprep.subr.mxu0 0.0
    %557 = vmatpush1.msra.mxu0 0.0
    %558 = vmatprep.subr.mxu0 0.0
    %559 = vmatpush1.msra.mxu0 0.0
    %560 = vmatprep.subr.mxu0 0.0
    %561 = vmatpush1.msra.mxu0 0.0
    %562 = vmatprep.mubr.f32.mxu0 0.0
    %563 = vmatmul.mubr.f32.gmra.mrb[0].mxu0 %v496
    %v564 = vpop.f32.mrb[0].mxu0
    %v565 = vadd.f32 0.0, %v564
    %v566 = vpop.f32.mrb[0].mxu0
    %567 = vdwg.mxu0
    %569 = vrot.lane.b32.xlu0 %v495, 32
    %v570 = vpop.permute.xlu0 %569
    %v571 = vsel %vm116, %v570, 0
    %573 = vmatprep.subr.mxu0 0.0
    %574 = vmatpush1.msra.mxu0 %v106
    %575 = vmatprep.subr.mxu0 0.0
    %576 = vmatpush1.msra.mxu0 %v107
    %577 = vmatprep.subr.mxu0 0.0
    %578 = vmatpush1.msra.mxu0 %v108
    %579 = vmatprep.subr.mxu0 0.0
    %580 = vmatpush1.msra.mxu0 %v109
    %581 = vmatprep.subr.mxu0 0.0
    %582 = vmatpush1.msra.mxu0 0.0
    %583 = vmatprep.subr.mxu0 0.0
    %584 = vmatpush1.msra.mxu0 0.0
    %585 = vmatprep.subr.mxu0 0.0
    %586 = vmatpush1.msra.mxu0 0.0
    %587 = vmatprep.subr.mxu0 0.0
    %588 = vmatpush1.msra.mxu0 0.0
    %589 = vmatprep.subr.mxu0 0.0
    %590 = vmatpush1.msra.mxu0 0.0
    %591 = vmatprep.subr.mxu0 0.0
    %592 = vmatpush1.msra.mxu0 0.0
    %593 = vmatprep.subr.mxu0 0.0
    %594 = vmatpush1.msra.mxu0 0.0
    %595 = vmatprep.subr.mxu0 0.0
    %596 = vmatpush1.msra.mxu0 0.0
    %597 = vmatprep.subr.mxu0 0.0
    %598 = vmatpush1.msra.mxu0 0.0
    %599 = vmatprep.subr.mxu0 0.0
    %600 = vmatpush1.msra.mxu0 0.0
    %601 = vmatprep.subr.mxu0 0.0
    %602 = vmatpush1.msra.mxu0 0.0
    %603 = vmatprep.subr.mxu0 0.0
    %604 = vmatpush1.msra.mxu0 0.0
    %605 = vmatprep.subr.mxu0 0.0
    %606 = vmatpush1.msra.mxu0 0.0
    %607 = vmatprep.subr.mxu0 0.0
    %608 = vmatpush1.msra.mxu0 0.0
    %609 = vmatprep.subr.mxu0 0.0
    %610 = vmatpush1.msra.mxu0 0.0
    %611 = vmatprep.subr.mxu0 0.0
    %612 = vmatpush1.msra.mxu0 0.0
    %613 = vmatprep.subr.mxu0 0.0
    %614 = vmatpush1.msra.mxu0 0.0
    %615 = vmatprep.subr.mxu0 0.0
    %616 = vmatpush1.msra.mxu0 0.0
    %617 = vmatprep.subr.mxu0 0.0
    %618 = vmatpush1.msra.mxu0 0.0
    %619 = vmatprep.subr.mxu0 0.0
    %620 = vmatpush1.msra.mxu0 0.0
    %621 = vmatprep.subr.mxu0 0.0
    %622 = vmatpush1.msra.mxu0 0.0
    %623 = vmatprep.subr.mxu0 0.0
    %624 = vmatpush1.msra.mxu0 0.0
    %625 = vmatprep.subr.mxu0 0.0
    %626 = vmatpush1.msra.mxu0 0.0
    %627 = vmatprep.subr.mxu0 0.0
    %628 = vmatpush1.msra.mxu0 0.0
    %629 = vmatprep.subr.mxu0 0.0
    %630 = vmatpush1.msra.mxu0 0.0
    %631 = vmatprep.subr.mxu0 0.0
    %632 = vmatpush1.msra.mxu0 0.0
    %633 = vmatprep.subr.mxu0 0.0
    %634 = vmatpush1.msra.mxu0 0.0
    %635 = vmatprep.subr.mxu0 0.0
    %636 = vmatpush1.msra.mxu0 0.0
    %637 = vmatprep.mubr.f32.mxu0 0.0
    %638 = vmatmul.mubr.f32.gmra.mrb[0].mxu0 %v571
    %v639 = vpop.f32.mrb[0].mxu0
    %v640 = vadd.f32 %v565, %v639
    %v641 = vpop.f32.mrb[0].mxu0
    %642 = vdwg.mxu0
    %v643 = vadd.f32 %v640, %v365
    %v644 = vxor.u32 %v643, 2147483648
    %v645 = vmul.f32 %v644, 1.442695
    %v646 = vpow.pop %v645
    %v647 = vadd.f32 %v646, 1.0
    %v648 = vrcp.pop %v647
    %v649 = vmul.f32 1.0, %v648
    %v650 = vmul.f32 %v649, 2.0
    %v651 = vsub.f32 %v650, 1.0
    %v652 = vmul.f32 %v649, %v386
    %654 = vrot.lane.b32.xlu0 %v651, 64
    %v655 = vpop.permute.xlu0 %654
    %v657 = vmul.f32 %v649, %v655
    %659 = vrot.lane.b32.xlu0 %v657, 32
    %v660 = vpop.permute.xlu0 %659
    %v662 = vadd.f32 %v652, %v660
    %v663 = vtanh.pop %v662
    %665 = vrot.lane.b32.xlu0 %v663, 64
    %v666 = vpop.permute.xlu0 %665
    %v668 = vmul.f32 %v649, %v666
    %670 = vrot.lane.b32.xlu0 %v668, 32
    %v671 = vpop.permute.xlu0 %670
    %s673 = scalar_lea.vmem [#allocation2], 8
    %674 = vst.msk [vmem:[%s673] sm:$0xff] %vm116, %v671
    %s675 = scalar_lea.vmem [#allocation4], 16
    %v676 = vld [vmem:[%s675] sm:$0xff]
    %677 = vmatprep.subr.mxu0 0.0
    %678 = vmatpush1.msra.mxu0 %v102
    %679 = vmatprep.subr.mxu0 0.0
    %680 = vmatpush1.msra.mxu0 %v103
    %681 = vmatprep.subr.mxu0 0.0
    %682 = vmatpush1.msra.mxu0 %v104
    %683 = vmatprep.subr.mxu0 0.0
    %684 = vmatpush1.msra.mxu0 %v105
    %685 = vmatprep.subr.mxu0 0.0
    %686 = vmatpush1.msra.mxu0 0.0
    %687 = vmatprep.subr.mxu0 0.0
    %688 = vmatpush1.msra.mxu0 0.0
    %689 = vmatprep.subr.mxu0 0.0
    %690 = vmatpush1.msra.mxu0 0.0
    %691 = vmatprep.subr.mxu0 0.0
    %692 = vmatpush1.msra.mxu0 0.0
    %693 = vmatprep.subr.mxu0 0.0
    %694 = vmatpush1.msra.mxu0 0.0
    %695 = vmatprep.subr.mxu0 0.0
    %696 = vmatpush1.msra.mxu0 0.0
    %697 = vmatprep.subr.mxu0 0.0
    %698 = vmatpush1.msra.mxu0 0.0
    %699 = vmatprep.subr.mxu0 0.0
    %700 = vmatpush1.msra.mxu0 0.0
    %701 = vmatprep.subr.mxu0 0.0
    %702 = vmatpush1.msra.mxu0 0.0
    %703 = vmatprep.subr.mxu0 0.0
    %704 = vmatpush1.msra.mxu0 0.0
    %705 = vmatprep.subr.mxu0 0.0
    %706 = vmatpush1.msra.mxu0 0.0
    %707 = vmatprep.subr.mxu0 0.0
    %708 = vmatpush1.msra.mxu0 0.0
    %709 = vmatprep.subr.mxu0 0.0
    %710 = vmatpush1.msra.mxu0 0.0
    %711 = vmatprep.subr.mxu0 0.0
    %712 = vmatpush1.msra.mxu0 0.0
    %713 = vmatprep.subr.mxu0 0.0
    %714 = vmatpush1.msra.mxu0 0.0
    %715 = vmatprep.subr.mxu0 0.0
    %716 = vmatpush1.msra.mxu0 0.0
    %717 = vmatprep.subr.mxu0 0.0
    %718 = vmatpush1.msra.mxu0 0.0
    %719 = vmatprep.subr.mxu0 0.0
    %720 = vmatpush1.msra.mxu0 0.0
    %721 = vmatprep.subr.mxu0 0.0
    %722 = vmatpush1.msra.mxu0 0.0
    %723 = vmatprep.subr.mxu0 0.0
    %724 = vmatpush1.msra.mxu0 0.0
    %725 = vmatprep.subr.mxu0 0.0
    %726 = vmatpush1.msra.mxu0 0.0
    %727 = vmatprep.subr.mxu0 0.0
    %728 = vmatpush1.msra.mxu0 0.0
    %729 = vmatprep.subr.mxu0 0.0
    %730 = vmatpush1.msra.mxu0 0.0
    %731 = vmatprep.subr.mxu0 0.0
    %732 = vmatpush1.msra.mxu0 0.0
    %733 = vmatprep.subr.mxu0 0.0
    %734 = vmatpush1.msra.mxu0 0.0
    %735 = vmatprep.subr.mxu0 0.0
    %736 = vmatpush1.msra.mxu0 0.0
    %737 = vmatprep.subr.mxu0 0.0
    %738 = vmatpush1.msra.mxu0 0.0
    %739 = vmatprep.subr.mxu0 0.0
    %740 = vmatpush1.msra.mxu0 0.0
    %741 = vmatprep.mubr.f32.mxu0 0.0
    %742 = vmatmul.mubr.f32.gmra.mrb[0].mxu0 %v571
    %v743 = vpop.f32.mrb[0].mxu0
    %v744 = vadd.f32 0.0, %v743
    %v745 = vpop.f32.mrb[0].mxu0
    %746 = vdwg.mxu0
    %v747 = vadd.f32 %v676, %v744
    %v748 = vxor.u32 %v747, 2147483648
    %v749 = vmul.f32 %v748, 1.442695
    %v750 = vpow.pop %v749
    %v751 = vadd.f32 %v750, 1.0
    %v752 = vrcp.pop %v751
    %v753 = vmul.f32 1.0, %v752
    %v754 = vmul.f32 %v753, 2.0
    %v755 = vsub.f32 %v754, 1.0
    %v756 = vmul.f32 %v753, %v489
    %758 = vrot.lane.b32.xlu0 %v755, 64
    %v759 = vpop.permute.xlu0 %758
    %v761 = vmul.f32 %v753, %v759
    %763 = vrot.lane.b32.xlu0 %v761, 32
    %v764 = vpop.permute.xlu0 %763
    %v766 = vadd.f32 %v756, %v764
    %v767 = vtanh.pop %v766
    %769 = vrot.lane.b32.xlu0 %v767, 64
    %v770 = vpop.permute.xlu0 %769
    %v772 = vmul.f32 %v753, %v770
    %v773 = vsel %vm116, %v671, 0
    %775 = vmatprep.subr.mxu0 0.0
    %776 = vmatpush1.msra.mxu0 %v110
    %777 = vmatprep.subr.mxu0 0.0
    %778 = vmatpush1.msra.mxu0 %v111
    %779 = vmatprep.subr.mxu0 0.0
    %780 = vmatpush1.msra.mxu0 %v112
    %781 = vmatprep.subr.mxu0 0.0
    %782 = vmatpush1.msra.mxu0 %v113
    %783 = vmatprep.subr.mxu0 0.0
    %784 = vmatpush1.msra.mxu0 0.0
    %785 = vmatprep.subr.mxu0 0.0
    %786 = vmatpush1.msra.mxu0 0.0
    %787 = vmatprep.subr.mxu0 0.0
    %788 = vmatpush1.msra.mxu0 0.0
    %789 = vmatprep.subr.mxu0 0.0
    %790 = vmatpush1.msra.mxu0 0.0
    %791 = vmatprep.subr.mxu0 0.0
    %792 = vmatpush1.msra.mxu0 0.0
    %793 = vmatprep.subr.mxu0 0.0
    %794 = vmatpush1.msra.mxu0 0.0
    %795 = vmatprep.subr.mxu0 0.0
    %796 = vmatpush1.msra.mxu0 0.0
    %797 = vmatprep.subr.mxu0 0.0
    %798 = vmatpush1.msra.mxu0 0.0
    %799 = vmatprep.subr.mxu0 0.0
    %800 = vmatpush1.msra.mxu0 0.0
    %801 = vmatprep.subr.mxu0 0.0
    %802 = vmatpush1.msra.mxu0 0.0
    %803 = vmatprep.subr.mxu0 0.0
    %804 = vmatpush1.msra.mxu0 0.0
    %805 = vmatprep.subr.mxu0 0.0
    %806 = vmatpush1.msra.mxu0 0.0
    %807 = vmatprep.subr.mxu0 0.0
    %808 = vmatpush1.msra.mxu0 0.0
    %809 = vmatprep.subr.mxu0 0.0
    %810 = vmatpush1.msra.mxu0 0.0
    %811 = vmatprep.subr.mxu0 0.0
    %812 = vmatpush1.msra.mxu0 0.0
    %813 = vmatprep.subr.mxu0 0.0
    %814 = vmatpush1.msra.mxu0 0.0
    %815 = vmatprep.subr.mxu0 0.0
    %816 = vmatpush1.msra.mxu0 0.0
    %817 = vmatprep.subr.mxu0 0.0
    %818 = vmatpush1.msra.mxu0 0.0
    %819 = vmatprep.subr.mxu0 0.0
    %820 = vmatpush1.msra.mxu0 0.0
    %821 = vmatprep.subr.mxu0 0.0
    %822 = vmatpush1.msra.mxu0 0.0
    %823 = vmatprep.subr.mxu0 0.0
    %824 = vmatpush1.msra.mxu0 0.0
    %825 = vmatprep.subr.mxu0 0.0
    %826 = vmatpush1.msra.mxu0 0.0
    %827 = vmatprep.subr.mxu0 0.0
    %828 = vmatpush1.msra.mxu0 0.0
    %829 = vmatprep.subr.mxu0 0.0
    %830 = vmatpush1.msra.mxu0 0.0
    %831 = vmatprep.subr.mxu0 0.0
    %832 = vmatpush1.msra.mxu0 0.0
    %833 = vmatprep.subr.mxu0 0.0
    %834 = vmatpush1.msra.mxu0 0.0
    %835 = vmatprep.subr.mxu0 0.0
    %836 = vmatpush1.msra.mxu0 0.0
    %837 = vmatprep.subr.mxu0 0.0
    %838 = vmatpush1.msra.mxu0 0.0
    %839 = vmatprep.mubr.f32.mxu0 0.0
    %840 = vmatmul.mubr.f32.gmra.mrb[0].mxu0 %v773
    %v841 = vpop.f32.mrb[0].mxu0
    %v842 = vadd.f32 0.0, %v841
    %v843 = vpop.f32.mrb[0].mxu0
    %844 = vdwg.mxu0
    %846 = vrot.lane.b32.xlu0 %v772, 32
    %v847 = vpop.permute.xlu0 %846
    %v848 = vsel %vm116, %v847, 0
    %850 = vmatprep.subr.mxu0 0.0
    %851 = vmatpush1.msra.mxu0 %v106
    %852 = vmatprep.subr.mxu0 0.0
    %853 = vmatpush1.msra.mxu0 %v107
    %854 = vmatprep.subr.mxu0 0.0
    %855 = vmatpush1.msra.mxu0 %v108
    %856 = vmatprep.subr.mxu0 0.0
    %857 = vmatpush1.msra.mxu0 %v109
    %858 = vmatprep.subr.mxu0 0.0
    %859 = vmatpush1.msra.mxu0 0.0
    %860 = vmatprep.subr.mxu0 0.0
    %861 = vmatpush1.msra.mxu0 0.0
    %862 = vmatprep.subr.mxu0 0.0
    %863 = vmatpush1.msra.mxu0 0.0
    %864 = vmatprep.subr.mxu0 0.0
    %865 = vmatpush1.msra.mxu0 0.0
    %866 = vmatprep.subr.mxu0 0.0
    %867 = vmatpush1.msra.mxu0 0.0
    %868 = vmatprep.subr.mxu0 0.0
    %869 = vmatpush1.msra.mxu0 0.0
    %870 = vmatprep.subr.mxu0 0.0
    %871 = vmatpush1.msra.mxu0 0.0
    %872 = vmatprep.subr.mxu0 0.0
    %873 = vmatpush1.msra.mxu0 0.0
    %874 = vmatprep.subr.mxu0 0.0
    %875 = vmatpush1.msra.mxu0 0.0
    %876 = vmatprep.subr.mxu0 0.0
    %877 = vmatpush1.msra.mxu0 0.0
    %878 = vmatprep.subr.mxu0 0.0
    %879 = vmatpush1.msra.mxu0 0.0
    %880 = vmatprep.subr.mxu0 0.0
    %881 = vmatpush1.msra.mxu0 0.0
    %882 = vmatprep.subr.mxu0 0.0
    %883 = vmatpush1.msra.mxu0 0.0
    %884 = vmatprep.subr.mxu0 0.0
    %885 = vmatpush1.msra.mxu0 0.0
    %886 = vmatprep.subr.mxu0 0.0
    %887 = vmatpush1.msra.mxu0 0.0
    %888 = vmatprep.subr.mxu0 0.0
    %889 = vmatpush1.msra.mxu0 0.0
    %890 = vmatprep.subr.mxu0 0.0
    %891 = vmatpush1.msra.mxu0 0.0
    %892 = vmatprep.subr.mxu0 0.0
    %893 = vmatpush1.msra.mxu0 0.0
    %894 = vmatprep.subr.mxu0 0.0
    %895 = vmatpush1.msra.mxu0 0.0
    %896 = vmatprep.subr.mxu0 0.0
    %897 = vmatpush1.msra.mxu0 0.0
    %898 = vmatprep.subr.mxu0 0.0
    %899 = vmatpush1.msra.mxu0 0.0
    %900 = vmatprep.subr.mxu0 0.0
    %901 = vmatpush1.msra.mxu0 0.0
    %902 = vmatprep.subr.mxu0 0.0
    %903 = vmatpush1.msra.mxu0 0.0
    %904 = vmatprep.subr.mxu0 0.0
    %905 = vmatpush1.msra.mxu0 0.0
    %906 = vmatprep.subr.mxu0 0.0
    %907 = vmatpush1.msra.mxu0 0.0
    %908 = vmatprep.subr.mxu0 0.0
    %909 = vmatpush1.msra.mxu0 0.0
    %910 = vmatprep.subr.mxu0 0.0
    %911 = vmatpush1.msra.mxu0 0.0
    %912 = vmatprep.subr.mxu0 0.0
    %913 = vmatpush1.msra.mxu0 0.0
    %914 = vmatprep.mubr.f32.mxu0 0.0
    %915 = vmatmul.mubr.f32.gmra.mrb[0].mxu0 %v848
    %v916 = vpop.f32.mrb[0].mxu0
    %v917 = vadd.f32 %v842, %v916
    %v918 = vpop.f32.mrb[0].mxu0
    %919 = vdwg.mxu0
    %v920 = vadd.f32 %v917, %v365
    %v921 = vxor.u32 %v920, 2147483648
    %v922 = vmul.f32 %v921, 1.442695
    %v923 = vpow.pop %v922
    %v924 = vadd.f32 %v923, 1.0
    %v925 = vrcp.pop %v924
    %v926 = vmul.f32 1.0, %v925
    %v927 = vmul.f32 %v926, 2.0
    %v928 = vsub.f32 %v927, 1.0
    %v929 = vmul.f32 %v926, %v662
    %931 = vrot.lane.b32.xlu0 %v928, 64
    %v932 = vpop.permute.xlu0 %931
    %v934 = vmul.f32 %v926, %v932
    %936 = vrot.lane.b32.xlu0 %v934, 32
    %v937 = vpop.permute.xlu0 %936
    %v939 = vadd.f32 %v929, %v937
    %v940 = vtanh.pop %v939
    %942 = vrot.lane.b32.xlu0 %v940, 64
    %v943 = vpop.permute.xlu0 %942
    %v945 = vmul.f32 %v926, %v943
    %947 = vrot.lane.b32.xlu0 %v945, 32
    %v948 = vpop.permute.xlu0 %947
    %s950 = scalar_lea.vmem [#allocation2], 16
    %951 = vst.msk [vmem:[%s950] sm:$0xff] %vm116, %v948
    %s952 = scalar_lea.vmem [#allocation4], 24
    %v953 = vld [vmem:[%s952] sm:$0xff]
    %954 = vmatprep.subr.mxu0 0.0
    %955 = vmatpush1.msra.mxu0 %v102
    %956 = vmatprep.subr.mxu0 0.0
    %957 = vmatpush1.msra.mxu0 %v103
    %958 = vmatprep.subr.mxu0 0.0
    %959 = vmatpush1.msra.mxu0 %v104
    %960 = vmatprep.subr.mxu0 0.0
    %961 = vmatpush1.msra.mxu0 %v105
    %962 = vmatprep.subr.mxu0 0.0
    %963 = vmatpush1.msra.mxu0 0.0
    %964 = vmatprep.subr.mxu0 0.0
    %965 = vmatpush1.msra.mxu0 0.0
    %966 = vmatprep.subr.mxu0 0.0
    %967 = vmatpush1.msra.mxu0 0.0
    %968 = vmatprep.subr.mxu0 0.0
    %969 = vmatpush1.msra.mxu0 0.0
    %970 = vmatprep.subr.mxu0 0.0
    %971 = vmatpush1.msra.mxu0 0.0
    %972 = vmatprep.subr.mxu0 0.0
    %973 = vmatpush1.msra.mxu0 0.0
    %974 = vmatprep.subr.mxu0 0.0
    %975 = vmatpush1.msra.mxu0 0.0
    %976 = vmatprep.subr.mxu0 0.0
    %977 = vmatpush1.msra.mxu0 0.0
    %978 = vmatprep.subr.mxu0 0.0
    %979 = vmatpush1.msra.mxu0 0.0
    %980 = vmatprep.subr.mxu0 0.0
    %981 = vmatpush1.msra.mxu0 0.0
    %982 = vmatprep.subr.mxu0 0.0
    %983 = vmatpush1.msra.mxu0 0.0
    %984 = vmatprep.subr.mxu0 0.0
    %985 = vmatpush1.msra.mxu0 0.0
    %986 = vmatprep.subr.mxu0 0.0
    %987 = vmatpush1.msra.mxu0 0.0
    %988 = vmatprep.subr.mxu0 0.0
    %989 = vmatpush1.msra.mxu0 0.0
    %990 = vmatprep.subr.mxu0 0.0
    %991 = vmatpush1.msra.mxu0 0.0
    %992 = vmatprep.subr.mxu0 0.0
    %993 = vmatpush1.msra.mxu0 0.0
    %994 = vmatprep.subr.mxu0 0.0
    %995 = vmatpush1.msra.mxu0 0.0
    %996 = vmatprep.subr.mxu0 0.0
    %997 = vmatpush1.msra.mxu0 0.0
    %998 = vmatprep.subr.mxu0 0.0
    %999 = vmatpush1.msra.mxu0 0.0
    %1000 = vmatprep.subr.mxu0 0.0
    %1001 = vmatpush1.msra.mxu0 0.0
    %1002 = vmatprep.subr.mxu0 0.0
    %1003 = vmatpush1.msra.mxu0 0.0
    %1004 = vmatprep.subr.mxu0 0.0
    %1005 = vmatpush1.msra.mxu0 0.0
    %1006 = vmatprep.subr.mxu0 0.0
    %1007 = vmatpush1.msra.mxu0 0.0
    %1008 = vmatprep.subr.mxu0 0.0
    %1009 = vmatpush1.msra.mxu0 0.0
    %1010 = vmatprep.subr.mxu0 0.0
    %1011 = vmatpush1.msra.mxu0 0.0
    %1012 = vmatprep.subr.mxu0 0.0
    %1013 = vmatpush1.msra.mxu0 0.0
    %1014 = vmatprep.subr.mxu0 0.0
    %1015 = vmatpush1.msra.mxu0 0.0
    %1016 = vmatprep.subr.mxu0 0.0
    %1017 = vmatpush1.msra.mxu0 0.0
    %1018 = vmatprep.mubr.f32.mxu0 0.0
    %1019 = vmatmul.mubr.f32.gmra.mrb[0].mxu0 %v848
    %v1020 = vpop.f32.mrb[0].mxu0
    %v1021 = vadd.f32 0.0, %v1020
    %v1022 = vpop.f32.mrb[0].mxu0
    %1023 = vdwg.mxu0
    %v1024 = vadd.f32 %v953, %v1021
    %v1025 = vxor.u32 %v1024, 2147483648
    %v1026 = vmul.f32 %v1025, 1.442695
    %v1027 = vpow.pop %v1026
    %v1028 = vadd.f32 %v1027, 1.0
    %v1029 = vrcp.pop %v1028
    %v1030 = vmul.f32 1.0, %v1029
    %v1031 = vmul.f32 %v1030, 2.0
    %v1032 = vsub.f32 %v1031, 1.0
    %v1033 = vmul.f32 %v1030, %v766
    %1035 = vrot.lane.b32.xlu0 %v1032, 64
    %v1036 = vpop.permute.xlu0 %1035
    %v1038 = vmul.f32 %v1030, %v1036
    %1040 = vrot.lane.b32.xlu0 %v1038, 32
    %v1041 = vpop.permute.xlu0 %1040
    %v1043 = vadd.f32 %v1033, %v1041
    %v1044 = vtanh.pop %v1043
    %1046 = vrot.lane.b32.xlu0 %v1044, 64
    %v1047 = vpop.permute.xlu0 %1046
    %v1049 = vmul.f32 %v1030, %v1047
    %v1050 = vsel %vm116, %v948, 0
    %1052 = vmatprep.subr.mxu0 0.0
    %1053 = vmatpush1.msra.mxu0 %v110
    %1054 = vmatprep.subr.mxu0 0.0
    %1055 = vmatpush1.msra.mxu0 %v111
    %1056 = vmatprep.subr.mxu0 0.0
    %1057 = vmatpush1.msra.mxu0 %v112
    %1058 = vmatprep.subr.mxu0 0.0
    %1059 = vmatpush1.msra.mxu0 %v113
    %1060 = vmatprep.subr.mxu0 0.0
    %1061 = vmatpush1.msra.mxu0 0.0
    %1062 = vmatprep.subr.mxu0 0.0
    %1063 = vmatpush1.msra.mxu0 0.0
    %1064 = vmatprep.subr.mxu0 0.0
    %1065 = vmatpush1.msra.mxu0 0.0
    %1066 = vmatprep.subr.mxu0 0.0
    %1067 = vmatpush1.msra.mxu0 0.0
    %1068 = vmatprep.subr.mxu0 0.0
    %1069 = vmatpush1.msra.mxu0 0.0
    %1070 = vmatprep.subr.mxu0 0.0
    %1071 = vmatpush1.msra.mxu0 0.0
    %1072 = vmatprep.subr.mxu0 0.0
    %1073 = vmatpush1.msra.mxu0 0.0
    %1074 = vmatprep.subr.mxu0 0.0
    %1075 = vmatpush1.msra.mxu0 0.0
    %1076 = vmatprep.subr.mxu0 0.0
    %1077 = vmatpush1.msra.mxu0 0.0
    %1078 = vmatprep.subr.mxu0 0.0
    %1079 = vmatpush1.msra.mxu0 0.0
    %1080 = vmatprep.subr.mxu0 0.0
    %1081 = vmatpush1.msra.mxu0 0.0
    %1082 = vmatprep.subr.mxu0 0.0
    %1083 = vmatpush1.msra.mxu0 0.0
    %1084 = vmatprep.subr.mxu0 0.0
    %1085 = vmatpush1.msra.mxu0 0.0
    %1086 = vmatprep.subr.mxu0 0.0
    %1087 = vmatpush1.msra.mxu0 0.0
    %1088 = vmatprep.subr.mxu0 0.0
    %1089 = vmatpush1.msra.mxu0 0.0
    %1090 = vmatprep.subr.mxu0 0.0
    %1091 = vmatpush1.msra.mxu0 0.0
    %1092 = vmatprep.subr.mxu0 0.0
    %1093 = vmatpush1.msra.mxu0 0.0
    %1094 = vmatprep.subr.mxu0 0.0
    %1095 = vmatpush1.msra.mxu0 0.0
    %1096 = vmatprep.subr.mxu0 0.0
    %1097 = vmatpush1.msra.mxu0 0.0
    %1098 = vmatprep.subr.mxu0 0.0
    %1099 = vmatpush1.msra.mxu0 0.0
    %1100 = vmatprep.subr.mxu0 0.0
    %1101 = vmatpush1.msra.mxu0 0.0
    %1102 = vmatprep.subr.mxu0 0.0
    %1103 = vmatpush1.msra.mxu0 0.0
    %1104 = vmatprep.subr.mxu0 0.0
    %1105 = vmatpush1.msra.mxu0 0.0
    %1106 = vmatprep.subr.mxu0 0.0
    %1107 = vmatpush1.msra.mxu0 0.0
    %1108 = vmatprep.subr.mxu0 0.0
    %1109 = vmatpush1.msra.mxu0 0.0
    %1110 = vmatprep.subr.mxu0 0.0
    %1111 = vmatpush1.msra.mxu0 0.0
    %1112 = vmatprep.subr.mxu0 0.0
    %1113 = vmatpush1.msra.mxu0 0.0
    %1114 = vmatprep.subr.mxu0 0.0
    %1115 = vmatpush1.msra.mxu0 0.0
    %1116 = vmatprep.mubr.f32.mxu0 0.0
    %1117 = vmatmul.mubr.f32.gmra.mrb[0].mxu0 %v1050
    %v1118 = vpop.f32.mrb[0].mxu0
    %v1119 = vadd.f32 0.0, %v1118
    %v1120 = vpop.f32.mrb[0].mxu0
    %1121 = vdwg.mxu0
    %1123 = vrot.lane.b32.xlu0 %v1049, 32
    %v1124 = vpop.permute.xlu0 %1123
    %v1125 = vsel %vm116, %v1124, 0
    %1127 = vmatprep.subr.mxu0 0.0
    %1128 = vmatpush1.msra.mxu0 %v106
    %1129 = vmatprep.subr.mxu0 0.0
    %1130 = vmatpush1.msra.mxu0 %v107
    %1131 = vmatprep.subr.mxu0 0.0
    %1132 = vmatpush1.msra.mxu0 %v108
    %1133 = vmatprep.subr.mxu0 0.0
    %1134 = vmatpush1.msra.mxu0 %v109
    %1135 = vmatprep.subr.mxu0 0.0
    %1136 = vmatpush1.msra.mxu0 0.0
    %1137 = vmatprep.subr.mxu0 0.0
    %1138 = vmatpush1.msra.mxu0 0.0
    %1139 = vmatprep.subr.mxu0 0.0
    %1140 = vmatpush1.msra.mxu0 0.0
    %1141 = vmatprep.subr.mxu0 0.0
    %1142 = vmatpush1.msra.mxu0 0.0
    %1143 = vmatprep.subr.mxu0 0.0
    %1144 = vmatpush1.msra.mxu0 0.0
    %1145 = vmatprep.subr.mxu0 0.0
    %1146 = vmatpush1.msra.mxu0 0.0
    %1147 = vmatprep.subr.mxu0 0.0
    %1148 = vmatpush1.msra.mxu0 0.0
    %1149 = vmatprep.subr.mxu0 0.0
    %1150 = vmatpush1.msra.mxu0 0.0
    %1151 = vmatprep.subr.mxu0 0.0
    %1152 = vmatpush1.msra.mxu0 0.0
    %1153 = vmatprep.subr.mxu0 0.0
    %1154 = vmatpush1.msra.mxu0 0.0
    %1155 = vmatprep.subr.mxu0 0.0
    %1156 = vmatpush1.msra.mxu0 0.0
    %1157 = vmatprep.subr.mxu0 0.0
    %1158 = vmatpush1.msra.mxu0 0.0
    %1159 = vmatprep.subr.mxu0 0.0
    %1160 = vmatpush1.msra.mxu0 0.0
    %1161 = vmatprep.subr.mxu0 0.0
    %1162 = vmatpush1.msra.mxu0 0.0
    %1163 = vmatprep.subr.mxu0 0.0
    %1164 = vmatpush1.msra.mxu0 0.0
    %1165 = vmatprep.subr.mxu0 0.0
    %1166 = vmatpush1.msra.mxu0 0.0
    %1167 = vmatprep.subr.mxu0 0.0
    %1168 = vmatpush1.msra.mxu0 0.0
    %1169 = vmatprep.subr.mxu0 0.0
    %1170 = vmatpush1.msra.mxu0 0.0
    %1171 = vmatprep.subr.mxu0 0.0
    %1172 = vmatpush1.msra.mxu0 0.0
    %1173 = vmatprep.subr.mxu0 0.0
    %1174 = vmatpush1.msra.mxu0 0.0
    %1175 = vmatprep.subr.mxu0 0.0
    %1176 = vmatpush1.msra.mxu0 0.0
    %1177 = vmatprep.subr.mxu0 0.0
    %1178 = vmatpush1.msra.mxu0 0.0
    %1179 = vmatprep.subr.mxu0 0.0
    %1180 = vmatpush1.msra.mxu0 0.0
    %1181 = vmatprep.subr.mxu0 0.0
    %1182 = vmatpush1.msra.mxu0 0.0
    %1183 = vmatprep.subr.mxu0 0.0
    %1184 = vmatpush1.msra.mxu0 0.0
    %1185 = vmatprep.subr.mxu0 0.0
    %1186 = vmatpush1.msra.mxu0 0.0
    %1187 = vmatprep.subr.mxu0 0.0
    %1188 = vmatpush1.msra.mxu0 0.0
    %1189 = vmatprep.subr.mxu0 0.0
    %1190 = vmatpush1.msra.mxu0 0.0
    %1191 = vmatprep.mubr.f32.mxu0 0.0
    %1192 = vmatmul.mubr.f32.gmra.mrb[0].mxu0 %v1125
    %v1193 = vpop.f32.mrb[0].mxu0
    %v1194 = vadd.f32 %v1119, %v1193
    %v1195 = vpop.f32.mrb[0].mxu0
    %1196 = vdwg.mxu0
    %v1197 = vadd.f32 %v1194, %v365
    %v1198 = vxor.u32 %v1197, 2147483648
    %v1199 = vmul.f32 %v1198, 1.442695
    %v1200 = vpow.pop %v1199
    %v1201 = vadd.f32 %v1200, 1.0
    %v1202 = vrcp.pop %v1201
    %v1203 = vmul.f32 1.0, %v1202
    %v1204 = vmul.f32 %v1203, 2.0
    %v1205 = vsub.f32 %v1204, 1.0
    %v1206 = vmul.f32 %v1203, %v939
    %1208 = vrot.lane.b32.xlu0 %v1205, 64
    %v1209 = vpop.permute.xlu0 %1208
    %v1211 = vmul.f32 %v1203, %v1209
    %1213 = vrot.lane.b32.xlu0 %v1211, 32
    %v1214 = vpop.permute.xlu0 %1213
    %v1216 = vadd.f32 %v1206, %v1214
    %v1217 = vtanh.pop %v1216
    %1219 = vrot.lane.b32.xlu0 %v1217, 64
    %v1220 = vpop.permute.xlu0 %1219
    %v1222 = vmul.f32 %v1203, %v1220
    %1224 = vrot.lane.b32.xlu0 %v1222, 32
    %v1225 = vpop.permute.xlu0 %1224
    %s1227 = scalar_lea.vmem [#allocation2], 24
    %1228 = vst.msk [vmem:[%s1227] sm:$0xff] %vm116, %v1225
    %s1229 = scalar_lea.vmem [#allocation4], 32
    %v1230 = vld [vmem:[%s1229] sm:$0xff]
    %1231 = vmatprep.subr.mxu0 0.0
    %1232 = vmatpush1.msra.mxu0 %v102
    %1233 = vmatprep.subr.mxu0 0.0
    %1234 = vmatpush1.msra.mxu0 %v103
    %1235 = vmatprep.subr.mxu0 0.0
    %1236 = vmatpush1.msra.mxu0 %v104
    %1237 = vmatprep.subr.mxu0 0.0
    %1238 = vmatpush1.msra.mxu0 %v105
    %1239 = vmatprep.subr.mxu0 0.0
    %1240 = vmatpush1.msra.mxu0 0.0
    %1241 = vmatprep.subr.mxu0 0.0
    %1242 = vmatpush1.msra.mxu0 0.0
    %1243 = vmatprep.subr.mxu0 0.0
    %1244 = vmatpush1.msra.mxu0 0.0
    %1245 = vmatprep.subr.mxu0 0.0
    %1246 = vmatpush1.msra.mxu0 0.0
    %1247 = vmatprep.subr.mxu0 0.0
    %1248 = vmatpush1.msra.mxu0 0.0
    %1249 = vmatprep.subr.mxu0 0.0
    %1250 = vmatpush1.msra.mxu0 0.0
    %1251 = vmatprep.subr.mxu0 0.0
    %1252 = vmatpush1.msra.mxu0 0.0
    %1253 = vmatprep.subr.mxu0 0.0
    %1254 = vmatpush1.msra.mxu0 0.0
    %1255 = vmatprep.subr.mxu0 0.0
    %1256 = vmatpush1.msra.mxu0 0.0
    %1257 = vmatprep.subr.mxu0 0.0
    %1258 = vmatpush1.msra.mxu0 0.0
    %1259 = vmatprep.subr.mxu0 0.0
    %1260 = vmatpush1.msra.mxu0 0.0
    %1261 = vmatprep.subr.mxu0 0.0
    %1262 = vmatpush1.msra.mxu0 0.0
    %1263 = vmatprep.subr.mxu0 0.0
    %1264 = vmatpush1.msra.mxu0 0.0
    %1265 = vmatprep.subr.mxu0 0.0
    %1266 = vmatpush1.msra.mxu0 0.0
    %1267 = vmatprep.subr.mxu0 0.0
    %1268 = vmatpush1.msra.mxu0 0.0
    %1269 = vmatprep.subr.mxu0 0.0
    %1270 = vmatpush1.msra.mxu0 0.0
    %1271 = vmatprep.subr.mxu0 0.0
    %1272 = vmatpush1.msra.mxu0 0.0
    %1273 = vmatprep.subr.mxu0 0.0
    %1274 = vmatpush1.msra.mxu0 0.0
    %1275 = vmatprep.subr.mxu0 0.0
    %1276 = vmatpush1.msra.mxu0 0.0
    %1277 = vmatprep.subr.mxu0 0.0
    %1278 = vmatpush1.msra.mxu0 0.0
    %1279 = vmatprep.subr.mxu0 0.0
    %1280 = vmatpush1.msra.mxu0 0.0
    %1281 = vmatprep.subr.mxu0 0.0
    %1282 = vmatpush1.msra.mxu0 0.0
    %1283 = vmatprep.subr.mxu0 0.0
    %1284 = vmatpush1.msra.mxu0 0.0
    %1285 = vmatprep.subr.mxu0 0.0
    %1286 = vmatpush1.msra.mxu0 0.0
    %1287 = vmatprep.subr.mxu0 0.0
    %1288 = vmatpush1.msra.mxu0 0.0
    %1289 = vmatprep.subr.mxu0 0.0
    %1290 = vmatpush1.msra.mxu0 0.0
    %1291 = vmatprep.subr.mxu0 0.0
    %1292 = vmatpush1.msra.mxu0 0.0
    %1293 = vmatprep.subr.mxu0 0.0
    %1294 = vmatpush1.msra.mxu0 0.0
    %1295 = vmatprep.mubr.f32.mxu0 0.0
    %1296 = vmatmul.mubr.f32.gmra.mrb[0].mxu0 %v1125
    %v1297 = vpop.f32.mrb[0].mxu0
    %v1298 = vadd.f32 0.0, %v1297
    %v1299 = vpop.f32.mrb[0].mxu0
    %1300 = vdwg.mxu0
    %v1301 = vadd.f32 %v1230, %v1298
    %v1302 = vxor.u32 %v1301, 2147483648
    %v1303 = vmul.f32 %v1302, 1.442695
    %v1304 = vpow.pop %v1303
    %v1305 = vadd.f32 %v1304, 1.0
    %v1306 = vrcp.pop %v1305
    %v1307 = vmul.f32 1.0, %v1306
    %v1308 = vmul.f32 %v1307, 2.0
    %v1309 = vsub.f32 %v1308, 1.0
    %v1310 = vmul.f32 %v1307, %v1043
    %1312 = vrot.lane.b32.xlu0 %v1309, 64
    %v1313 = vpop.permute.xlu0 %1312
    %v1315 = vmul.f32 %v1307, %v1313
    %1317 = vrot.lane.b32.xlu0 %v1315, 32
    %v1318 = vpop.permute.xlu0 %1317
    %v1320 = vadd.f32 %v1310, %v1318
    %v1321 = vtanh.pop %v1320
    %1323 = vrot.lane.b32.xlu0 %v1321, 64
    %v1324 = vpop.permute.xlu0 %1323
    %v1326 = vmul.f32 %v1307, %v1324
    %v1327 = vsel %vm116, %v1225, 0
    %1329 = vmatprep.subr.mxu0 0.0
    %1330 = vmatpush1.msra.mxu0 %v110
    %1331 = vmatprep.subr.mxu0 0.0
    %1332 = vmatpush1.msra.mxu0 %v111
    %1333 = vmatprep.subr.mxu0 0.0
    %1334 = vmatpush1.msra.mxu0 %v112
    %1335 = vmatprep.subr.mxu0 0.0
    %1336 = vmatpush1.msra.mxu0 %v113
    %1337 = vmatprep.subr.mxu0 0.0
    %1338 = vmatpush1.msra.mxu0 0.0
    %1339 = vmatprep.subr.mxu0 0.0
    %1340 = vmatpush1.msra.mxu0 0.0
    %1341 = vmatprep.subr.mxu0 0.0
    %1342 = vmatpush1.msra.mxu0 0.0
    %1343 = vmatprep.subr.mxu0 0.0
    %1344 = vmatpush1.msra.mxu0 0.0
    %1345 = vmatprep.subr.mxu0 0.0
    %1346 = vmatpush1.msra.mxu0 0.0
    %1347 = vmatprep.subr.mxu0 0.0
    %1348 = vmatpush1.msra.mxu0 0.0
    %1349 = vmatprep.subr.mxu0 0.0
    %1350 = vmatpush1.msra.mxu0 0.0
    %1351 = vmatprep.subr.mxu0 0.0
    %1352 = vmatpush1.msra.mxu0 0.0
    %1353 = vmatprep.subr.mxu0 0.0
    %1354 = vmatpush1.msra.mxu0 0.0
    %1355 = vmatprep.subr.mxu0 0.0
    %1356 = vmatpush1.msra.mxu0 0.0
    %1357 = vmatprep.subr.mxu0 0.0
    %1358 = vmatpush1.msra.mxu0 0.0
    %1359 = vmatprep.subr.mxu0 0.0
    %1360 = vmatpush1.msra.mxu0 0.0
    %1361 = vmatprep.subr.mxu0 0.0
    %1362 = vmatpush1.msra.mxu0 0.0
    %1363 = vmatprep.subr.mxu0 0.0
    %1364 = vmatpush1.msra.mxu0 0.0
    %1365 = vmatprep.subr.mxu0 0.0
    %1366 = vmatpush1.msra.mxu0 0.0
    %1367 = vmatprep.subr.mxu0 0.0
    %1368 = vmatpush1.msra.mxu0 0.0
    %1369 = vmatprep.subr.mxu0 0.0
    %1370 = vmatpush1.msra.mxu0 0.0
    %1371 = vmatprep.subr.mxu0 0.0
    %1372 = vmatpush1.msra.mxu0 0.0
    %1373 = vmatprep.subr.mxu0 0.0
    %1374 = vmatpush1.msra.mxu0 0.0
    %1375 = vmatprep.subr.mxu0 0.0
    %1376 = vmatpush1.msra.mxu0 0.0
    %1377 = vmatprep.subr.mxu0 0.0
    %1378 = vmatpush1.msra.mxu0 0.0
    %1379 = vmatprep.subr.mxu0 0.0
    %1380 = vmatpush1.msra.mxu0 0.0
    %1381 = vmatprep.subr.mxu0 0.0
    %1382 = vmatpush1.msra.mxu0 0.0
    %1383 = vmatprep.subr.mxu0 0.0
    %1384 = vmatpush1.msra.mxu0 0.0
    %1385 = vmatprep.subr.mxu0 0.0
    %1386 = vmatpush1.msra.mxu0 0.0
    %1387 = vmatprep.subr.mxu0 0.0
    %1388 = vmatpush1.msra.mxu0 0.0
    %1389 = vmatprep.subr.mxu0 0.0
    %1390 = vmatpush1.msra.mxu0 0.0
    %1391 = vmatprep.subr.mxu0 0.0
    %1392 = vmatpush1.msra.mxu0 0.0
    %1393 = vmatprep.mubr.f32.mxu0 0.0
    %1394 = vmatmul.mubr.f32.gmra.mrb[0].mxu0 %v1327
    %v1395 = vpop.f32.mrb[0].mxu0
    %v1396 = vadd.f32 0.0, %v1395
    %v1397 = vpop.f32.mrb[0].mxu0
    %1398 = vdwg.mxu0
    %1400 = vrot.lane.b32.xlu0 %v1326, 32
    %v1401 = vpop.permute.xlu0 %1400
    %v1402 = vsel %vm116, %v1401, 0
    %1404 = vmatprep.subr.mxu0 0.0
    %1405 = vmatpush1.msra.mxu0 %v106
    %1406 = vmatprep.subr.mxu0 0.0
    %1407 = vmatpush1.msra.mxu0 %v107
    %1408 = vmatprep.subr.mxu0 0.0
    %1409 = vmatpush1.msra.mxu0 %v108
    %1410 = vmatprep.subr.mxu0 0.0
    %1411 = vmatpush1.msra.mxu0 %v109
    %1412 = vmatprep.subr.mxu0 0.0
    %1413 = vmatpush1.msra.mxu0 0.0
    %1414 = vmatprep.subr.mxu0 0.0
    %1415 = vmatpush1.msra.mxu0 0.0
    %1416 = vmatprep.subr.mxu0 0.0
    %1417 = vmatpush1.msra.mxu0 0.0
    %1418 = vmatprep.subr.mxu0 0.0
    %1419 = vmatpush1.msra.mxu0 0.0
    %1420 = vmatprep.subr.mxu0 0.0
    %1421 = vmatpush1.msra.mxu0 0.0
    %1422 = vmatprep.subr.mxu0 0.0
    %1423 = vmatpush1.msra.mxu0 0.0
    %1424 = vmatprep.subr.mxu0 0.0
    %1425 = vmatpush1.msra.mxu0 0.0
    %1426 = vmatprep.subr.mxu0 0.0
    %1427 = vmatpush1.msra.mxu0 0.0
    %1428 = vmatprep.subr.mxu0 0.0
    %1429 = vmatpush1.msra.mxu0 0.0
    %1430 = vmatprep.subr.mxu0 0.0
    %1431 = vmatpush1.msra.mxu0 0.0
    %1432 = vmatprep.subr.mxu0 0.0
    %1433 = vmatpush1.msra.mxu0 0.0
    %1434 = vmatprep.subr.mxu0 0.0
    %1435 = vmatpush1.msra.mxu0 0.0
    %1436 = vmatprep.subr.mxu0 0.0
    %1437 = vmatpush1.msra.mxu0 0.0
    %1438 = vmatprep.subr.mxu0 0.0
    %1439 = vmatpush1.msra.mxu0 0.0
    %1440 = vmatprep.subr.mxu0 0.0
    %1441 = vmatpush1.msra.mxu0 0.0
    %1442 = vmatprep.subr.mxu0 0.0
    %1443 = vmatpush1.msra.mxu0 0.0
    %1444 = vmatprep.subr.mxu0 0.0
    %1445 = vmatpush1.msra.mxu0 0.0
    %1446 = vmatprep.subr.mxu0 0.0
    %1447 = vmatpush1.msra.mxu0 0.0
    %1448 = vmatprep.subr.mxu0 0.0
    %1449 = vmatpush1.msra.mxu0 0.0
    %1450 = vmatprep.subr.mxu0 0.0
    %1451 = vmatpush1.msra.mxu0 0.0
    %1452 = vmatprep.subr.mxu0 0.0
    %1453 = vmatpush1.msra.mxu0 0.0
    %1454 = vmatprep.subr.mxu0 0.0
    %1455 = vmatpush1.msra.mxu0 0.0
    %1456 = vmatprep.subr.mxu0 0.0
    %1457 = vmatpush1.msra.mxu0 0.0
    %1458 = vmatprep.subr.mxu0 0.0
    %1459 = vmatpush1.msra.mxu0 0.0
    %1460 = vmatprep.subr.mxu0 0.0
    %1461 = vmatpush1.msra.mxu0 0.0
    %1462 = vmatprep.subr.mxu0 0.0
    %1463 = vmatpush1.msra.mxu0 0.0
    %1464 = vmatprep.subr.mxu0 0.0
    %1465 = vmatpush1.msra.mxu0 0.0
    %1466 = vmatprep.subr.mxu0 0.0
    %1467 = vmatpush1.msra.mxu0 0.0
    %1468 = vmatprep.mubr.f32.mxu0 0.0
    %1469 = vmatmul.mubr.f32.gmra.mrb[0].mxu0 %v1402
    %v1470 = vpop.f32.mrb[0].mxu0
    %v1471 = vadd.f32 %v1396, %v1470
    %v1472 = vpop.f32.mrb[0].mxu0
    %1473 = vdwg.mxu0
    %v1474 = vadd.f32 %v1471, %v365
    %v1475 = vxor.u32 %v1474, 2147483648
    %v1476 = vmul.f32 %v1475, 1.442695
    %v1477 = vpow.pop %v1476
    %v1478 = vadd.f32 %v1477, 1.0
    %v1479 = vrcp.pop %v1478
    %v1480 = vmul.f32 1.0, %v1479
    %v1481 = vmul.f32 %v1480, 2.0
    %v1482 = vsub.f32 %v1481, 1.0
    %v1483 = vmul.f32 %v1480, %v1216
    %1485 = vrot.lane.b32.xlu0 %v1482, 64
    %v1486 = vpop.permute.xlu0 %1485
    %v1488 = vmul.f32 %v1480, %v1486
    %1490 = vrot.lane.b32.xlu0 %v1488, 32
    %v1491 = vpop.permute.xlu0 %1490
    %v1493 = vadd.f32 %v1483, %v1491
    %v1494 = vtanh.pop %v1493
    %1496 = vrot.lane.b32.xlu0 %v1494, 64
    %v1497 = vpop.permute.xlu0 %1496
    %v1499 = vmul.f32 %v1480, %v1497
    %1501 = vrot.lane.b32.xlu0 %v1499, 32
    %v1502 = vpop.permute.xlu0 %1501
    %s1504 = scalar_lea.vmem [#allocation2], 32
    %1505 = vst.msk [vmem:[%s1504] sm:$0xff] %vm116, %v1502
    %s1506 = scalar_lea.vmem [#allocation4], 40
    %v1507 = vld [vmem:[%s1506] sm:$0xff]
    %1508 = vmatprep.subr.mxu0 0.0
    %1509 = vmatpush1.msra.mxu0 %v102
    %1510 = vmatprep.subr.mxu0 0.0
    %1511 = vmatpush1.msra.mxu0 %v103
    %1512 = vmatprep.subr.mxu0 0.0
    %1513 = vmatpush1.msra.mxu0 %v104
    %1514 = vmatprep.subr.mxu0 0.0
    %1515 = vmatpush1.msra.mxu0 %v105
    %1516 = vmatprep.subr.mxu0 0.0
    %1517 = vmatpush1.msra.mxu0 0.0
    %1518 = vmatprep.subr.mxu0 0.0
    %1519 = vmatpush1.msra.mxu0 0.0
    %1520 = vmatprep.subr.mxu0 0.0
    %1521 = vmatpush1.msra.mxu0 0.0
    %1522 = vmatprep.subr.mxu0 0.0
    %1523 = vmatpush1.msra.mxu0 0.0
    %1524 = vmatprep.subr.mxu0 0.0
    %1525 = vmatpush1.msra.mxu0 0.0
    %1526 = vmatprep.subr.mxu0 0.0
    %1527 = vmatpush1.msra.mxu0 0.0
    %1528 = vmatprep.subr.mxu0 0.0
    %1529 = vmatpush1.msra.mxu0 0.0
    %1530 = vmatprep.subr.mxu0 0.0
    %1531 = vmatpush1.msra.mxu0 0.0
    %1532 = vmatprep.subr.mxu0 0.0
    %1533 = vmatpush1.msra.mxu0 0.0
    %1534 = vmatprep.subr.mxu0 0.0
    %1535 = vmatpush1.msra.mxu0 0.0
    %1536 = vmatprep.subr.mxu0 0.0
    %1537 = vmatpush1.msra.mxu0 0.0
    %1538 = vmatprep.subr.mxu0 0.0
    %1539 = vmatpush1.msra.mxu0 0.0
    %1540 = vmatprep.subr.mxu0 0.0
    %1541 = vmatpush1.msra.mxu0 0.0
    %1542 = vmatprep.subr.mxu0 0.0
    %1543 = vmatpush1.msra.mxu0 0.0
    %1544 = vmatprep.subr.mxu0 0.0
    %1545 = vmatpush1.msra.mxu0 0.0
    %1546 = vmatprep.subr.mxu0 0.0
    %1547 = vmatpush1.msra.mxu0 0.0
    %1548 = vmatprep.subr.mxu0 0.0
    %1549 = vmatpush1.msra.mxu0 0.0
    %1550 = vmatprep.subr.mxu0 0.0
    %1551 = vmatpush1.msra.mxu0 0.0
    %1552 = vmatprep.subr.mxu0 0.0
    %1553 = vmatpush1.msra.mxu0 0.0
    %1554 = vmatprep.subr.mxu0 0.0
    %1555 = vmatpush1.msra.mxu0 0.0
    %1556 = vmatprep.subr.mxu0 0.0
    %1557 = vmatpush1.msra.mxu0 0.0
    %1558 = vmatprep.subr.mxu0 0.0
    %1559 = vmatpush1.msra.mxu0 0.0
    %1560 = vmatprep.subr.mxu0 0.0
    %1561 = vmatpush1.msra.mxu0 0.0
    %1562 = vmatprep.subr.mxu0 0.0
    %1563 = vmatpush1.msra.mxu0 0.0
    %1564 = vmatprep.subr.mxu0 0.0
    %1565 = vmatpush1.msra.mxu0 0.0
    %1566 = vmatprep.subr.mxu0 0.0
    %1567 = vmatpush1.msra.mxu0 0.0
    %1568 = vmatprep.subr.mxu0 0.0
    %1569 = vmatpush1.msra.mxu0 0.0
    %1570 = vmatprep.subr.mxu0 0.0
    %1571 = vmatpush1.msra.mxu0 0.0
    %1572 = vmatprep.mubr.f32.mxu0 0.0
    %1573 = vmatmul.mubr.f32.gmra.mrb[0].mxu0 %v1402
    %v1574 = vpop.f32.mrb[0].mxu0
    %v1575 = vadd.f32 0.0, %v1574
    %v1576 = vpop.f32.mrb[0].mxu0
    %1577 = vdwg.mxu0
    %v1578 = vadd.f32 %v1507, %v1575
    %v1579 = vxor.u32 %v1578, 2147483648
    %v1580 = vmul.f32 %v1579, 1.442695
    %v1581 = vpow.pop %v1580
    %v1582 = vadd.f32 %v1581, 1.0
    %v1583 = vrcp.pop %v1582
    %v1584 = vmul.f32 1.0, %v1583
    %v1585 = vmul.f32 %v1584, 2.0
    %v1586 = vsub.f32 %v1585, 1.0
    %v1587 = vmul.f32 %v1584, %v1320
    %1589 = vrot.lane.b32.xlu0 %v1586, 64
    %v1590 = vpop.permute.xlu0 %1589
    %v1592 = vmul.f32 %v1584, %v1590
    %1594 = vrot.lane.b32.xlu0 %v1592, 32
    %v1595 = vpop.permute.xlu0 %1594
    %v1597 = vadd.f32 %v1587, %v1595
    %v1598 = vtanh.pop %v1597
    %1600 = vrot.lane.b32.xlu0 %v1598, 64
    %v1601 = vpop.permute.xlu0 %1600
    %v1603 = vmul.f32 %v1584, %v1601
    %v1604 = vsel %vm116, %v1502, 0
    %1606 = vmatprep.subr.mxu0 0.0
    %1607 = vmatpush1.msra.mxu0 %v110
    %1608 = vmatprep.subr.mxu0 0.0
    %1609 = vmatpush1.msra.mxu0 %v111
    %1610 = vmatprep.subr.mxu0 0.0
    %1611 = vmatpush1.msra.mxu0 %v112
    %1612 = vmatprep.subr.mxu0 0.0
    %1613 = vmatpush1.msra.mxu0 %v113
    %1614 = vmatprep.subr.mxu0 0.0
    %1615 = vmatpush1.msra.mxu0 0.0
    %1616 = vmatprep.subr.mxu0 0.0
    %1617 = vmatpush1.msra.mxu0 0.0
    %1618 = vmatprep.subr.mxu0 0.0
    %1619 = vmatpush1.msra.mxu0 0.0
    %1620 = vmatprep.subr.mxu0 0.0
    %1621 = vmatpush1.msra.mxu0 0.0
    %1622 = vmatprep.subr.mxu0 0.0
    %1623 = vmatpush1.msra.mxu0 0.0
    %1624 = vmatprep.subr.mxu0 0.0
    %1625 = vmatpush1.msra.mxu0 0.0
    %1626 = vmatprep.subr.mxu0 0.0
    %1627 = vmatpush1.msra.mxu0 0.0
    %1628 = vmatprep.subr.mxu0 0.0
    %1629 = vmatpush1.msra.mxu0 0.0
    %1630 = vmatprep.subr.mxu0 0.0
    %1631 = vmatpush1.msra.mxu0 0.0
    %1632 = vmatprep.subr.mxu0 0.0
    %1633 = vmatpush1.msra.mxu0 0.0
    %1634 = vmatprep.subr.mxu0 0.0
    %1635 = vmatpush1.msra.mxu0 0.0
    %1636 = vmatprep.subr.mxu0 0.0
    %1637 = vmatpush1.msra.mxu0 0.0
    %1638 = vmatprep.subr.mxu0 0.0
    %1639 = vmatpush1.msra.mxu0 0.0
    %1640 = vmatprep.subr.mxu0 0.0
    %1641 = vmatpush1.msra.mxu0 0.0
    %1642 = vmatprep.subr.mxu0 0.0
    %1643 = vmatpush1.msra.mxu0 0.0
    %1644 = vmatprep.subr.mxu0 0.0
    %1645 = vmatpush1.msra.mxu0 0.0
    %1646 = vmatprep.subr.mxu0 0.0
    %1647 = vmatpush1.msra.mxu0 0.0
    %1648 = vmatprep.subr.mxu0 0.0
    %1649 = vmatpush1.msra.mxu0 0.0
    %1650 = vmatprep.subr.mxu0 0.0
    %1651 = vmatpush1.msra.mxu0 0.0
    %1652 = vmatprep.subr.mxu0 0.0
    %1653 = vmatpush1.msra.mxu0 0.0
    %1654 = vmatprep.subr.mxu0 0.0
    %1655 = vmatpush1.msra.mxu0 0.0
    %1656 = vmatprep.subr.mxu0 0.0
    %1657 = vmatpush1.msra.mxu0 0.0
    %1658 = vmatprep.subr.mxu0 0.0
    %1659 = vmatpush1.msra.mxu0 0.0
    %1660 = vmatprep.subr.mxu0 0.0
    %1661 = vmatpush1.msra.mxu0 0.0
    %1662 = vmatprep.subr.mxu0 0.0
    %1663 = vmatpush1.msra.mxu0 0.0
    %1664 = vmatprep.subr.mxu0 0.0
    %1665 = vmatpush1.msra.mxu0 0.0
    %1666 = vmatprep.subr.mxu0 0.0
    %1667 = vmatpush1.msra.mxu0 0.0
    %1668 = vmatprep.subr.mxu0 0.0
    %1669 = vmatpush1.msra.mxu0 0.0
    %1670 = vmatprep.mubr.f32.mxu0 0.0
    %1671 = vmatmul.mubr.f32.gmra.mrb[0].mxu0 %v1604
    %v1672 = vpop.f32.mrb[0].mxu0
    %v1673 = vadd.f32 0.0, %v1672
    %v1674 = vpop.f32.mrb[0].mxu0
    %1675 = vdwg.mxu0
    %1677 = vrot.lane.b32.xlu0 %v1603, 32
    %v1678 = vpop.permute.xlu0 %1677
    %v1679 = vsel %vm116, %v1678, 0
    %1681 = vmatprep.subr.mxu0 0.0
    %1682 = vmatpush1.msra.mxu0 %v106
    %1683 = vmatprep.subr.mxu0 0.0
    %1684 = vmatpush1.msra.mxu0 %v107
    %1685 = vmatprep.subr.mxu0 0.0
    %1686 = vmatpush1.msra.mxu0 %v108
    %1687 = vmatprep.subr.mxu0 0.0
    %1688 = vmatpush1.msra.mxu0 %v109
    %1689 = vmatprep.subr.mxu0 0.0
    %1690 = vmatpush1.msra.mxu0 0.0
    %1691 = vmatprep.subr.mxu0 0.0
    %1692 = vmatpush1.msra.mxu0 0.0
    %1693 = vmatprep.subr.mxu0 0.0
    %1694 = vmatpush1.msra.mxu0 0.0
    %1695 = vmatprep.subr.mxu0 0.0
    %1696 = vmatpush1.msra.mxu0 0.0
    %1697 = vmatprep.subr.mxu0 0.0
    %1698 = vmatpush1.msra.mxu0 0.0
    %1699 = vmatprep.subr.mxu0 0.0
    %1700 = vmatpush1.msra.mxu0 0.0
    %1701 = vmatprep.subr.mxu0 0.0
    %1702 = vmatpush1.msra.mxu0 0.0
    %1703 = vmatprep.subr.mxu0 0.0
    %1704 = vmatpush1.msra.mxu0 0.0
    %1705 = vmatprep.subr.mxu0 0.0
    %1706 = vmatpush1.msra.mxu0 0.0
    %1707 = vmatprep.subr.mxu0 0.0
    %1708 = vmatpush1.msra.mxu0 0.0
    %1709 = vmatprep.subr.mxu0 0.0
    %1710 = vmatpush1.msra.mxu0 0.0
    %1711 = vmatprep.subr.mxu0 0.0
    %1712 = vmatpush1.msra.mxu0 0.0
    %1713 = vmatprep.subr.mxu0 0.0
    %1714 = vmatpush1.msra.mxu0 0.0
    %1715 = vmatprep.subr.mxu0 0.0
    %1716 = vmatpush1.msra.mxu0 0.0
    %1717 = vmatprep.subr.mxu0 0.0
    %1718 = vmatpush1.msra.mxu0 0.0
    %1719 = vmatprep.subr.mxu0 0.0
    %1720 = vmatpush1.msra.mxu0 0.0
    %1721 = vmatprep.subr.mxu0 0.0
    %1722 = vmatpush1.msra.mxu0 0.0
    %1723 = vmatprep.subr.mxu0 0.0
    %1724 = vmatpush1.msra.mxu0 0.0
    %1725 = vmatprep.subr.mxu0 0.0
    %1726 = vmatpush1.msra.mxu0 0.0
    %1727 = vmatprep.subr.mxu0 0.0
    %1728 = vmatpush1.msra.mxu0 0.0
    %1729 = vmatprep.subr.mxu0 0.0
    %1730 = vmatpush1.msra.mxu0 0.0
    %1731 = vmatprep.subr.mxu0 0.0
    %1732 = vmatpush1.msra.mxu0 0.0
    %1733 = vmatprep.subr.mxu0 0.0
    %1734 = vmatpush1.msra.mxu0 0.0
    %1735 = vmatprep.subr.mxu0 0.0
    %1736 = vmatpush1.msra.mxu0 0.0
    %1737 = vmatprep.subr.mxu0 0.0
    %1738 = vmatpush1.msra.mxu0 0.0
    %1739 = vmatprep.subr.mxu0 0.0
    %1740 = vmatpush1.msra.mxu0 0.0
    %1741 = vmatprep.subr.mxu0 0.0
    %1742 = vmatpush1.msra.mxu0 0.0
    %1743 = vmatprep.subr.mxu0 0.0
    %1744 = vmatpush1.msra.mxu0 0.0
    %1745 = vmatprep.mubr.f32.mxu0 0.0
    %1746 = vmatmul.mubr.f32.gmra.mrb[0].mxu0 %v1679
    %v1747 = vpop.f32.mrb[0].mxu0
    %v1748 = vadd.f32 %v1673, %v1747
    %v1749 = vpop.f32.mrb[0].mxu0
    %1750 = vdwg.mxu0
    %v1751 = vadd.f32 %v1748, %v365
    %v1752 = vxor.u32 %v1751, 2147483648
    %v1753 = vmul.f32 %v1752, 1.442695
    %v1754 = vpow.pop %v1753
    %v1755 = vadd.f32 %v1754, 1.0
    %v1756 = vrcp.pop %v1755
    %v1757 = vmul.f32 1.0, %v1756
    %v1758 = vmul.f32 %v1757, 2.0
    %v1759 = vsub.f32 %v1758, 1.0
    %v1760 = vmul.f32 %v1757, %v1493
    %1762 = vrot.lane.b32.xlu0 %v1759, 64
    %v1763 = vpop.permute.xlu0 %1762
    %v1765 = vmul.f32 %v1757, %v1763
    %1767 = vrot.lane.b32.xlu0 %v1765, 32
    %v1768 = vpop.permute.xlu0 %1767
    %v1770 = vadd.f32 %v1760, %v1768
    %v1771 = vtanh.pop %v1770
    %1773 = vrot.lane.b32.xlu0 %v1771, 64
    %v1774 = vpop.permute.xlu0 %1773
    %v1776 = vmul.f32 %v1757, %v1774
    %1778 = vrot.lane.b32.xlu0 %v1776, 32
    %v1779 = vpop.permute.xlu0 %1778
    %s1781 = scalar_lea.vmem [#allocation2], 40
    %1782 = vst.msk [vmem:[%s1781] sm:$0xff] %vm116, %v1779
    %s1783 = scalar_lea.vmem [#allocation4], 48
    %v1784 = vld [vmem:[%s1783] sm:$0xff]
    %1785 = vmatprep.subr.mxu0 0.0
    %1786 = vmatpush1.msra.mxu0 %v102
    %1787 = vmatprep.subr.mxu0 0.0
    %1788 = vmatpush1.msra.mxu0 %v103
    %1789 = vmatprep.subr.mxu0 0.0
    %1790 = vmatpush1.msra.mxu0 %v104
    %1791 = vmatprep.subr.mxu0 0.0
    %1792 = vmatpush1.msra.mxu0 %v105
    %1793 = vmatprep.subr.mxu0 0.0
    %1794 = vmatpush1.msra.mxu0 0.0
    %1795 = vmatprep.subr.mxu0 0.0
    %1796 = vmatpush1.msra.mxu0 0.0
    %1797 = vmatprep.subr.mxu0 0.0
    %1798 = vmatpush1.msra.mxu0 0.0
    %1799 = vmatprep.subr.mxu0 0.0
    %1800 = vmatpush1.msra.mxu0 0.0
    %1801 = vmatprep.subr.mxu0 0.0
    %1802 = vmatpush1.msra.mxu0 0.0
    %1803 = vmatprep.subr.mxu0 0.0
    %1804 = vmatpush1.msra.mxu0 0.0
    %1805 = vmatprep.subr.mxu0 0.0
    %1806 = vmatpush1.msra.mxu0 0.0
    %1807 = vmatprep.subr.mxu0 0.0
    %1808 = vmatpush1.msra.mxu0 0.0
    %1809 = vmatprep.subr.mxu0 0.0
    %1810 = vmatpush1.msra.mxu0 0.0
    %1811 = vmatprep.subr.mxu0 0.0
    %1812 = vmatpush1.msra.mxu0 0.0
    %1813 = vmatprep.subr.mxu0 0.0
    %1814 = vmatpush1.msra.mxu0 0.0
    %1815 = vmatprep.subr.mxu0 0.0
    %1816 = vmatpush1.msra.mxu0 0.0
    %1817 = vmatprep.subr.mxu0 0.0
    %1818 = vmatpush1.msra.mxu0 0.0
    %1819 = vmatprep.subr.mxu0 0.0
    %1820 = vmatpush1.msra.mxu0 0.0
    %1821 = vmatprep.subr.mxu0 0.0
    %1822 = vmatpush1.msra.mxu0 0.0
    %1823 = vmatprep.subr.mxu0 0.0
    %1824 = vmatpush1.msra.mxu0 0.0
    %1825 = vmatprep.subr.mxu0 0.0
    %1826 = vmatpush1.msra.mxu0 0.0
    %1827 = vmatprep.subr.mxu0 0.0
    %1828 = vmatpush1.msra.mxu0 0.0
    %1829 = vmatprep.subr.mxu0 0.0
    %1830 = vmatpush1.msra.mxu0 0.0
    %1831 = vmatprep.subr.mxu0 0.0
    %1832 = vmatpush1.msra.mxu0 0.0
    %1833 = vmatprep.subr.mxu0 0.0
    %1834 = vmatpush1.msra.mxu0 0.0
    %1835 = vmatprep.subr.mxu0 0.0
    %1836 = vmatpush1.msra.mxu0 0.0
    %1837 = vmatprep.subr.mxu0 0.0
    %1838 = vmatpush1.msra.mxu0 0.0
    %1839 = vmatprep.subr.mxu0 0.0
    %1840 = vmatpush1.msra.mxu0 0.0
    %1841 = vmatprep.subr.mxu0 0.0
    %1842 = vmatpush1.msra.mxu0 0.0
    %1843 = vmatprep.subr.mxu0 0.0
    %1844 = vmatpush1.msra.mxu0 0.0
    %1845 = vmatprep.subr.mxu0 0.0
    %1846 = vmatpush1.msra.mxu0 0.0
    %1847 = vmatprep.subr.mxu0 0.0
    %1848 = vmatpush1.msra.mxu0 0.0
    %1849 = vmatprep.mubr.f32.mxu0 0.0
    %1850 = vmatmul.mubr.f32.gmra.mrb[0].mxu0 %v1679
    %v1851 = vpop.f32.mrb[0].mxu0
    %v1852 = vadd.f32 0.0, %v1851
    %v1853 = vpop.f32.mrb[0].mxu0
    %1854 = vdwg.mxu0
    %v1855 = vadd.f32 %v1784, %v1852
    %v1856 = vxor.u32 %v1855, 2147483648
    %v1857 = vmul.f32 %v1856, 1.442695
    %v1858 = vpow.pop %v1857
    %v1859 = vadd.f32 %v1858, 1.0
    %v1860 = vrcp.pop %v1859
    %v1861 = vmul.f32 1.0, %v1860
    %v1862 = vmul.f32 %v1861, 2.0
    %v1863 = vsub.f32 %v1862, 1.0
    %v1864 = vmul.f32 %v1861, %v1597
    %1866 = vrot.lane.b32.xlu0 %v1863, 64
    %v1867 = vpop.permute.xlu0 %1866
    %v1869 = vmul.f32 %v1861, %v1867
    %1871 = vrot.lane.b32.xlu0 %v1869, 32
    %v1872 = vpop.permute.xlu0 %1871
    %v1874 = vadd.f32 %v1864, %v1872
    %v1875 = vtanh.pop %v1874
    %1877 = vrot.lane.b32.xlu0 %v1875, 64
    %v1878 = vpop.permute.xlu0 %1877
    %v1880 = vmul.f32 %v1861, %v1878
    %v1881 = vsel %vm116, %v1779, 0
    %1883 = vmatprep.subr.mxu0 0.0
    %1884 = vmatpush1.msra.mxu0 %v110
    %1885 = vmatprep.subr.mxu0 0.0
    %1886 = vmatpush1.msra.mxu0 %v111
    %1887 = vmatprep.subr.mxu0 0.0
    %1888 = vmatpush1.msra.mxu0 %v112
    %1889 = vmatprep.subr.mxu0 0.0
    %1890 = vmatpush1.msra.mxu0 %v113
    %1891 = vmatprep.subr.mxu0 0.0
    %1892 = vmatpush1.msra.mxu0 0.0
    %1893 = vmatprep.subr.mxu0 0.0
    %1894 = vmatpush1.msra.mxu0 0.0
    %1895 = vmatprep.subr.mxu0 0.0
    %1896 = vmatpush1.msra.mxu0 0.0
    %1897 = vmatprep.subr.mxu0 0.0
    %1898 = vmatpush1.msra.mxu0 0.0
    %1899 = vmatprep.subr.mxu0 0.0
    %1900 = vmatpush1.msra.mxu0 0.0
    %1901 = vmatprep.subr.mxu0 0.0
    %1902 = vmatpush1.msra.mxu0 0.0
    %1903 = vmatprep.subr.mxu0 0.0
    %1904 = vmatpush1.msra.mxu0 0.0
    %1905 = vmatprep.subr.mxu0 0.0
    %1906 = vmatpush1.msra.mxu0 0.0
    %1907 = vmatprep.subr.mxu0 0.0
    %1908 = vmatpush1.msra.mxu0 0.0
    %1909 = vmatprep.subr.mxu0 0.0
    %1910 = vmatpush1.msra.mxu0 0.0
    %1911 = vmatprep.subr.mxu0 0.0
    %1912 = vmatpush1.msra.mxu0 0.0
    %1913 = vmatprep.subr.mxu0 0.0
    %1914 = vmatpush1.msra.mxu0 0.0
    %1915 = vmatprep.subr.mxu0 0.0
    %1916 = vmatpush1.msra.mxu0 0.0
    %1917 = vmatprep.subr.mxu0 0.0
    %1918 = vmatpush1.msra.mxu0 0.0
    %1919 = vmatprep.subr.mxu0 0.0
    %1920 = vmatpush1.msra.mxu0 0.0
    %1921 = vmatprep.subr.mxu0 0.0
    %1922 = vmatpush1.msra.mxu0 0.0
    %1923 = vmatprep.subr.mxu0 0.0
    %1924 = vmatpush1.msra.mxu0 0.0
    %1925 = vmatprep.subr.mxu0 0.0
    %1926 = vmatpush1.msra.mxu0 0.0
    %1927 = vmatprep.subr.mxu0 0.0
    %1928 = vmatpush1.msra.mxu0 0.0
    %1929 = vmatprep.subr.mxu0 0.0
    %1930 = vmatpush1.msra.mxu0 0.0
    %1931 = vmatprep.subr.mxu0 0.0
    %1932 = vmatpush1.msra.mxu0 0.0
    %1933 = vmatprep.subr.mxu0 0.0
    %1934 = vmatpush1.msra.mxu0 0.0
    %1935 = vmatprep.subr.mxu0 0.0
    %1936 = vmatpush1.msra.mxu0 0.0
    %1937 = vmatprep.subr.mxu0 0.0
    %1938 = vmatpush1.msra.mxu0 0.0
    %1939 = vmatprep.subr.mxu0 0.0
    %1940 = vmatpush1.msra.mxu0 0.0
    %1941 = vmatprep.subr.mxu0 0.0
    %1942 = vmatpush1.msra.mxu0 0.0
    %1943 = vmatprep.subr.mxu0 0.0
    %1944 = vmatpush1.msra.mxu0 0.0
    %1945 = vmatprep.subr.mxu0 0.0
    %1946 = vmatpush1.msra.mxu0 0.0
    %1947 = vmatprep.mubr.f32.mxu0 0.0
    %1948 = vmatmul.mubr.f32.gmra.mrb[0].mxu0 %v1881
    %v1949 = vpop.f32.mrb[0].mxu0
    %v1950 = vadd.f32 0.0, %v1949
    %v1951 = vpop.f32.mrb[0].mxu0
    %1952 = vdwg.mxu0
    %1954 = vrot.lane.b32.xlu0 %v1880, 32
    %v1955 = vpop.permute.xlu0 %1954
    %v1956 = vsel %vm116, %v1955, 0
    %1958 = vmatprep.subr.mxu0 0.0
    %1959 = vmatpush1.msra.mxu0 %v106
    %1960 = vmatprep.subr.mxu0 0.0
    %1961 = vmatpush1.msra.mxu0 %v107
    %1962 = vmatprep.subr.mxu0 0.0
    %1963 = vmatpush1.msra.mxu0 %v108
    %1964 = vmatprep.subr.mxu0 0.0
    %1965 = vmatpush1.msra.mxu0 %v109
    %1966 = vmatprep.subr.mxu0 0.0
    %1967 = vmatpush1.msra.mxu0 0.0
    %1968 = vmatprep.subr.mxu0 0.0
    %1969 = vmatpush1.msra.mxu0 0.0
    %1970 = vmatprep.subr.mxu0 0.0
    %1971 = vmatpush1.msra.mxu0 0.0
    %1972 = vmatprep.subr.mxu0 0.0
    %1973 = vmatpush1.msra.mxu0 0.0
    %1974 = vmatprep.subr.mxu0 0.0
    %1975 = vmatpush1.msra.mxu0 0.0
    %1976 = vmatprep.subr.mxu0 0.0
    %1977 = vmatpush1.msra.mxu0 0.0
    %1978 = vmatprep.subr.mxu0 0.0
    %1979 = vmatpush1.msra.mxu0 0.0
    %1980 = vmatprep.subr.mxu0 0.0
    %1981 = vmatpush1.msra.mxu0 0.0
    %1982 = vmatprep.subr.mxu0 0.0
    %1983 = vmatpush1.msra.mxu0 0.0
    %1984 = vmatprep.subr.mxu0 0.0
    %1985 = vmatpush1.msra.mxu0 0.0
    %1986 = vmatprep.subr.mxu0 0.0
    %1987 = vmatpush1.msra.mxu0 0.0
    %1988 = vmatprep.subr.mxu0 0.0
    %1989 = vmatpush1.msra.mxu0 0.0
    %1990 = vmatprep.subr.mxu0 0.0
    %1991 = vmatpush1.msra.mxu0 0.0
    %1992 = vmatprep.subr.mxu0 0.0
    %1993 = vmatpush1.msra.mxu0 0.0
    %1994 = vmatprep.subr.mxu0 0.0
    %1995 = vmatpush1.msra.mxu0 0.0
    %1996 = vmatprep.subr.mxu0 0.0
    %1997 = vmatpush1.msra.mxu0 0.0
    %1998 = vmatprep.subr.mxu0 0.0
    %1999 = vmatpush1.msra.mxu0 0.0
    %2000 = vmatprep.subr.mxu0 0.0
    %2001 = vmatpush1.msra.mxu0 0.0
    %2002 = vmatprep.subr.mxu0 0.0
    %2003 = vmatpush1.msra.mxu0 0.0
    %2004 = vmatprep.subr.mxu0 0.0
    %2005 = vmatpush1.msra.mxu0 0.0
    %2006 = vmatprep.subr.mxu0 0.0
    %2007 = vmatpush1.msra.mxu0 0.0
    %2008 = vmatprep.subr.mxu0 0.0
    %2009 = vmatpush1.msra.mxu0 0.0
    %2010 = vmatprep.subr.mxu0 0.0
    %2011 = vmatpush1.msra.mxu0 0.0
    %2012 = vmatprep.subr.mxu0 0.0
    %2013 = vmatpush1.msra.mxu0 0.0
    %2014 = vmatprep.subr.mxu0 0.0
    %2015 = vmatpush1.msra.mxu0 0.0
    %2016 = vmatprep.subr.mxu0 0.0
    %2017 = vmatpush1.msra.mxu0 0.0
    %2018 = vmatprep.subr.mxu0 0.0
    %2019 = vmatpush1.msra.mxu0 0.0
    %2020 = vmatprep.subr.mxu0 0.0
    %2021 = vmatpush1.msra.mxu0 0.0
    %2022 = vmatprep.mubr.f32.mxu0 0.0
    %2023 = vmatmul.mubr.f32.gmra.mrb[0].mxu0 %v1956
    %v2024 = vpop.f32.mrb[0].mxu0
    %v2025 = vadd.f32 %v1950, %v2024
    %v2026 = vpop.f32.mrb[0].mxu0
    %2027 = vdwg.mxu0
    %v2028 = vadd.f32 %v2025, %v365
    %v2029 = vxor.u32 %v2028, 2147483648
    %v2030 = vmul.f32 %v2029, 1.442695
    %v2031 = vpow.pop %v2030
    %v2032 = vadd.f32 %v2031, 1.0
    %v2033 = vrcp.pop %v2032
    %v2034 = vmul.f32 1.0, %v2033
    %v2035 = vmul.f32 %v2034, 2.0
    %v2036 = vsub.f32 %v2035, 1.0
    %v2037 = vmul.f32 %v2034, %v1770
    %2039 = vrot.lane.b32.xlu0 %v2036, 64
    %v2040 = vpop.permute.xlu0 %2039
    %v2042 = vmul.f32 %v2034, %v2040
    %2044 = vrot.lane.b32.xlu0 %v2042, 32
    %v2045 = vpop.permute.xlu0 %2044
    %v2047 = vadd.f32 %v2037, %v2045
    %v2048 = vtanh.pop %v2047
    %2050 = vrot.lane.b32.xlu0 %v2048, 64
    %v2051 = vpop.permute.xlu0 %2050
    %v2053 = vmul.f32 %v2034, %v2051
    %2055 = vrot.lane.b32.xlu0 %v2053, 32
    %v2056 = vpop.permute.xlu0 %2055
    %s2058 = scalar_lea.vmem [#allocation2], 48
    %2059 = vst.msk [vmem:[%s2058] sm:$0xff] %vm116, %v2056
    %s2060 = scalar_lea.vmem [#allocation4], 56
    %v2061 = vld [vmem:[%s2060] sm:$0xff]
    %2062 = vmatprep.subr.mxu0 0.0
    %2063 = vmatpush1.msra.mxu0 %v102
    %2064 = vmatprep.subr.mxu0 0.0
    %2065 = vmatpush1.msra.mxu0 %v103
    %2066 = vmatprep.subr.mxu0 0.0
    %2067 = vmatpush1.msra.mxu0 %v104
    %2068 = vmatprep.subr.mxu0 0.0
    %2069 = vmatpush1.msra.mxu0 %v105
    %2070 = vmatprep.subr.mxu0 0.0
    %2071 = vmatpush1.msra.mxu0 0.0
    %2072 = vmatprep.subr.mxu0 0.0
    %2073 = vmatpush1.msra.mxu0 0.0
    %2074 = vmatprep.subr.mxu0 0.0
    %2075 = vmatpush1.msra.mxu0 0.0
    %2076 = vmatprep.subr.mxu0 0.0
    %2077 = vmatpush1.msra.mxu0 0.0
    %2078 = vmatprep.subr.mxu0 0.0
    %2079 = vmatpush1.msra.mxu0 0.0
    %2080 = vmatprep.subr.mxu0 0.0
    %2081 = vmatpush1.msra.mxu0 0.0
    %2082 = vmatprep.subr.mxu0 0.0
    %2083 = vmatpush1.msra.mxu0 0.0
    %2084 = vmatprep.subr.mxu0 0.0
    %2085 = vmatpush1.msra.mxu0 0.0
    %2086 = vmatprep.subr.mxu0 0.0
    %2087 = vmatpush1.msra.mxu0 0.0
    %2088 = vmatprep.subr.mxu0 0.0
    %2089 = vmatpush1.msra.mxu0 0.0
    %2090 = vmatprep.subr.mxu0 0.0
    %2091 = vmatpush1.msra.mxu0 0.0
    %2092 = vmatprep.subr.mxu0 0.0
    %2093 = vmatpush1.msra.mxu0 0.0
    %2094 = vmatprep.subr.mxu0 0.0
    %2095 = vmatpush1.msra.mxu0 0.0
    %2096 = vmatprep.subr.mxu0 0.0
    %2097 = vmatpush1.msra.mxu0 0.0
    %2098 = vmatprep.subr.mxu0 0.0
    %2099 = vmatpush1.msra.mxu0 0.0
    %2100 = vmatprep.subr.mxu0 0.0
    %2101 = vmatpush1.msra.mxu0 0.0
    %2102 = vmatprep.subr.mxu0 0.0
    %2103 = vmatpush1.msra.mxu0 0.0
    %2104 = vmatprep.subr.mxu0 0.0
    %2105 = vmatpush1.msra.mxu0 0.0
    %2106 = vmatprep.subr.mxu0 0.0
    %2107 = vmatpush1.msra.mxu0 0.0
    %2108 = vmatprep.subr.mxu0 0.0
    %2109 = vmatpush1.msra.mxu0 0.0
    %2110 = vmatprep.subr.mxu0 0.0
    %2111 = vmatpush1.msra.mxu0 0.0
    %2112 = vmatprep.subr.mxu0 0.0
    %2113 = vmatpush1.msra.mxu0 0.0
    %2114 = vmatprep.subr.mxu0 0.0
    %2115 = vmatpush1.msra.mxu0 0.0
    %2116 = vmatprep.subr.mxu0 0.0
    %2117 = vmatpush1.msra.mxu0 0.0
    %2118 = vmatprep.subr.mxu0 0.0
    %2119 = vmatpush1.msra.mxu0 0.0
    %2120 = vmatprep.subr.mxu0 0.0
    %2121 = vmatpush1.msra.mxu0 0.0
    %2122 = vmatprep.subr.mxu0 0.0
    %2123 = vmatpush1.msra.mxu0 0.0
    %2124 = vmatprep.subr.mxu0 0.0
    %2125 = vmatpush1.msra.mxu0 0.0
    %2126 = vmatprep.mubr.f32.mxu0 0.0
    %2127 = vmatmul.mubr.f32.gmra.mrb[0].mxu0 %v1956
    %v2128 = vpop.f32.mrb[0].mxu0
    %v2129 = vadd.f32 0.0, %v2128
    %v2130 = vpop.f32.mrb[0].mxu0
    %2131 = vdwg.mxu0
    %v2132 = vadd.f32 %v2061, %v2129
    %v2133 = vxor.u32 %v2132, 2147483648
    %v2134 = vmul.f32 %v2133, 1.442695
    %v2135 = vpow.pop %v2134
    %v2136 = vadd.f32 %v2135, 1.0
    %v2137 = vrcp.pop %v2136
    %v2138 = vmul.f32 1.0, %v2137
    %v2139 = vmul.f32 %v2138, 2.0
    %v2140 = vsub.f32 %v2139, 1.0
    %v2141 = vmul.f32 %v2138, %v1874
    %2143 = vrot.lane.b32.xlu0 %v2140, 64
    %v2144 = vpop.permute.xlu0 %2143
    %v2146 = vmul.f32 %v2138, %v2144
    %2148 = vrot.lane.b32.xlu0 %v2146, 32
    %v2149 = vpop.permute.xlu0 %2148
    %v2151 = vadd.f32 %v2141, %v2149
    %v2152 = vtanh.pop %v2151
    %2154 = vrot.lane.b32.xlu0 %v2152, 64
    %v2155 = vpop.permute.xlu0 %2154
    %v2157 = vmul.f32 %v2138, %v2155
    %v2158 = vsel %vm116, %v2056, 0
    %2160 = vmatprep.subr.mxu0 0.0
    %2161 = vmatpush1.msra.mxu0 %v110
    %2162 = vmatprep.subr.mxu0 0.0
    %2163 = vmatpush1.msra.mxu0 %v111
    %2164 = vmatprep.subr.mxu0 0.0
    %2165 = vmatpush1.msra.mxu0 %v112
    %2166 = vmatprep.subr.mxu0 0.0
    %2167 = vmatpush1.msra.mxu0 %v113
    %2168 = vmatprep.subr.mxu0 0.0
    %2169 = vmatpush1.msra.mxu0 0.0
    %2170 = vmatprep.subr.mxu0 0.0
    %2171 = vmatpush1.msra.mxu0 0.0
    %2172 = vmatprep.subr.mxu0 0.0
    %2173 = vmatpush1.msra.mxu0 0.0
    %2174 = vmatprep.subr.mxu0 0.0
    %2175 = vmatpush1.msra.mxu0 0.0
    %2176 = vmatprep.subr.mxu0 0.0
    %2177 = vmatpush1.msra.mxu0 0.0
    %2178 = vmatprep.subr.mxu0 0.0
    %2179 = vmatpush1.msra.mxu0 0.0
    %2180 = vmatprep.subr.mxu0 0.0
    %2181 = vmatpush1.msra.mxu0 0.0
    %2182 = vmatprep.subr.mxu0 0.0
    %2183 = vmatpush1.msra.mxu0 0.0
    %2184 = vmatprep.subr.mxu0 0.0
    %2185 = vmatpush1.msra.mxu0 0.0
    %2186 = vmatprep.subr.mxu0 0.0
    %2187 = vmatpush1.msra.mxu0 0.0
    %2188 = vmatprep.subr.mxu0 0.0
    %2189 = vmatpush1.msra.mxu0 0.0
    %2190 = vmatprep.subr.mxu0 0.0
    %2191 = vmatpush1.msra.mxu0 0.0
    %2192 = vmatprep.subr.mxu0 0.0
    %2193 = vmatpush1.msra.mxu0 0.0
    %2194 = vmatprep.subr.mxu0 0.0
    %2195 = vmatpush1.msra.mxu0 0.0
    %2196 = vmatprep.subr.mxu0 0.0
    %2197 = vmatpush1.msra.mxu0 0.0
    %2198 = vmatprep.subr.mxu0 0.0
    %2199 = vmatpush1.msra.mxu0 0.0
    %2200 = vmatprep.subr.mxu0 0.0
    %2201 = vmatpush1.msra.mxu0 0.0
    %2202 = vmatprep.subr.mxu0 0.0
    %2203 = vmatpush1.msra.mxu0 0.0
    %2204 = vmatprep.subr.mxu0 0.0
    %2205 = vmatpush1.msra.mxu0 0.0
    %2206 = vmatprep.subr.mxu0 0.0
    %2207 = vmatpush1.msra.mxu0 0.0
    %2208 = vmatprep.subr.mxu0 0.0
    %2209 = vmatpush1.msra.mxu0 0.0
    %2210 = vmatprep.subr.mxu0 0.0
    %2211 = vmatpush1.msra.mxu0 0.0
    %2212 = vmatprep.subr.mxu0 0.0
    %2213 = vmatpush1.msra.mxu0 0.0
    %2214 = vmatprep.subr.mxu0 0.0
    %2215 = vmatpush1.msra.mxu0 0.0
    %2216 = vmatprep.subr.mxu0 0.0
    %2217 = vmatpush1.msra.mxu0 0.0
    %2218 = vmatprep.subr.mxu0 0.0
    %2219 = vmatpush1.msra.mxu0 0.0
    %2220 = vmatprep.subr.mxu0 0.0
    %2221 = vmatpush1.msra.mxu0 0.0
    %2222 = vmatprep.subr.mxu0 0.0
    %2223 = vmatpush1.msra.mxu0 0.0
    %2224 = vmatprep.mubr.f32.mxu0 0.0
    %2225 = vmatmul.mubr.f32.gmra.mrb[0].mxu0 %v2158
    %v2226 = vpop.f32.mrb[0].mxu0
    %v2227 = vadd.f32 0.0, %v2226
    %v2228 = vpop.f32.mrb[0].mxu0
    %2229 = vdwg.mxu0
    %2231 = vrot.lane.b32.xlu0 %v2157, 32
    %v2232 = vpop.permute.xlu0 %2231
    %v2233 = vsel %vm116, %v2232, 0
    %2235 = vmatprep.subr.mxu0 0.0
    %2236 = vmatpush1.msra.mxu0 %v106
    %2237 = vmatprep.subr.mxu0 0.0
    %2238 = vmatpush1.msra.mxu0 %v107
    %2239 = vmatprep.subr.mxu0 0.0
    %2240 = vmatpush1.msra.mxu0 %v108
    %2241 = vmatprep.subr.mxu0 0.0
    %2242 = vmatpush1.msra.mxu0 %v109
    %2243 = vmatprep.subr.mxu0 0.0
    %2244 = vmatpush1.msra.mxu0 0.0
    %2245 = vmatprep.subr.mxu0 0.0
    %2246 = vmatpush1.msra.mxu0 0.0
    %2247 = vmatprep.subr.mxu0 0.0
    %2248 = vmatpush1.msra.mxu0 0.0
    %2249 = vmatprep.subr.mxu0 0.0
    %2250 = vmatpush1.msra.mxu0 0.0
    %2251 = vmatprep.subr.mxu0 0.0
    %2252 = vmatpush1.msra.mxu0 0.0
    %2253 = vmatprep.subr.mxu0 0.0
    %2254 = vmatpush1.msra.mxu0 0.0
    %2255 = vmatprep.subr.mxu0 0.0
    %2256 = vmatpush1.msra.mxu0 0.0
    %2257 = vmatprep.subr.mxu0 0.0
    %2258 = vmatpush1.msra.mxu0 0.0
    %2259 = vmatprep.subr.mxu0 0.0
    %2260 = vmatpush1.msra.mxu0 0.0
    %2261 = vmatprep.subr.mxu0 0.0
    %2262 = vmatpush1.msra.mxu0 0.0
    %2263 = vmatprep.subr.mxu0 0.0
    %2264 = vmatpush1.msra.mxu0 0.0
    %2265 = vmatprep.subr.mxu0 0.0
    %2266 = vmatpush1.msra.mxu0 0.0
    %2267 = vmatprep.subr.mxu0 0.0
    %2268 = vmatpush1.msra.mxu0 0.0
    %2269 = vmatprep.subr.mxu0 0.0
    %2270 = vmatpush1.msra.mxu0 0.0
    %2271 = vmatprep.subr.mxu0 0.0
    %2272 = vmatpush1.msra.mxu0 0.0
    %2273 = vmatprep.subr.mxu0 0.0
    %2274 = vmatpush1.msra.mxu0 0.0
    %2275 = vmatprep.subr.mxu0 0.0
    %2276 = vmatpush1.msra.mxu0 0.0
    %2277 = vmatprep.subr.mxu0 0.0
    %2278 = vmatpush1.msra.mxu0 0.0
    %2279 = vmatprep.subr.mxu0 0.0
    %2280 = vmatpush1.msra.mxu0 0.0
    %2281 = vmatprep.subr.mxu0 0.0
    %2282 = vmatpush1.msra.mxu0 0.0
    %2283 = vmatprep.subr.mxu0 0.0
    %2284 = vmatpush1.msra.mxu0 0.0
    %2285 = vmatprep.subr.mxu0 0.0
    %2286 = vmatpush1.msra.mxu0 0.0
    %2287 = vmatprep.subr.mxu0 0.0
    %2288 = vmatpush1.msra.mxu0 0.0
    %2289 = vmatprep.subr.mxu0 0.0
    %2290 = vmatpush1.msra.mxu0 0.0
    %2291 = vmatprep.subr.mxu0 0.0
    %2292 = vmatpush1.msra.mxu0 0.0
    %2293 = vmatprep.subr.mxu0 0.0
    %2294 = vmatpush1.msra.mxu0 0.0
    %2295 = vmatprep.subr.mxu0 0.0
    %2296 = vmatpush1.msra.mxu0 0.0
    %2297 = vmatprep.subr.mxu0 0.0
    %2298 = vmatpush1.msra.mxu0 0.0
    %2299 = vmatprep.mubr.f32.mxu0 0.0
    %2300 = vmatmul.mubr.f32.gmra.mrb[0].mxu0 %v2233
    %v2301 = vpop.f32.mrb[0].mxu0
    %v2302 = vadd.f32 %v2227, %v2301
    %v2303 = vpop.f32.mrb[0].mxu0
    %2304 = vdwg.mxu0
    %v2305 = vadd.f32 %v2302, %v365
    %v2306 = vxor.u32 %v2305, 2147483648
    %v2307 = vmul.f32 %v2306, 1.442695
    %v2308 = vpow.pop %v2307
    %v2309 = vadd.f32 %v2308, 1.0
    %v2310 = vrcp.pop %v2309
    %v2311 = vmul.f32 1.0, %v2310
    %v2312 = vmul.f32 %v2311, 2.0
    %v2313 = vsub.f32 %v2312, 1.0
    %v2314 = vmul.f32 %v2311, %v2047
    %2316 = vrot.lane.b32.xlu0 %v2313, 64
    %v2317 = vpop.permute.xlu0 %2316
    %v2319 = vmul.f32 %v2311, %v2317
    %2321 = vrot.lane.b32.xlu0 %v2319, 32
    %v2322 = vpop.permute.xlu0 %2321
    %v2324 = vadd.f32 %v2314, %v2322
    %v2325 = vtanh.pop %v2324
    %2327 = vrot.lane.b32.xlu0 %v2325, 64
    %v2328 = vpop.permute.xlu0 %2327
    %v2330 = vmul.f32 %v2311, %v2328
    %2332 = vrot.lane.b32.xlu0 %v2330, 32
    %v2333 = vpop.permute.xlu0 %2332
    %s2335 = scalar_lea.vmem [#allocation2], 56
    %2336 = vst.msk [vmem:[%s2335] sm:$0xff] %vm116, %v2333
    %v2337 = vld [vmem:[#allocation11] sm:$0xff]
    %v2338 = vld [vmem:[#allocation11 + $0x8] sm:$0xff]
    %v2339 = vld [vmem:[#allocation11 + $0x10] sm:$0xff]
    %v2340 = vld [vmem:[#allocation11 + $0x18] sm:$0xff]
    %v2341 = vld [vmem:[%s6] sm:$0x1]
    %v2342 = vsel %vm116, %v2333, 0
    %2344 = vmatprep.subr.mxu0 0.0
    %2345 = vmatpush1.msra.mxu0 %v2337
    %2346 = vmatprep.subr.mxu0 0.0
    %2347 = vmatpush1.msra.mxu0 %v2338
    %2348 = vmatprep.subr.mxu0 0.0
    %2349 = vmatpush1.msra.mxu0 %v2339
    %2350 = vmatprep.subr.mxu0 0.0
    %2351 = vmatpush1.msra.mxu0 %v2340
    %2352 = vmatprep.subr.mxu0 0.0
    %2353 = vmatpush1.msra.mxu0 0.0
    %2354 = vmatprep.subr.mxu0 0.0
    %2355 = vmatpush1.msra.mxu0 0.0
    %2356 = vmatprep.subr.mxu0 0.0
    %2357 = vmatpush1.msra.mxu0 0.0
    %2358 = vmatprep.subr.mxu0 0.0
    %2359 = vmatpush1.msra.mxu0 0.0
    %2360 = vmatprep.subr.mxu0 0.0
    %2361 = vmatpush1.msra.mxu0 0.0
    %2362 = vmatprep.subr.mxu0 0.0
    %2363 = vmatpush1.msra.mxu0 0.0
    %2364 = vmatprep.subr.mxu0 0.0
    %2365 = vmatpush1.msra.mxu0 0.0
    %2366 = vmatprep.subr.mxu0 0.0
    %2367 = vmatpush1.msra.mxu0 0.0
    %2368 = vmatprep.subr.mxu0 0.0
    %2369 = vmatpush1.msra.mxu0 0.0
    %2370 = vmatprep.subr.mxu0 0.0
    %2371 = vmatpush1.msra.mxu0 0.0
    %2372 = vmatprep.subr.mxu0 0.0
    %2373 = vmatpush1.msra.mxu0 0.0
    %2374 = vmatprep.subr.mxu0 0.0
    %2375 = vmatpush1.msra.mxu0 0.0
    %2376 = vmatprep.subr.mxu0 0.0
    %2377 = vmatpush1.msra.mxu0 0.0
    %2378 = vmatprep.subr.mxu0 0.0
    %2379 = vmatpush1.msra.mxu0 0.0
    %2380 = vmatprep.subr.mxu0 0.0
    %2381 = vmatpush1.msra.mxu0 0.0
    %2382 = vmatprep.subr.mxu0 0.0
    %2383 = vmatpush1.msra.mxu0 0.0
    %2384 = vmatprep.subr.mxu0 0.0
    %2385 = vmatpush1.msra.mxu0 0.0
    %2386 = vmatprep.subr.mxu0 0.0
    %2387 = vmatpush1.msra.mxu0 0.0
    %2388 = vmatprep.subr.mxu0 0.0
    %2389 = vmatpush1.msra.mxu0 0.0
    %2390 = vmatprep.subr.mxu0 0.0
    %2391 = vmatpush1.msra.mxu0 0.0
    %2392 = vmatprep.subr.mxu0 0.0
    %2393 = vmatpush1.msra.mxu0 0.0
    %2394 = vmatprep.subr.mxu0 0.0
    %2395 = vmatpush1.msra.mxu0 0.0
    %2396 = vmatprep.subr.mxu0 0.0
    %2397 = vmatpush1.msra.mxu0 0.0
    %2398 = vmatprep.subr.mxu0 0.0
    %2399 = vmatpush1.msra.mxu0 0.0
    %2400 = vmatprep.subr.mxu0 0.0
    %2401 = vmatpush1.msra.mxu0 0.0
    %2402 = vmatprep.subr.mxu0 0.0
    %2403 = vmatpush1.msra.mxu0 0.0
    %2404 = vmatprep.subr.mxu0 0.0
    %2405 = vmatpush1.msra.mxu0 0.0
    %2406 = vmatprep.subr.mxu0 0.0
    %2407 = vmatpush1.msra.mxu0 0.0
    %2408 = vmatprep.mubr.f32.mxu0 0.0
    %2409 = vmatmul.mubr.f32.gmra.mrb[0].mxu0 %v2342
    %v2410 = vpop.f32.mrb[0].mxu0
    %v2411 = vadd.f32 0.0, %v2410
    %v2412 = vpop.f32.mrb[0].mxu0
    %2413 = vdwg.mxu0
    %2414 = vmatprep.subr.mxu0 0.0
    %2415 = vmatpush1.msra.mxu0 %v102
    %2416 = vmatprep.subr.mxu0 0.0
    %2417 = vmatpush1.msra.mxu0 %v103
    %2418 = vmatprep.subr.mxu0 0.0
    %2419 = vmatpush1.msra.mxu0 %v104
    %2420 = vmatprep.subr.mxu0 0.0
    %2421 = vmatpush1.msra.mxu0 %v105
    %2422 = vmatprep.subr.mxu0 0.0
    %2423 = vmatpush1.msra.mxu0 0.0
    %2424 = vmatprep.subr.mxu0 0.0
    %2425 = vmatpush1.msra.mxu0 0.0
    %2426 = vmatprep.subr.mxu0 0.0
    %2427 = vmatpush1.msra.mxu0 0.0
    %2428 = vmatprep.subr.mxu0 0.0
    %2429 = vmatpush1.msra.mxu0 0.0
    %2430 = vmatprep.subr.mxu0 0.0
    %2431 = vmatpush1.msra.mxu0 0.0
    %2432 = vmatprep.subr.mxu0 0.0
    %2433 = vmatpush1.msra.mxu0 0.0
    %2434 = vmatprep.subr.mxu0 0.0
    %2435 = vmatpush1.msra.mxu0 0.0
    %2436 = vmatprep.subr.mxu0 0.0
    %2437 = vmatpush1.msra.mxu0 0.0
    %2438 = vmatprep.subr.mxu0 0.0
    %2439 = vmatpush1.msra.mxu0 0.0
    %2440 = vmatprep.subr.mxu0 0.0
    %2441 = vmatpush1.msra.mxu0 0.0
    %2442 = vmatprep.subr.mxu0 0.0
    %2443 = vmatpush1.msra.mxu0 0.0
    %2444 = vmatprep.subr.mxu0 0.0
    %2445 = vmatpush1.msra.mxu0 0.0
    %2446 = vmatprep.subr.mxu0 0.0
    %2447 = vmatpush1.msra.mxu0 0.0
    %2448 = vmatprep.subr.mxu0 0.0
    %2449 = vmatpush1.msra.mxu0 0.0
    %2450 = vmatprep.subr.mxu0 0.0
    %2451 = vmatpush1.msra.mxu0 0.0
    %2452 = vmatprep.subr.mxu0 0.0
    %2453 = vmatpush1.msra.mxu0 0.0
    %2454 = vmatprep.subr.mxu0 0.0
    %2455 = vmatpush1.msra.mxu0 0.0
    %2456 = vmatprep.subr.mxu0 0.0
    %2457 = vmatpush1.msra.mxu0 0.0
    %2458 = vmatprep.subr.mxu0 0.0
    %2459 = vmatpush1.msra.mxu0 0.0
    %2460 = vmatprep.subr.mxu0 0.0
    %2461 = vmatpush1.msra.mxu0 0.0
    %2462 = vmatprep.subr.mxu0 0.0
    %2463 = vmatpush1.msra.mxu0 0.0
    %2464 = vmatprep.subr.mxu0 0.0
    %2465 = vmatpush1.msra.mxu0 0.0
    %2466 = vmatprep.subr.mxu0 0.0
    %2467 = vmatpush1.msra.mxu0 0.0
    %2468 = vmatprep.subr.mxu0 0.0
    %2469 = vmatpush1.msra.mxu0 0.0
    %2470 = vmatprep.subr.mxu0 0.0
    %2471 = vmatpush1.msra.mxu0 0.0
    %2472 = vmatprep.subr.mxu0 0.0
    %2473 = vmatpush1.msra.mxu0 0.0
    %2474 = vmatprep.subr.mxu0 0.0
    %2475 = vmatpush1.msra.mxu0 0.0
    %2476 = vmatprep.subr.mxu0 0.0
    %2477 = vmatpush1.msra.mxu0 0.0
    %2478 = vmatprep.mubr.f32.mxu0 0.0
    %2479 = vmatmul.mubr.f32.gmra.mrb[0].mxu0 %v2233
    %v2480 = vpop.f32.mrb[0].mxu0
    %v2481 = vadd.f32 %v2411, %v2480
    %v2482 = vpop.f32.mrb[0].mxu0
    %2483 = vdwg.mxu0
    %v2485 = vlaneseq
    %v2486 = vshrl.u32 %v2485, 7
    %v2487 = vsub.s32 0, %v2486
    %v2488 = vrot.slane %v2341, %v2487
    %v2490 = vadd.f32 %v2481, %v2488
    %v2491 = vxor.u32 %v2490, 2147483648
    %v2492 = vmul.f32 %v2491, 1.442695
    %v2493 = vpow.pop %v2492
    %v2494 = vadd.f32 %v2493, 1.0
    %v2495 = vrcp.pop %v2494
    %v2496 = vmul.f32 1.0, %v2495
    %v2497 = vmul.f32 %v2496, 2.0
    %v2498 = vsub.f32 %v2497, 1.0
    %v2499 = vmul.f32 %v2496, %v2151
    %2501 = vrot.lane.b32.xlu0 %v2498, 64
    %v2502 = vpop.permute.xlu0 %2501
    %v2504 = vmul.f32 %v2496, %v2502
    %2506 = vrot.lane.b32.xlu0 %v2504, 32
    %v2507 = vpop.permute.xlu0 %2506
    %v2509 = vadd.f32 %v2499, %v2507
    %v2510 = vtanh.pop %v2509
    %2512 = vrot.lane.b32.xlu0 %v2510, 64
    %v2513 = vpop.permute.xlu0 %2512
    %v2515 = vmul.f32 %v2496, %v2513
    %2516 = vmatprep.subr.mxu0 0.0
    %2517 = vmatpush1.msra.mxu0 %v110
    %2518 = vmatprep.subr.mxu0 0.0
    %2519 = vmatpush1.msra.mxu0 %v111
    %2520 = vmatprep.subr.mxu0 0.0
    %2521 = vmatpush1.msra.mxu0 %v112
    %2522 = vmatprep.subr.mxu0 0.0
    %2523 = vmatpush1.msra.mxu0 %v113
    %2524 = vmatprep.subr.mxu0 0.0
    %2525 = vmatpush1.msra.mxu0 0.0
    %2526 = vmatprep.subr.mxu0 0.0
    %2527 = vmatpush1.msra.mxu0 0.0
    %2528 = vmatprep.subr.mxu0 0.0
    %2529 = vmatpush1.msra.mxu0 0.0
    %2530 = vmatprep.subr.mxu0 0.0
    %2531 = vmatpush1.msra.mxu0 0.0
    %2532 = vmatprep.subr.mxu0 0.0
    %2533 = vmatpush1.msra.mxu0 0.0
    %2534 = vmatprep.subr.mxu0 0.0
    %2535 = vmatpush1.msra.mxu0 0.0
    %2536 = vmatprep.subr.mxu0 0.0
    %2537 = vmatpush1.msra.mxu0 0.0
    %2538 = vmatprep.subr.mxu0 0.0
    %2539 = vmatpush1.msra.mxu0 0.0
    %2540 = vmatprep.subr.mxu0 0.0
    %2541 = vmatpush1.msra.mxu0 0.0
    %2542 = vmatprep.subr.mxu0 0.0
    %2543 = vmatpush1.msra.mxu0 0.0
    %2544 = vmatprep.subr.mxu0 0.0
    %2545 = vmatpush1.msra.mxu0 0.0
    %2546 = vmatprep.subr.mxu0 0.0
    %2547 = vmatpush1.msra.mxu0 0.0
    %2548 = vmatprep.subr.mxu0 0.0
    %2549 = vmatpush1.msra.mxu0 0.0
    %2550 = vmatprep.subr.mxu0 0.0
    %2551 = vmatpush1.msra.mxu0 0.0
    %2552 = vmatprep.subr.mxu0 0.0
    %2553 = vmatpush1.msra.mxu0 0.0
    %2554 = vmatprep.subr.mxu0 0.0
    %2555 = vmatpush1.msra.mxu0 0.0
    %2556 = vmatprep.subr.mxu0 0.0
    %2557 = vmatpush1.msra.mxu0 0.0
    %2558 = vmatprep.subr.mxu0 0.0
    %2559 = vmatpush1.msra.mxu0 0.0
    %2560 = vmatprep.subr.mxu0 0.0
    %2561 = vmatpush1.msra.mxu0 0.0
    %2562 = vmatprep.subr.mxu0 0.0
    %2563 = vmatpush1.msra.mxu0 0.0
    %2564 = vmatprep.subr.mxu0 0.0
    %2565 = vmatpush1.msra.mxu0 0.0
    %2566 = vmatprep.subr.mxu0 0.0
    %2567 = vmatpush1.msra.mxu0 0.0
    %2568 = vmatprep.subr.mxu0 0.0
    %2569 = vmatpush1.msra.mxu0 0.0
    %2570 = vmatprep.subr.mxu0 0.0
    %2571 = vmatpush1.msra.mxu0 0.0
    %2572 = vmatprep.subr.mxu0 0.0
    %2573 = vmatpush1.msra.mxu0 0.0
    %2574 = vmatprep.subr.mxu0 0.0
    %2575 = vmatpush1.msra.mxu0 0.0
    %2576 = vmatprep.subr.mxu0 0.0
    %2577 = vmatpush1.msra.mxu0 0.0
    %2578 = vmatprep.subr.mxu0 0.0
    %2579 = vmatpush1.msra.mxu0 0.0
    %2580 = vmatprep.mubr.f32.mxu0 0.0
    %2581 = vmatmul.mubr.f32.gmra.mrb[0].mxu0 %v2342
    %v2582 = vpop.f32.mrb[0].mxu0
    %v2583 = vadd.f32 0.0, %v2582
    %v2584 = vpop.f32.mrb[0].mxu0
    %2585 = vdwg.mxu0
    %2587 = vrot.lane.b32.xlu0 %v2515, 32
    %v2588 = vpop.permute.xlu0 %2587
    %v2589 = vsel %vm116, %v2588, 0
    %2591 = vmatprep.subr.mxu0 0.0
    %2592 = vmatpush1.msra.mxu0 %v106
    %2593 = vmatprep.subr.mxu0 0.0
    %2594 = vmatpush1.msra.mxu0 %v107
    %2595 = vmatprep.subr.mxu0 0.0
    %2596 = vmatpush1.msra.mxu0 %v108
    %2597 = vmatprep.subr.mxu0 0.0
    %2598 = vmatpush1.msra.mxu0 %v109
    %2599 = vmatprep.subr.mxu0 0.0
    %2600 = vmatpush1.msra.mxu0 0.0
    %2601 = vmatprep.subr.mxu0 0.0
    %2602 = vmatpush1.msra.mxu0 0.0
    %2603 = vmatprep.subr.mxu0 0.0
    %2604 = vmatpush1.msra.mxu0 0.0
    %2605 = vmatprep.subr.mxu0 0.0
    %2606 = vmatpush1.msra.mxu0 0.0
    %2607 = vmatprep.subr.mxu0 0.0
    %2608 = vmatpush1.msra.mxu0 0.0
    %2609 = vmatprep.subr.mxu0 0.0
    %2610 = vmatpush1.msra.mxu0 0.0
    %2611 = vmatprep.subr.mxu0 0.0
    %2612 = vmatpush1.msra.mxu0 0.0
    %2613 = vmatprep.subr.mxu0 0.0
    %2614 = vmatpush1.msra.mxu0 0.0
    %2615 = vmatprep.subr.mxu0 0.0
    %2616 = vmatpush1.msra.mxu0 0.0
    %2617 = vmatprep.subr.mxu0 0.0
    %2618 = vmatpush1.msra.mxu0 0.0
    %2619 = vmatprep.subr.mxu0 0.0
    %2620 = vmatpush1.msra.mxu0 0.0
    %2621 = vmatprep.subr.mxu0 0.0
    %2622 = vmatpush1.msra.mxu0 0.0
    %2623 = vmatprep.subr.mxu0 0.0
    %2624 = vmatpush1.msra.mxu0 0.0
    %2625 = vmatprep.subr.mxu0 0.0
    %2626 = vmatpush1.msra.mxu0 0.0
    %2627 = vmatprep.subr.mxu0 0.0
    %2628 = vmatpush1.msra.mxu0 0.0
    %2629 = vmatprep.subr.mxu0 0.0
    %2630 = vmatpush1.msra.mxu0 0.0
    %2631 = vmatprep.subr.mxu0 0.0
    %2632 = vmatpush1.msra.mxu0 0.0
    %2633 = vmatprep.subr.mxu0 0.0
    %2634 = vmatpush1.msra.mxu0 0.0
    %2635 = vmatprep.subr.mxu0 0.0
    %2636 = vmatpush1.msra.mxu0 0.0
    %2637 = vmatprep.subr.mxu0 0.0
    %2638 = vmatpush1.msra.mxu0 0.0
    %2639 = vmatprep.subr.mxu0 0.0
    %2640 = vmatpush1.msra.mxu0 0.0
    %2641 = vmatprep.subr.mxu0 0.0
    %2642 = vmatpush1.msra.mxu0 0.0
    %2643 = vmatprep.subr.mxu0 0.0
    %2644 = vmatpush1.msra.mxu0 0.0
    %2645 = vmatprep.subr.mxu0 0.0
    %2646 = vmatpush1.msra.mxu0 0.0
    %2647 = vmatprep.subr.mxu0 0.0
    %2648 = vmatpush1.msra.mxu0 0.0
    %2649 = vmatprep.subr.mxu0 0.0
    %2650 = vmatpush1.msra.mxu0 0.0
    %2651 = vmatprep.subr.mxu0 0.0
    %2652 = vmatpush1.msra.mxu0 0.0
    %2653 = vmatprep.subr.mxu0 0.0
    %2654 = vmatpush1.msra.mxu0 0.0
    %2655 = vmatprep.mubr.f32.mxu0 0.0
    %2656 = vmatmul.mubr.f32.gmra.mrb[0].mxu0 %v2589
    %v2657 = vpop.f32.mrb[0].mxu0
    %v2658 = vadd.f32 %v2583, %v2657
    %v2659 = vpop.f32.mrb[0].mxu0
    %2660 = vdwg.mxu0
    %v2661 = vadd.f32 %v2658, %v365
    %v2662 = vxor.u32 %v2661, 2147483648
    %v2663 = vmul.f32 %v2662, 1.442695
    %v2664 = vpow.pop %v2663
    %v2665 = vadd.f32 %v2664, 1.0
    %v2666 = vrcp.pop %v2665
    %v2667 = vmul.f32 1.0, %v2666
    %v2668 = vmul.f32 %v2667, 2.0
    %v2669 = vsub.f32 %v2668, 1.0
    %v2670 = vmul.f32 %v2667, %v2324
    %2672 = vrot.lane.b32.xlu0 %v2669, 64
    %v2673 = vpop.permute.xlu0 %2672
    %v2675 = vmul.f32 %v2667, %v2673
    %2677 = vrot.lane.b32.xlu0 %v2675, 32
    %v2678 = vpop.permute.xlu0 %2677
    %v2680 = vadd.f32 %v2670, %v2678
    %v2681 = vtanh.pop %v2680
    %2683 = vrot.lane.b32.xlu0 %v2681, 64
    %v2684 = vpop.permute.xlu0 %2683
    %v2686 = vmul.f32 %v2667, %v2684
    %2688 = vrot.lane.b32.xlu0 %v2686, 32
    %v2689 = vpop.permute.xlu0 %2688
    %s2691 = scalar_lea.vmem [#allocation2], 64
    %2692 = vst.msk [vmem:[%s2691] sm:$0xff] %vm116, %v2689
    %v2693 = vsel %vm116, %v2689, 0
    %2695 = vmatprep.subr.mxu0 0.0
    %2696 = vmatpush1.msra.mxu0 %v2337
    %2697 = vmatprep.subr.mxu0 0.0
    %2698 = vmatpush1.msra.mxu0 %v2338
    %2699 = vmatprep.subr.mxu0 0.0
    %2700 = vmatpush1.msra.mxu0 %v2339
    %2701 = vmatprep.subr.mxu0 0.0
    %2702 = vmatpush1.msra.mxu0 %v2340
    %2703 = vmatprep.subr.mxu0 0.0
    %2704 = vmatpush1.msra.mxu0 0.0
    %2705 = vmatprep.subr.mxu0 0.0
    %2706 = vmatpush1.msra.mxu0 0.0
    %2707 = vmatprep.subr.mxu0 0.0
    %2708 = vmatpush1.msra.mxu0 0.0
    %2709 = vmatprep.subr.mxu0 0.0
    %2710 = vmatpush1.msra.mxu0 0.0
    %2711 = vmatprep.subr.mxu0 0.0
    %2712 = vmatpush1.msra.mxu0 0.0
    %2713 = vmatprep.subr.mxu0 0.0
    %2714 = vmatpush1.msra.mxu0 0.0
    %2715 = vmatprep.subr.mxu0 0.0
    %2716 = vmatpush1.msra.mxu0 0.0
    %2717 = vmatprep.subr.mxu0 0.0
    %2718 = vmatpush1.msra.mxu0 0.0
    %2719 = vmatprep.subr.mxu0 0.0
    %2720 = vmatpush1.msra.mxu0 0.0
    %2721 = vmatprep.subr.mxu0 0.0
    %2722 = vmatpush1.msra.mxu0 0.0
    %2723 = vmatprep.subr.mxu0 0.0
    %2724 = vmatpush1.msra.mxu0 0.0
    %2725 = vmatprep.subr.mxu0 0.0
    %2726 = vmatpush1.msra.mxu0 0.0
    %2727 = vmatprep.subr.mxu0 0.0
    %2728 = vmatpush1.msra.mxu0 0.0
    %2729 = vmatprep.subr.mxu0 0.0
    %2730 = vmatpush1.msra.mxu0 0.0
    %2731 = vmatprep.subr.mxu0 0.0
    %2732 = vmatpush1.msra.mxu0 0.0
    %2733 = vmatprep.subr.mxu0 0.0
    %2734 = vmatpush1.msra.mxu0 0.0
    %2735 = vmatprep.subr.mxu0 0.0
    %2736 = vmatpush1.msra.mxu0 0.0
    %2737 = vmatprep.subr.mxu0 0.0
    %2738 = vmatpush1.msra.mxu0 0.0
    %2739 = vmatprep.subr.mxu0 0.0
    %2740 = vmatpush1.msra.mxu0 0.0
    %2741 = vmatprep.subr.mxu0 0.0
    %2742 = vmatpush1.msra.mxu0 0.0
    %2743 = vmatprep.subr.mxu0 0.0
    %2744 = vmatpush1.msra.mxu0 0.0
    %2745 = vmatprep.subr.mxu0 0.0
    %2746 = vmatpush1.msra.mxu0 0.0
    %2747 = vmatprep.subr.mxu0 0.0
    %2748 = vmatpush1.msra.mxu0 0.0
    %2749 = vmatprep.subr.mxu0 0.0
    %2750 = vmatpush1.msra.mxu0 0.0
    %2751 = vmatprep.subr.mxu0 0.0
    %2752 = vmatpush1.msra.mxu0 0.0
    %2753 = vmatprep.subr.mxu0 0.0
    %2754 = vmatpush1.msra.mxu0 0.0
    %2755 = vmatprep.subr.mxu0 0.0
    %2756 = vmatpush1.msra.mxu0 0.0
    %2757 = vmatprep.subr.mxu0 0.0
    %2758 = vmatpush1.msra.mxu0 0.0
    %2759 = vmatprep.mubr.f32.mxu0 0.0
    %2760 = vmatmul.mubr.f32.gmra.mrb[0].mxu0 %v2693
    %v2761 = vpop.f32.mrb[0].mxu0
    %v2762 = vadd.f32 0.0, %v2761
    %v2763 = vpop.f32.mrb[0].mxu0
    %2764 = vdwg.mxu0
    %2765 = vmatprep.subr.mxu0 0.0
    %2766 = vmatpush1.msra.mxu0 %v102
    %2767 = vmatprep.subr.mxu0 0.0
    %2768 = vmatpush1.msra.mxu0 %v103
    %2769 = vmatprep.subr.mxu0 0.0
    %2770 = vmatpush1.msra.mxu0 %v104
    %2771 = vmatprep.subr.mxu0 0.0
    %2772 = vmatpush1.msra.mxu0 %v105
    %2773 = vmatprep.subr.mxu0 0.0
    %2774 = vmatpush1.msra.mxu0 0.0
    %2775 = vmatprep.subr.mxu0 0.0
    %2776 = vmatpush1.msra.mxu0 0.0
    %2777 = vmatprep.subr.mxu0 0.0
    %2778 = vmatpush1.msra.mxu0 0.0
    %2779 = vmatprep.subr.mxu0 0.0
    %2780 = vmatpush1.msra.mxu0 0.0
    %2781 = vmatprep.subr.mxu0 0.0
    %2782 = vmatpush1.msra.mxu0 0.0
    %2783 = vmatprep.subr.mxu0 0.0
    %2784 = vmatpush1.msra.mxu0 0.0
    %2785 = vmatprep.subr.mxu0 0.0
    %2786 = vmatpush1.msra.mxu0 0.0
    %2787 = vmatprep.subr.mxu0 0.0
    %2788 = vmatpush1.msra.mxu0 0.0
    %2789 = vmatprep.subr.mxu0 0.0
    %2790 = vmatpush1.msra.mxu0 0.0
    %2791 = vmatprep.subr.mxu0 0.0
    %2792 = vmatpush1.msra.mxu0 0.0
    %2793 = vmatprep.subr.mxu0 0.0
    %2794 = vmatpush1.msra.mxu0 0.0
    %2795 = vmatprep.subr.mxu0 0.0
    %2796 = vmatpush1.msra.mxu0 0.0
    %2797 = vmatprep.subr.mxu0 0.0
    %2798 = vmatpush1.msra.mxu0 0.0
    %2799 = vmatprep.subr.mxu0 0.0
    %2800 = vmatpush1.msra.mxu0 0.0
    %2801 = vmatprep.subr.mxu0 0.0
    %2802 = vmatpush1.msra.mxu0 0.0
    %2803 = vmatprep.subr.mxu0 0.0
    %2804 = vmatpush1.msra.mxu0 0.0
    %2805 = vmatprep.subr.mxu0 0.0
    %2806 = vmatpush1.msra.mxu0 0.0
    %2807 = vmatprep.subr.mxu0 0.0
    %2808 = vmatpush1.msra.mxu0 0.0
    %2809 = vmatprep.subr.mxu0 0.0
    %2810 = vmatpush1.msra.mxu0 0.0
    %2811 = vmatprep.subr.mxu0 0.0
    %2812 = vmatpush1.msra.mxu0 0.0
    %2813 = vmatprep.subr.mxu0 0.0
    %2814 = vmatpush1.msra.mxu0 0.0
    %2815 = vmatprep.subr.mxu0 0.0
    %2816 = vmatpush1.msra.mxu0 0.0
    %2817 = vmatprep.subr.mxu0 0.0
    %2818 = vmatpush1.msra.mxu0 0.0
    %2819 = vmatprep.subr.mxu0 0.0
    %2820 = vmatpush1.msra.mxu0 0.0
    %2821 = vmatprep.subr.mxu0 0.0
    %2822 = vmatpush1.msra.mxu0 0.0
    %2823 = vmatprep.subr.mxu0 0.0
    %2824 = vmatpush1.msra.mxu0 0.0
    %2825 = vmatprep.subr.mxu0 0.0
    %2826 = vmatpush1.msra.mxu0 0.0
    %2827 = vmatprep.subr.mxu0 0.0
    %2828 = vmatpush1.msra.mxu0 0.0
    %2829 = vmatprep.mubr.f32.mxu0 0.0
    %2830 = vmatmul.mubr.f32.gmra.mrb[0].mxu0 %v2589
    %v2831 = vpop.f32.mrb[0].mxu0
    %v2832 = vadd.f32 %v2762, %v2831
    %v2833 = vpop.f32.mrb[0].mxu0
    %2834 = vdwg.mxu0
    %v2835 = vadd.f32 %v2832, %v2488
    %v2836 = vxor.u32 %v2835, 2147483648
    %v2837 = vmul.f32 %v2836, 1.442695
    %v2838 = vpow.pop %v2837
    %v2839 = vadd.f32 %v2838, 1.0
    %v2840 = vrcp.pop %v2839
    %v2841 = vmul.f32 1.0, %v2840
    %v2842 = vmul.f32 %v2841, 2.0
    %v2843 = vsub.f32 %v2842, 1.0
    %v2844 = vmul.f32 %v2841, %v2509
    %2846 = vrot.lane.b32.xlu0 %v2843, 64
    %v2847 = vpop.permute.xlu0 %2846
    %v2849 = vmul.f32 %v2841, %v2847
    %2851 = vrot.lane.b32.xlu0 %v2849, 32
    %v2852 = vpop.permute.xlu0 %2851
    %v2854 = vadd.f32 %v2844, %v2852
    %v2855 = vtanh.pop %v2854
    %2857 = vrot.lane.b32.xlu0 %v2855, 64
    %v2858 = vpop.permute.xlu0 %2857
    %v2860 = vmul.f32 %v2841, %v2858
    %2861 = vmatprep.subr.mxu0 0.0
    %2862 = vmatpush1.msra.mxu0 %v110
    %2863 = vmatprep.subr.mxu0 0.0
    %2864 = vmatpush1.msra.mxu0 %v111
    %2865 = vmatprep.subr.mxu0 0.0
    %2866 = vmatpush1.msra.mxu0 %v112
    %2867 = vmatprep.subr.mxu0 0.0
    %2868 = vmatpush1.msra.mxu0 %v113
    %2869 = vmatprep.subr.mxu0 0.0
    %2870 = vmatpush1.msra.mxu0 0.0
    %2871 = vmatprep.subr.mxu0 0.0
    %2872 = vmatpush1.msra.mxu0 0.0
    %2873 = vmatprep.subr.mxu0 0.0
    %2874 = vmatpush1.msra.mxu0 0.0
    %2875 = vmatprep.subr.mxu0 0.0
    %2876 = vmatpush1.msra.mxu0 0.0
    %2877 = vmatprep.subr.mxu0 0.0
    %2878 = vmatpush1.msra.mxu0 0.0
    %2879 = vmatprep.subr.mxu0 0.0
    %2880 = vmatpush1.msra.mxu0 0.0
    %2881 = vmatprep.subr.mxu0 0.0
    %2882 = vmatpush1.msra.mxu0 0.0
    %2883 = vmatprep.subr.mxu0 0.0
    %2884 = vmatpush1.msra.mxu0 0.0
    %2885 = vmatprep.subr.mxu0 0.0
    %2886 = vmatpush1.msra.mxu0 0.0
    %2887 = vmatprep.subr.mxu0 0.0
    %2888 = vmatpush1.msra.mxu0 0.0
    %2889 = vmatprep.subr.mxu0 0.0
    %2890 = vmatpush1.msra.mxu0 0.0
    %2891 = vmatprep.subr.mxu0 0.0
    %2892 = vmatpush1.msra.mxu0 0.0
    %2893 = vmatprep.subr.mxu0 0.0
    %2894 = vmatpush1.msra.mxu0 0.0
    %2895 = vmatprep.subr.mxu0 0.0
    %2896 = vmatpush1.msra.mxu0 0.0
    %2897 = vmatprep.subr.mxu0 0.0
    %2898 = vmatpush1.msra.mxu0 0.0
    %2899 = vmatprep.subr.mxu0 0.0
    %2900 = vmatpush1.msra.mxu0 0.0
    %2901 = vmatprep.subr.mxu0 0.0
    %2902 = vmatpush1.msra.mxu0 0.0
    %2903 = vmatprep.subr.mxu0 0.0
    %2904 = vmatpush1.msra.mxu0 0.0
    %2905 = vmatprep.subr.mxu0 0.0
    %2906 = vmatpush1.msra.mxu0 0.0
    %2907 = vmatprep.subr.mxu0 0.0
    %2908 = vmatpush1.msra.mxu0 0.0
    %2909 = vmatprep.subr.mxu0 0.0
    %2910 = vmatpush1.msra.mxu0 0.0
    %2911 = vmatprep.subr.mxu0 0.0
    %2912 = vmatpush1.msra.mxu0 0.0
    %2913 = vmatprep.subr.mxu0 0.0
    %2914 = vmatpush1.msra.mxu0 0.0
    %2915 = vmatprep.subr.mxu0 0.0
    %2916 = vmatpush1.msra.mxu0 0.0
    %2917 = vmatprep.subr.mxu0 0.0
    %2918 = vmatpush1.msra.mxu0 0.0
    %2919 = vmatprep.subr.mxu0 0.0
    %2920 = vmatpush1.msra.mxu0 0.0
    %2921 = vmatprep.subr.mxu0 0.0
    %2922 = vmatpush1.msra.mxu0 0.0
    %2923 = vmatprep.subr.mxu0 0.0
    %2924 = vmatpush1.msra.mxu0 0.0
    %2925 = vmatprep.mubr.f32.mxu0 0.0
    %2926 = vmatmul.mubr.f32.gmra.mrb[0].mxu0 %v2693
    %v2927 = vpop.f32.mrb[0].mxu0
    %v2928 = vadd.f32 0.0, %v2927
    %v2929 = vpop.f32.mrb[0].mxu0
    %2930 = vdwg.mxu0
    %2932 = vrot.lane.b32.xlu0 %v2860, 32
    %v2933 = vpop.permute.xlu0 %2932
    %v2934 = vsel %vm116, %v2933, 0
    %2936 = vmatprep.subr.mxu0 0.0
    %2937 = vmatpush1.msra.mxu0 %v106
    %2938 = vmatprep.subr.mxu0 0.0
    %2939 = vmatpush1.msra.mxu0 %v107
    %2940 = vmatprep.subr.mxu0 0.0
    %2941 = vmatpush1.msra.mxu0 %v108
    %2942 = vmatprep.subr.mxu0 0.0
    %2943 = vmatpush1.msra.mxu0 %v109
    %2944 = vmatprep.subr.mxu0 0.0
    %2945 = vmatpush1.msra.mxu0 0.0
    %2946 = vmatprep.subr.mxu0 0.0
    %2947 = vmatpush1.msra.mxu0 0.0
    %2948 = vmatprep.subr.mxu0 0.0
    %2949 = vmatpush1.msra.mxu0 0.0
    %2950 = vmatprep.subr.mxu0 0.0
    %2951 = vmatpush1.msra.mxu0 0.0
    %2952 = vmatprep.subr.mxu0 0.0
    %2953 = vmatpush1.msra.mxu0 0.0
    %2954 = vmatprep.subr.mxu0 0.0
    %2955 = vmatpush1.msra.mxu0 0.0
    %2956 = vmatprep.subr.mxu0 0.0
    %2957 = vmatpush1.msra.mxu0 0.0
    %2958 = vmatprep.subr.mxu0 0.0
    %2959 = vmatpush1.msra.mxu0 0.0
    %2960 = vmatprep.subr.mxu0 0.0
    %2961 = vmatpush1.msra.mxu0 0.0
    %2962 = vmatprep.subr.mxu0 0.0
    %2963 = vmatpush1.msra.mxu0 0.0
    %2964 = vmatprep.subr.mxu0 0.0
    %2965 = vmatpush1.msra.mxu0 0.0
    %2966 = vmatprep.subr.mxu0 0.0
    %2967 = vmatpush1.msra.mxu0 0.0
    %2968 = vmatprep.subr.mxu0 0.0
    %2969 = vmatpush1.msra.mxu0 0.0
    %2970 = vmatprep.subr.mxu0 0.0
    %2971 = vmatpush1.msra.mxu0 0.0
    %2972 = vmatprep.subr.mxu0 0.0
    %2973 = vmatpush1.msra.mxu0 0.0
    %2974 = vmatprep.subr.mxu0 0.0
    %2975 = vmatpush1.msra.mxu0 0.0
    %2976 = vmatprep.subr.mxu0 0.0
    %2977 = vmatpush1.msra.mxu0 0.0
    %2978 = vmatprep.subr.mxu0 0.0
    %2979 = vmatpush1.msra.mxu0 0.0
    %2980 = vmatprep.subr.mxu0 0.0
    %2981 = vmatpush1.msra.mxu0 0.0
    %2982 = vmatprep.subr.mxu0 0.0
    %2983 = vmatpush1.msra.mxu0 0.0
    %2984 = vmatprep.subr.mxu0 0.0
    %2985 = vmatpush1.msra.mxu0 0.0
    %2986 = vmatprep.subr.mxu0 0.0
    %2987 = vmatpush1.msra.mxu0 0.0
    %2988 = vmatprep.subr.mxu0 0.0
    %2989 = vmatpush1.msra.mxu0 0.0
    %2990 = vmatprep.subr.mxu0 0.0
    %2991 = vmatpush1.msra.mxu0 0.0
    %2992 = vmatprep.subr.mxu0 0.0
    %2993 = vmatpush1.msra.mxu0 0.0
    %2994 = vmatprep.subr.mxu0 0.0
    %2995 = vmatpush1.msra.mxu0 0.0
    %2996 = vmatprep.subr.mxu0 0.0
    %2997 = vmatpush1.msra.mxu0 0.0
    %2998 = vmatprep.subr.mxu0 0.0
    %2999 = vmatpush1.msra.mxu0 0.0
    %3000 = vmatprep.mubr.f32.mxu0 0.0
    %3001 = vmatmul.mubr.f32.gmra.mrb[0].mxu0 %v2934
    %v3002 = vpop.f32.mrb[0].mxu0
    %v3003 = vadd.f32 %v2928, %v3002
    %v3004 = vpop.f32.mrb[0].mxu0
    %3005 = vdwg.mxu0
    %v3006 = vadd.f32 %v3003, %v365
    %v3007 = vxor.u32 %v3006, 2147483648
    %v3008 = vmul.f32 %v3007, 1.442695
    %v3009 = vpow.pop %v3008
    %v3010 = vadd.f32 %v3009, 1.0
    %v3011 = vrcp.pop %v3010
    %v3012 = vmul.f32 1.0, %v3011
    %v3013 = vmul.f32 %v3012, 2.0
    %v3014 = vsub.f32 %v3013, 1.0
    %v3015 = vmul.f32 %v3012, %v2680
    %3017 = vrot.lane.b32.xlu0 %v3014, 64
    %v3018 = vpop.permute.xlu0 %3017
    %v3020 = vmul.f32 %v3012, %v3018
    %3022 = vrot.lane.b32.xlu0 %v3020, 32
    %v3023 = vpop.permute.xlu0 %3022
    %v3025 = vadd.f32 %v3015, %v3023
    %v3026 = vtanh.pop %v3025
    %3028 = vrot.lane.b32.xlu0 %v3026, 64
    %v3029 = vpop.permute.xlu0 %3028
    %v3031 = vmul.f32 %v3012, %v3029
    %3033 = vrot.lane.b32.xlu0 %v3031, 32
    %v3034 = vpop.permute.xlu0 %3033
    %s3036 = scalar_lea.vmem [#allocation2], 72
    %3037 = vst.msk [vmem:[%s3036] sm:$0xff] %vm116, %v3034
    %v3038 = vsel %vm116, %v3034, 0
    %3040 = vmatprep.subr.mxu0 0.0
    %3041 = vmatpush1.msra.mxu0 %v2337
    %3042 = vmatprep.subr.mxu0 0.0
    %3043 = vmatpush1.msra.mxu0 %v2338
    %3044 = vmatprep.subr.mxu0 0.0
    %3045 = vmatpush1.msra.mxu0 %v2339
    %3046 = vmatprep.subr.mxu0 0.0
    %3047 = vmatpush1.msra.mxu0 %v2340
    %3048 = vmatprep.subr.mxu0 0.0
    %3049 = vmatpush1.msra.mxu0 0.0
    %3050 = vmatprep.subr.mxu0 0.0
    %3051 = vmatpush1.msra.mxu0 0.0
    %3052 = vmatprep.subr.mxu0 0.0
    %3053 = vmatpush1.msra.mxu0 0.0
    %3054 = vmatprep.subr.mxu0 0.0
    %3055 = vmatpush1.msra.mxu0 0.0
    %3056 = vmatprep.subr.mxu0 0.0
    %3057 = vmatpush1.msra.mxu0 0.0
    %3058 = vmatprep.subr.mxu0 0.0
    %3059 = vmatpush1.msra.mxu0 0.0
    %3060 = vmatprep.subr.mxu0 0.0
    %3061 = vmatpush1.msra.mxu0 0.0
    %3062 = vmatprep.subr.mxu0 0.0
    %3063 = vmatpush1.msra.mxu0 0.0
    %3064 = vmatprep.subr.mxu0 0.0
    %3065 = vmatpush1.msra.mxu0 0.0
    %3066 = vmatprep.subr.mxu0 0.0
    %3067 = vmatpush1.msra.mxu0 0.0
    %3068 = vmatprep.subr.mxu0 0.0
    %3069 = vmatpush1.msra.mxu0 0.0
    %3070 = vmatprep.subr.mxu0 0.0
    %3071 = vmatpush1.msra.mxu0 0.0
    %3072 = vmatprep.subr.mxu0 0.0
    %3073 = vmatpush1.msra.mxu0 0.0
    %3074 = vmatprep.subr.mxu0 0.0
    %3075 = vmatpush1.msra.mxu0 0.0
    %3076 = vmatprep.subr.mxu0 0.0
    %3077 = vmatpush1.msra.mxu0 0.0
    %3078 = vmatprep.subr.mxu0 0.0
    %3079 = vmatpush1.msra.mxu0 0.0
    %3080 = vmatprep.subr.mxu0 0.0
    %3081 = vmatpush1.msra.mxu0 0.0
    %3082 = vmatprep.subr.mxu0 0.0
    %3083 = vmatpush1.msra.mxu0 0.0
    %3084 = vmatprep.subr.mxu0 0.0
    %3085 = vmatpush1.msra.mxu0 0.0
    %3086 = vmatprep.subr.mxu0 0.0
    %3087 = vmatpush1.msra.mxu0 0.0
    %3088 = vmatprep.subr.mxu0 0.0
    %3089 = vmatpush1.msra.mxu0 0.0
    %3090 = vmatprep.subr.mxu0 0.0
    %3091 = vmatpush1.msra.mxu0 0.0
    %3092 = vmatprep.subr.mxu0 0.0
    %3093 = vmatpush1.msra.mxu0 0.0
    %3094 = vmatprep.subr.mxu0 0.0
    %3095 = vmatpush1.msra.mxu0 0.0
    %3096 = vmatprep.subr.mxu0 0.0
    %3097 = vmatpush1.msra.mxu0 0.0
    %3098 = vmatprep.subr.mxu0 0.0
    %3099 = vmatpush1.msra.mxu0 0.0
    %3100 = vmatprep.subr.mxu0 0.0
    %3101 = vmatpush1.msra.mxu0 0.0
    %3102 = vmatprep.subr.mxu0 0.0
    %3103 = vmatpush1.msra.mxu0 0.0
    %3104 = vmatprep.mubr.f32.mxu0 0.0
    %3105 = vmatmul.mubr.f32.gmra.mrb[0].mxu0 %v3038
    %v3106 = vpop.f32.mrb[0].mxu0
    %v3107 = vadd.f32 0.0, %v3106
    %v3108 = vpop.f32.mrb[0].mxu0
    %3109 = vdwg.mxu0
    %3110 = vmatprep.subr.mxu0 0.0
    %3111 = vmatpush1.msra.mxu0 %v102
    %3112 = vmatprep.subr.mxu0 0.0
    %3113 = vmatpush1.msra.mxu0 %v103
    %3114 = vmatprep.subr.mxu0 0.0
    %3115 = vmatpush1.msra.mxu0 %v104
    %3116 = vmatprep.subr.mxu0 0.0
    %3117 = vmatpush1.msra.mxu0 %v105
    %3118 = vmatprep.subr.mxu0 0.0
    %3119 = vmatpush1.msra.mxu0 0.0
    %3120 = vmatprep.subr.mxu0 0.0
    %3121 = vmatpush1.msra.mxu0 0.0
    %3122 = vmatprep.subr.mxu0 0.0
    %3123 = vmatpush1.msra.mxu0 0.0
    %3124 = vmatprep.subr.mxu0 0.0
    %3125 = vmatpush1.msra.mxu0 0.0
    %3126 = vmatprep.subr.mxu0 0.0
    %3127 = vmatpush1.msra.mxu0 0.0
    %3128 = vmatprep.subr.mxu0 0.0
    %3129 = vmatpush1.msra.mxu0 0.0
    %3130 = vmatprep.subr.mxu0 0.0
    %3131 = vmatpush1.msra.mxu0 0.0
    %3132 = vmatprep.subr.mxu0 0.0
    %3133 = vmatpush1.msra.mxu0 0.0
    %3134 = vmatprep.subr.mxu0 0.0
    %3135 = vmatpush1.msra.mxu0 0.0
    %3136 = vmatprep.subr.mxu0 0.0
    %3137 = vmatpush1.msra.mxu0 0.0
    %3138 = vmatprep.subr.mxu0 0.0
    %3139 = vmatpush1.msra.mxu0 0.0
    %3140 = vmatprep.subr.mxu0 0.0
    %3141 = vmatpush1.msra.mxu0 0.0
    %3142 = vmatprep.subr.mxu0 0.0
    %3143 = vmatpush1.msra.mxu0 0.0
    %3144 = vmatprep.subr.mxu0 0.0
    %3145 = vmatpush1.msra.mxu0 0.0
    %3146 = vmatprep.subr.mxu0 0.0
    %3147 = vmatpush1.msra.mxu0 0.0
    %3148 = vmatprep.subr.mxu0 0.0
    %3149 = vmatpush1.msra.mxu0 0.0
    %3150 = vmatprep.subr.mxu0 0.0
    %3151 = vmatpush1.msra.mxu0 0.0
    %3152 = vmatprep.subr.mxu0 0.0
    %3153 = vmatpush1.msra.mxu0 0.0
    %3154 = vmatprep.subr.mxu0 0.0
    %3155 = vmatpush1.msra.mxu0 0.0
    %3156 = vmatprep.subr.mxu0 0.0
    %3157 = vmatpush1.msra.mxu0 0.0
    %3158 = vmatprep.subr.mxu0 0.0
    %3159 = vmatpush1.msra.mxu0 0.0
    %3160 = vmatprep.subr.mxu0 0.0
    %3161 = vmatpush1.msra.mxu0 0.0
    %3162 = vmatprep.subr.mxu0 0.0
    %3163 = vmatpush1.msra.mxu0 0.0
    %3164 = vmatprep.subr.mxu0 0.0
    %3165 = vmatpush1.msra.mxu0 0.0
    %3166 = vmatprep.subr.mxu0 0.0
    %3167 = vmatpush1.msra.mxu0 0.0
    %3168 = vmatprep.subr.mxu0 0.0
    %3169 = vmatpush1.msra.mxu0 0.0
    %3170 = vmatprep.subr.mxu0 0.0
    %3171 = vmatpush1.msra.mxu0 0.0
    %3172 = vmatprep.subr.mxu0 0.0
    %3173 = vmatpush1.msra.mxu0 0.0
    %3174 = vmatprep.mubr.f32.mxu0 0.0
    %3175 = vmatmul.mubr.f32.gmra.mrb[0].mxu0 %v2934
    %v3176 = vpop.f32.mrb[0].mxu0
    %v3177 = vadd.f32 %v3107, %v3176
    %v3178 = vpop.f32.mrb[0].mxu0
    %3179 = vdwg.mxu0
    %v3180 = vadd.f32 %v3177, %v2488
    %v3181 = vxor.u32 %v3180, 2147483648
    %v3182 = vmul.f32 %v3181, 1.442695
    %v3183 = vpow.pop %v3182
    %v3184 = vadd.f32 %v3183, 1.0
    %v3185 = vrcp.pop %v3184
    %v3186 = vmul.f32 1.0, %v3185
    %v3187 = vmul.f32 %v3186, 2.0
    %v3188 = vsub.f32 %v3187, 1.0
    %v3189 = vmul.f32 %v3186, %v2854
    %3191 = vrot.lane.b32.xlu0 %v3188, 64
    %v3192 = vpop.permute.xlu0 %3191
    %v3194 = vmul.f32 %v3186, %v3192
    %3196 = vrot.lane.b32.xlu0 %v3194, 32
    %v3197 = vpop.permute.xlu0 %3196
    %v3199 = vadd.f32 %v3189, %v3197
    %v3200 = vtanh.pop %v3199
    %3202 = vrot.lane.b32.xlu0 %v3200, 64
    %v3203 = vpop.permute.xlu0 %3202
    %v3205 = vmul.f32 %v3186, %v3203
    %3206 = vmatprep.subr.mxu0 0.0
    %3207 = vmatpush1.msra.mxu0 %v110
    %3208 = vmatprep.subr.mxu0 0.0
    %3209 = vmatpush1.msra.mxu0 %v111
    %3210 = vmatprep.subr.mxu0 0.0
    %3211 = vmatpush1.msra.mxu0 %v112
    %3212 = vmatprep.subr.mxu0 0.0
    %3213 = vmatpush1.msra.mxu0 %v113
    %3214 = vmatprep.subr.mxu0 0.0
    %3215 = vmatpush1.msra.mxu0 0.0
    %3216 = vmatprep.subr.mxu0 0.0
    %3217 = vmatpush1.msra.mxu0 0.0
    %3218 = vmatprep.subr.mxu0 0.0
    %3219 = vmatpush1.msra.mxu0 0.0
    %3220 = vmatprep.subr.mxu0 0.0
    %3221 = vmatpush1.msra.mxu0 0.0
    %3222 = vmatprep.subr.mxu0 0.0
    %3223 = vmatpush1.msra.mxu0 0.0
    %3224 = vmatprep.subr.mxu0 0.0
    %3225 = vmatpush1.msra.mxu0 0.0
    %3226 = vmatprep.subr.mxu0 0.0
    %3227 = vmatpush1.msra.mxu0 0.0
    %3228 = vmatprep.subr.mxu0 0.0
    %3229 = vmatpush1.msra.mxu0 0.0
    %3230 = vmatprep.subr.mxu0 0.0
    %3231 = vmatpush1.msra.mxu0 0.0
    %3232 = vmatprep.subr.mxu0 0.0
    %3233 = vmatpush1.msra.mxu0 0.0
    %3234 = vmatprep.subr.mxu0 0.0
    %3235 = vmatpush1.msra.mxu0 0.0
    %3236 = vmatprep.subr.mxu0 0.0
    %3237 = vmatpush1.msra.mxu0 0.0
    %3238 = vmatprep.subr.mxu0 0.0
    %3239 = vmatpush1.msra.mxu0 0.0
    %3240 = vmatprep.subr.mxu0 0.0
    %3241 = vmatpush1.msra.mxu0 0.0
    %3242 = vmatprep.subr.mxu0 0.0
    %3243 = vmatpush1.msra.mxu0 0.0
    %3244 = vmatprep.subr.mxu0 0.0
    %3245 = vmatpush1.msra.mxu0 0.0
    %3246 = vmatprep.subr.mxu0 0.0
    %3247 = vmatpush1.msra.mxu0 0.0
    %3248 = vmatprep.subr.mxu0 0.0
    %3249 = vmatpush1.msra.mxu0 0.0
    %3250 = vmatprep.subr.mxu0 0.0
    %3251 = vmatpush1.msra.mxu0 0.0
    %3252 = vmatprep.subr.mxu0 0.0
    %3253 = vmatpush1.msra.mxu0 0.0
    %3254 = vmatprep.subr.mxu0 0.0
    %3255 = vmatpush1.msra.mxu0 0.0
    %3256 = vmatprep.subr.mxu0 0.0
    %3257 = vmatpush1.msra.mxu0 0.0
    %3258 = vmatprep.subr.mxu0 0.0
    %3259 = vmatpush1.msra.mxu0 0.0
    %3260 = vmatprep.subr.mxu0 0.0
    %3261 = vmatpush1.msra.mxu0 0.0
    %3262 = vmatprep.subr.mxu0 0.0
    %3263 = vmatpush1.msra.mxu0 0.0
    %3264 = vmatprep.subr.mxu0 0.0
    %3265 = vmatpush1.msra.mxu0 0.0
    %3266 = vmatprep.subr.mxu0 0.0
    %3267 = vmatpush1.msra.mxu0 0.0
    %3268 = vmatprep.subr.mxu0 0.0
    %3269 = vmatpush1.msra.mxu0 0.0
    %3270 = vmatprep.mubr.f32.mxu0 0.0
    %3271 = vmatmul.mubr.f32.gmra.mrb[0].mxu0 %v3038
    %v3272 = vpop.f32.mrb[0].mxu0
    %v3273 = vadd.f32 0.0, %v3272
    %v3274 = vpop.f32.mrb[0].mxu0
    %3275 = vdwg.mxu0
    %3277 = vrot.lane.b32.xlu0 %v3205, 32
    %v3278 = vpop.permute.xlu0 %3277
    %v3279 = vsel %vm116, %v3278, 0
    %3281 = vmatprep.subr.mxu0 0.0
    %3282 = vmatpush1.msra.mxu0 %v106
    %3283 = vmatprep.subr.mxu0 0.0
    %3284 = vmatpush1.msra.mxu0 %v107
    %3285 = vmatprep.subr.mxu0 0.0
    %3286 = vmatpush1.msra.mxu0 %v108
    %3287 = vmatprep.subr.mxu0 0.0
    %3288 = vmatpush1.msra.mxu0 %v109
    %3289 = vmatprep.subr.mxu0 0.0
    %3290 = vmatpush1.msra.mxu0 0.0
    %3291 = vmatprep.subr.mxu0 0.0
    %3292 = vmatpush1.msra.mxu0 0.0
    %3293 = vmatprep.subr.mxu0 0.0
    %3294 = vmatpush1.msra.mxu0 0.0
    %3295 = vmatprep.subr.mxu0 0.0
    %3296 = vmatpush1.msra.mxu0 0.0
    %3297 = vmatprep.subr.mxu0 0.0
    %3298 = vmatpush1.msra.mxu0 0.0
    %3299 = vmatprep.subr.mxu0 0.0
    %3300 = vmatpush1.msra.mxu0 0.0
    %3301 = vmatprep.subr.mxu0 0.0
    %3302 = vmatpush1.msra.mxu0 0.0
    %3303 = vmatprep.subr.mxu0 0.0
    %3304 = vmatpush1.msra.mxu0 0.0
    %3305 = vmatprep.subr.mxu0 0.0
    %3306 = vmatpush1.msra.mxu0 0.0
    %3307 = vmatprep.subr.mxu0 0.0
    %3308 = vmatpush1.msra.mxu0 0.0
    %3309 = vmatprep.subr.mxu0 0.0
    %3310 = vmatpush1.msra.mxu0 0.0
    %3311 = vmatprep.subr.mxu0 0.0
    %3312 = vmatpush1.msra.mxu0 0.0
    %3313 = vmatprep.subr.mxu0 0.0
    %3314 = vmatpush1.msra.mxu0 0.0
    %3315 = vmatprep.subr.mxu0 0.0
    %3316 = vmatpush1.msra.mxu0 0.0
    %3317 = vmatprep.subr.mxu0 0.0
    %3318 = vmatpush1.msra.mxu0 0.0
    %3319 = vmatprep.subr.mxu0 0.0
    %3320 = vmatpush1.msra.mxu0 0.0
    %3321 = vmatprep.subr.mxu0 0.0
    %3322 = vmatpush1.msra.mxu0 0.0
    %3323 = vmatprep.subr.mxu0 0.0
    %3324 = vmatpush1.msra.mxu0 0.0
    %3325 = vmatprep.subr.mxu0 0.0
    %3326 = vmatpush1.msra.mxu0 0.0
    %3327 = vmatprep.subr.mxu0 0.0
    %3328 = vmatpush1.msra.mxu0 0.0
    %3329 = vmatprep.subr.mxu0 0.0
    %3330 = vmatpush1.msra.mxu0 0.0
    %3331 = vmatprep.subr.mxu0 0.0
    %3332 = vmatpush1.msra.mxu0 0.0
    %3333 = vmatprep.subr.mxu0 0.0
    %3334 = vmatpush1.msra.mxu0 0.0
    %3335 = vmatprep.subr.mxu0 0.0
    %3336 = vmatpush1.msra.mxu0 0.0
    %3337 = vmatprep.subr.mxu0 0.0
    %3338 = vmatpush1.msra.mxu0 0.0
    %3339 = vmatprep.subr.mxu0 0.0
    %3340 = vmatpush1.msra.mxu0 0.0
    %3341 = vmatprep.subr.mxu0 0.0
    %3342 = vmatpush1.msra.mxu0 0.0
    %3343 = vmatprep.subr.mxu0 0.0
    %3344 = vmatpush1.msra.mxu0 0.0
    %3345 = vmatprep.mubr.f32.mxu0 0.0
    %3346 = vmatmul.mubr.f32.gmra.mrb[0].mxu0 %v3279
    %v3347 = vpop.f32.mrb[0].mxu0
    %v3348 = vadd.f32 %v3273, %v3347
    %v3349 = vpop.f32.mrb[0].mxu0
    %3350 = vdwg.mxu0
    %v3351 = vadd.f32 %v3348, %v365
    %v3352 = vxor.u32 %v3351, 2147483648
    %v3353 = vmul.f32 %v3352, 1.442695
    %v3354 = vpow.pop %v3353
    %v3355 = vadd.f32 %v3354, 1.0
    %v3356 = vrcp.pop %v3355
    %v3357 = vmul.f32 1.0, %v3356
    %v3358 = vmul.f32 %v3357, 2.0
    %v3359 = vsub.f32 %v3358, 1.0
    %v3360 = vmul.f32 %v3357, %v3025
    %3362 = vrot.lane.b32.xlu0 %v3359, 64
    %v3363 = vpop.permute.xlu0 %3362
    %v3365 = vmul.f32 %v3357, %v3363
    %3367 = vrot.lane.b32.xlu0 %v3365, 32
    %v3368 = vpop.permute.xlu0 %3367
    %v3370 = vadd.f32 %v3360, %v3368
    %v3371 = vtanh.pop %v3370
    %3373 = vrot.lane.b32.xlu0 %v3371, 64
    %v3374 = vpop.permute.xlu0 %3373
    %v3376 = vmul.f32 %v3357, %v3374
    %3378 = vrot.lane.b32.xlu0 %v3376, 32
    %v3379 = vpop.permute.xlu0 %3378
    %s3381 = scalar_lea.vmem [#allocation2], 80
    %3382 = vst.msk [vmem:[%s3381] sm:$0xff] %vm116, %v3379
    %v3383 = vsel %vm116, %v3379, 0
    %3385 = vmatprep.subr.mxu0 0.0
    %3386 = vmatpush1.msra.mxu0 %v2337
    %3387 = vmatprep.subr.mxu0 0.0
    %3388 = vmatpush1.msra.mxu0 %v2338
    %3389 = vmatprep.subr.mxu0 0.0
    %3390 = vmatpush1.msra.mxu0 %v2339
    %3391 = vmatprep.subr.mxu0 0.0
    %3392 = vmatpush1.msra.mxu0 %v2340
    %3393 = vmatprep.subr.mxu0 0.0
    %3394 = vmatpush1.msra.mxu0 0.0
    %3395 = vmatprep.subr.mxu0 0.0
    %3396 = vmatpush1.msra.mxu0 0.0
    %3397 = vmatprep.subr.mxu0 0.0
    %3398 = vmatpush1.msra.mxu0 0.0
    %3399 = vmatprep.subr.mxu0 0.0
    %3400 = vmatpush1.msra.mxu0 0.0
    %3401 = vmatprep.subr.mxu0 0.0
    %3402 = vmatpush1.msra.mxu0 0.0
    %3403 = vmatprep.subr.mxu0 0.0
    %3404 = vmatpush1.msra.mxu0 0.0
    %3405 = vmatprep.subr.mxu0 0.0
    %3406 = vmatpush1.msra.mxu0 0.0
    %3407 = vmatprep.subr.mxu0 0.0
    %3408 = vmatpush1.msra.mxu0 0.0
    %3409 = vmatprep.subr.mxu0 0.0
    %3410 = vmatpush1.msra.mxu0 0.0
    %3411 = vmatprep.subr.mxu0 0.0
    %3412 = vmatpush1.msra.mxu0 0.0
    %3413 = vmatprep.subr.mxu0 0.0
    %3414 = vmatpush1.msra.mxu0 0.0
    %3415 = vmatprep.subr.mxu0 0.0
    %3416 = vmatpush1.msra.mxu0 0.0
    %3417 = vmatprep.subr.mxu0 0.0
    %3418 = vmatpush1.msra.mxu0 0.0
    %3419 = vmatprep.subr.mxu0 0.0
    %3420 = vmatpush1.msra.mxu0 0.0
    %3421 = vmatprep.subr.mxu0 0.0
    %3422 = vmatpush1.msra.mxu0 0.0
    %3423 = vmatprep.subr.mxu0 0.0
    %3424 = vmatpush1.msra.mxu0 0.0
    %3425 = vmatprep.subr.mxu0 0.0
    %3426 = vmatpush1.msra.mxu0 0.0
    %3427 = vmatprep.subr.mxu0 0.0
    %3428 = vmatpush1.msra.mxu0 0.0
    %3429 = vmatprep.subr.mxu0 0.0
    %3430 = vmatpush1.msra.mxu0 0.0
    %3431 = vmatprep.subr.mxu0 0.0
    %3432 = vmatpush1.msra.mxu0 0.0
    %3433 = vmatprep.subr.mxu0 0.0
    %3434 = vmatpush1.msra.mxu0 0.0
    %3435 = vmatprep.subr.mxu0 0.0
    %3436 = vmatpush1.msra.mxu0 0.0
    %3437 = vmatprep.subr.mxu0 0.0
    %3438 = vmatpush1.msra.mxu0 0.0
    %3439 = vmatprep.subr.mxu0 0.0
    %3440 = vmatpush1.msra.mxu0 0.0
    %3441 = vmatprep.subr.mxu0 0.0
    %3442 = vmatpush1.msra.mxu0 0.0
    %3443 = vmatprep.subr.mxu0 0.0
    %3444 = vmatpush1.msra.mxu0 0.0
    %3445 = vmatprep.subr.mxu0 0.0
    %3446 = vmatpush1.msra.mxu0 0.0
    %3447 = vmatprep.subr.mxu0 0.0
    %3448 = vmatpush1.msra.mxu0 0.0
    %3449 = vmatprep.mubr.f32.mxu0 0.0
    %3450 = vmatmul.mubr.f32.gmra.mrb[0].mxu0 %v3383
    %v3451 = vpop.f32.mrb[0].mxu0
    %v3452 = vadd.f32 0.0, %v3451
    %v3453 = vpop.f32.mrb[0].mxu0
    %3454 = vdwg.mxu0
    %3455 = vmatprep.subr.mxu0 0.0
    %3456 = vmatpush1.msra.mxu0 %v102
    %3457 = vmatprep.subr.mxu0 0.0
    %3458 = vmatpush1.msra.mxu0 %v103
    %3459 = vmatprep.subr.mxu0 0.0
    %3460 = vmatpush1.msra.mxu0 %v104
    %3461 = vmatprep.subr.mxu0 0.0
    %3462 = vmatpush1.msra.mxu0 %v105
    %3463 = vmatprep.subr.mxu0 0.0
    %3464 = vmatpush1.msra.mxu0 0.0
    %3465 = vmatprep.subr.mxu0 0.0
    %3466 = vmatpush1.msra.mxu0 0.0
    %3467 = vmatprep.subr.mxu0 0.0
    %3468 = vmatpush1.msra.mxu0 0.0
    %3469 = vmatprep.subr.mxu0 0.0
    %3470 = vmatpush1.msra.mxu0 0.0
    %3471 = vmatprep.subr.mxu0 0.0
    %3472 = vmatpush1.msra.mxu0 0.0
    %3473 = vmatprep.subr.mxu0 0.0
    %3474 = vmatpush1.msra.mxu0 0.0
    %3475 = vmatprep.subr.mxu0 0.0
    %3476 = vmatpush1.msra.mxu0 0.0
    %3477 = vmatprep.subr.mxu0 0.0
    %3478 = vmatpush1.msra.mxu0 0.0
    %3479 = vmatprep.subr.mxu0 0.0
    %3480 = vmatpush1.msra.mxu0 0.0
    %3481 = vmatprep.subr.mxu0 0.0
    %3482 = vmatpush1.msra.mxu0 0.0
    %3483 = vmatprep.subr.mxu0 0.0
    %3484 = vmatpush1.msra.mxu0 0.0
    %3485 = vmatprep.subr.mxu0 0.0
    %3486 = vmatpush1.msra.mxu0 0.0
    %3487 = vmatprep.subr.mxu0 0.0
    %3488 = vmatpush1.msra.mxu0 0.0
    %3489 = vmatprep.subr.mxu0 0.0
    %3490 = vmatpush1.msra.mxu0 0.0
    %3491 = vmatprep.subr.mxu0 0.0
    %3492 = vmatpush1.msra.mxu0 0.0
    %3493 = vmatprep.subr.mxu0 0.0
    %3494 = vmatpush1.msra.mxu0 0.0
    %3495 = vmatprep.subr.mxu0 0.0
    %3496 = vmatpush1.msra.mxu0 0.0
    %3497 = vmatprep.subr.mxu0 0.0
    %3498 = vmatpush1.msra.mxu0 0.0
    %3499 = vmatprep.subr.mxu0 0.0
    %3500 = vmatpush1.msra.mxu0 0.0
    %3501 = vmatprep.subr.mxu0 0.0
    %3502 = vmatpush1.msra.mxu0 0.0
    %3503 = vmatprep.subr.mxu0 0.0
    %3504 = vmatpush1.msra.mxu0 0.0
    %3505 = vmatprep.subr.mxu0 0.0
    %3506 = vmatpush1.msra.mxu0 0.0
    %3507 = vmatprep.subr.mxu0 0.0
    %3508 = vmatpush1.msra.mxu0 0.0
    %3509 = vmatprep.subr.mxu0 0.0
    %3510 = vmatpush1.msra.mxu0 0.0
    %3511 = vmatprep.subr.mxu0 0.0
    %3512 = vmatpush1.msra.mxu0 0.0
    %3513 = vmatprep.subr.mxu0 0.0
    %3514 = vmatpush1.msra.mxu0 0.0
    %3515 = vmatprep.subr.mxu0 0.0
    %3516 = vmatpush1.msra.mxu0 0.0
    %3517 = vmatprep.subr.mxu0 0.0
    %3518 = vmatpush1.msra.mxu0 0.0
    %3519 = vmatprep.mubr.f32.mxu0 0.0
    %3520 = vmatmul.mubr.f32.gmra.mrb[0].mxu0 %v3279
    %v3521 = vpop.f32.mrb[0].mxu0
    %v3522 = vadd.f32 %v3452, %v3521
    %v3523 = vpop.f32.mrb[0].mxu0
    %3524 = vdwg.mxu0
    %v3525 = vadd.f32 %v3522, %v2488
    %v3526 = vxor.u32 %v3525, 2147483648
    %v3527 = vmul.f32 %v3526, 1.442695
    %v3528 = vpow.pop %v3527
    %v3529 = vadd.f32 %v3528, 1.0
    %v3530 = vrcp.pop %v3529
    %v3531 = vmul.f32 1.0, %v3530
    %v3532 = vmul.f32 %v3531, 2.0
    %v3533 = vsub.f32 %v3532, 1.0
    %v3534 = vmul.f32 %v3531, %v3199
    %3536 = vrot.lane.b32.xlu0 %v3533, 64
    %v3537 = vpop.permute.xlu0 %3536
    %v3539 = vmul.f32 %v3531, %v3537
    %3541 = vrot.lane.b32.xlu0 %v3539, 32
    %v3542 = vpop.permute.xlu0 %3541
    %v3544 = vadd.f32 %v3534, %v3542
    %v3545 = vtanh.pop %v3544
    %3547 = vrot.lane.b32.xlu0 %v3545, 64
    %v3548 = vpop.permute.xlu0 %3547
    %v3550 = vmul.f32 %v3531, %v3548
    %3551 = vmatprep.subr.mxu0 0.0
    %3552 = vmatpush1.msra.mxu0 %v110
    %3553 = vmatprep.subr.mxu0 0.0
    %3554 = vmatpush1.msra.mxu0 %v111
    %3555 = vmatprep.subr.mxu0 0.0
    %3556 = vmatpush1.msra.mxu0 %v112
    %3557 = vmatprep.subr.mxu0 0.0
    %3558 = vmatpush1.msra.mxu0 %v113
    %3559 = vmatprep.subr.mxu0 0.0
    %3560 = vmatpush1.msra.mxu0 0.0
    %3561 = vmatprep.subr.mxu0 0.0
    %3562 = vmatpush1.msra.mxu0 0.0
    %3563 = vmatprep.subr.mxu0 0.0
    %3564 = vmatpush1.msra.mxu0 0.0
    %3565 = vmatprep.subr.mxu0 0.0
    %3566 = vmatpush1.msra.mxu0 0.0
    %3567 = vmatprep.subr.mxu0 0.0
    %3568 = vmatpush1.msra.mxu0 0.0
    %3569 = vmatprep.subr.mxu0 0.0
    %3570 = vmatpush1.msra.mxu0 0.0
    %3571 = vmatprep.subr.mxu0 0.0
    %3572 = vmatpush1.msra.mxu0 0.0
    %3573 = vmatprep.subr.mxu0 0.0
    %3574 = vmatpush1.msra.mxu0 0.0
    %3575 = vmatprep.subr.mxu0 0.0
    %3576 = vmatpush1.msra.mxu0 0.0
    %3577 = vmatprep.subr.mxu0 0.0
    %3578 = vmatpush1.msra.mxu0 0.0
    %3579 = vmatprep.subr.mxu0 0.0
    %3580 = vmatpush1.msra.mxu0 0.0
    %3581 = vmatprep.subr.mxu0 0.0
    %3582 = vmatpush1.msra.mxu0 0.0
    %3583 = vmatprep.subr.mxu0 0.0
    %3584 = vmatpush1.msra.mxu0 0.0
    %3585 = vmatprep.subr.mxu0 0.0
    %3586 = vmatpush1.msra.mxu0 0.0
    %3587 = vmatprep.subr.mxu0 0.0
    %3588 = vmatpush1.msra.mxu0 0.0
    %3589 = vmatprep.subr.mxu0 0.0
    %3590 = vmatpush1.msra.mxu0 0.0
    %3591 = vmatprep.subr.mxu0 0.0
    %3592 = vmatpush1.msra.mxu0 0.0
    %3593 = vmatprep.subr.mxu0 0.0
    %3594 = vmatpush1.msra.mxu0 0.0
    %3595 = vmatprep.subr.mxu0 0.0
    %3596 = vmatpush1.msra.mxu0 0.0
    %3597 = vmatprep.subr.mxu0 0.0
    %3598 = vmatpush1.msra.mxu0 0.0
    %3599 = vmatprep.subr.mxu0 0.0
    %3600 = vmatpush1.msra.mxu0 0.0
    %3601 = vmatprep.subr.mxu0 0.0
    %3602 = vmatpush1.msra.mxu0 0.0
    %3603 = vmatprep.subr.mxu0 0.0
    %3604 = vmatpush1.msra.mxu0 0.0
    %3605 = vmatprep.subr.mxu0 0.0
    %3606 = vmatpush1.msra.mxu0 0.0
    %3607 = vmatprep.subr.mxu0 0.0
    %3608 = vmatpush1.msra.mxu0 0.0
    %3609 = vmatprep.subr.mxu0 0.0
    %3610 = vmatpush1.msra.mxu0 0.0
    %3611 = vmatprep.subr.mxu0 0.0
    %3612 = vmatpush1.msra.mxu0 0.0
    %3613 = vmatprep.subr.mxu0 0.0
    %3614 = vmatpush1.msra.mxu0 0.0
    %3615 = vmatprep.mubr.f32.mxu0 0.0
    %3616 = vmatmul.mubr.f32.gmra.mrb[0].mxu0 %v3383
    %v3617 = vpop.f32.mrb[0].mxu0
    %v3618 = vadd.f32 0.0, %v3617
    %v3619 = vpop.f32.mrb[0].mxu0
    %3620 = vdwg.mxu0
    %3622 = vrot.lane.b32.xlu0 %v3550, 32
    %v3623 = vpop.permute.xlu0 %3622
    %v3624 = vsel %vm116, %v3623, 0
    %3626 = vmatprep.subr.mxu0 0.0
    %3627 = vmatpush1.msra.mxu0 %v106
    %3628 = vmatprep.subr.mxu0 0.0
    %3629 = vmatpush1.msra.mxu0 %v107
    %3630 = vmatprep.subr.mxu0 0.0
    %3631 = vmatpush1.msra.mxu0 %v108
    %3632 = vmatprep.subr.mxu0 0.0
    %3633 = vmatpush1.msra.mxu0 %v109
    %3634 = vmatprep.subr.mxu0 0.0
    %3635 = vmatpush1.msra.mxu0 0.0
    %3636 = vmatprep.subr.mxu0 0.0
    %3637 = vmatpush1.msra.mxu0 0.0
    %3638 = vmatprep.subr.mxu0 0.0
    %3639 = vmatpush1.msra.mxu0 0.0
    %3640 = vmatprep.subr.mxu0 0.0
    %3641 = vmatpush1.msra.mxu0 0.0
    %3642 = vmatprep.subr.mxu0 0.0
    %3643 = vmatpush1.msra.mxu0 0.0
    %3644 = vmatprep.subr.mxu0 0.0
    %3645 = vmatpush1.msra.mxu0 0.0
    %3646 = vmatprep.subr.mxu0 0.0
    %3647 = vmatpush1.msra.mxu0 0.0
    %3648 = vmatprep.subr.mxu0 0.0
    %3649 = vmatpush1.msra.mxu0 0.0
    %3650 = vmatprep.subr.mxu0 0.0
    %3651 = vmatpush1.msra.mxu0 0.0
    %3652 = vmatprep.subr.mxu0 0.0
    %3653 = vmatpush1.msra.mxu0 0.0
    %3654 = vmatprep.subr.mxu0 0.0
    %3655 = vmatpush1.msra.mxu0 0.0
    %3656 = vmatprep.subr.mxu0 0.0
    %3657 = vmatpush1.msra.mxu0 0.0
    %3658 = vmatprep.subr.mxu0 0.0
    %3659 = vmatpush1.msra.mxu0 0.0
    %3660 = vmatprep.subr.mxu0 0.0
    %3661 = vmatpush1.msra.mxu0 0.0
    %3662 = vmatprep.subr.mxu0 0.0
    %3663 = vmatpush1.msra.mxu0 0.0
    %3664 = vmatprep.subr.mxu0 0.0
    %3665 = vmatpush1.msra.mxu0 0.0
    %3666 = vmatprep.subr.mxu0 0.0
    %3667 = vmatpush1.msra.mxu0 0.0
    %3668 = vmatprep.subr.mxu0 0.0
    %3669 = vmatpush1.msra.mxu0 0.0
    %3670 = vmatprep.subr.mxu0 0.0
    %3671 = vmatpush1.msra.mxu0 0.0
    %3672 = vmatprep.subr.mxu0 0.0
    %3673 = vmatpush1.msra.mxu0 0.0
    %3674 = vmatprep.subr.mxu0 0.0
    %3675 = vmatpush1.msra.mxu0 0.0
    %3676 = vmatprep.subr.mxu0 0.0
    %3677 = vmatpush1.msra.mxu0 0.0
    %3678 = vmatprep.subr.mxu0 0.0
    %3679 = vmatpush1.msra.mxu0 0.0
    %3680 = vmatprep.subr.mxu0 0.0
    %3681 = vmatpush1.msra.mxu0 0.0
    %3682 = vmatprep.subr.mxu0 0.0
    %3683 = vmatpush1.msra.mxu0 0.0
    %3684 = vmatprep.subr.mxu0 0.0
    %3685 = vmatpush1.msra.mxu0 0.0
    %3686 = vmatprep.subr.mxu0 0.0
    %3687 = vmatpush1.msra.mxu0 0.0
    %3688 = vmatprep.subr.mxu0 0.0
    %3689 = vmatpush1.msra.mxu0 0.0
    %3690 = vmatprep.mubr.f32.mxu0 0.0
    %3691 = vmatmul.mubr.f32.gmra.mrb[0].mxu0 %v3624
    %v3692 = vpop.f32.mrb[0].mxu0
    %v3693 = vadd.f32 %v3618, %v3692
    %v3694 = vpop.f32.mrb[0].mxu0
    %3695 = vdwg.mxu0
    %v3696 = vadd.f32 %v3693, %v365
    %v3697 = vxor.u32 %v3696, 2147483648
    %v3698 = vmul.f32 %v3697, 1.442695
    %v3699 = vpow.pop %v3698
    %v3700 = vadd.f32 %v3699, 1.0
    %v3701 = vrcp.pop %v3700
    %v3702 = vmul.f32 1.0, %v3701
    %v3703 = vmul.f32 %v3702, 2.0
    %v3704 = vsub.f32 %v3703, 1.0
    %v3705 = vmul.f32 %v3702, %v3370
    %3707 = vrot.lane.b32.xlu0 %v3704, 64
    %v3708 = vpop.permute.xlu0 %3707
    %v3710 = vmul.f32 %v3702, %v3708
    %3712 = vrot.lane.b32.xlu0 %v3710, 32
    %v3713 = vpop.permute.xlu0 %3712
    %v3715 = vadd.f32 %v3705, %v3713
    %v3716 = vtanh.pop %v3715
    %3718 = vrot.lane.b32.xlu0 %v3716, 64
    %v3719 = vpop.permute.xlu0 %3718
    %v3721 = vmul.f32 %v3702, %v3719
    %3723 = vrot.lane.b32.xlu0 %v3721, 32
    %v3724 = vpop.permute.xlu0 %3723
    %s3726 = scalar_lea.vmem [#allocation2], 88
    %3727 = vst.msk [vmem:[%s3726] sm:$0xff] %vm116, %v3724
    %v3728 = vld [vmem:[%s7] sm:$0x1]
    %v3729 = vld [vmem:[#allocation2] sm:$0xff]
    %v3730 = vld [vmem:[#allocation2 + $0x8] sm:$0xff]
    %v3731 = vld [vmem:[#allocation2 + $0x10] sm:$0xff]
    %v3732 = vld [vmem:[#allocation2 + $0x18] sm:$0xff]
    %v3733 = vld [vmem:[#allocation2 + $0x20] sm:$0xff]
    %v3734 = vld [vmem:[#allocation2 + $0x28] sm:$0xff]
    %v3735 = vld [vmem:[#allocation2 + $0x30] sm:$0xff]
    %v3736 = vld [vmem:[#allocation2 + $0x38] sm:$0xff]
    %v3737 = vld [vmem:[#allocation2 + $0x40] sm:$0xff]
    %v3738 = vld [vmem:[#allocation2 + $0x48] sm:$0xff]
    %v3739 = vld [vmem:[#allocation2 + $0x50] sm:$0xff]
    %v3740 = vld [vmem:[#allocation2 + $0x58] sm:$0xff]
    %v3742 = vlaneseq
    %v3743 = vshrl.u32 %v3742, 7
    %v3744 = vsub.s32 0, %v3743
    %v3745 = vrot.slane %v3728, %v3744
    %v3747 = vmul.f32 %v3729, %v3745
    %v3748 = vmul.f32 %v3730, %v3745
    %v3749 = vmul.f32 %v3731, %v3745
    %v3750 = vmul.f32 %v3732, %v3745
    %v3751 = vmul.f32 %v3733, %v3745
    %v3752 = vmul.f32 %v3734, %v3745
    %v3753 = vmul.f32 %v3735, %v3745
    %v3754 = vmul.f32 %v3736, %v3745
    %v3755 = vmul.f32 %v3737, %v3745
    %v3756 = vmul.f32 %v3738, %v3745
    %v3757 = vmul.f32 %v3739, %v3745
    %v3758 = vmul.f32 %v3740, %v3745
    %v3759 = vsel %vm116, %v3747, 0.0
    %3760 = vadd.xlane.f32.xlu0 %v3759
    %v3761 = vpop.xlane.xlu0 %3760
    %v3762 = vsel %vm116, %v3748, 0.0
    %3763 = vadd.xlane.f32.xlu0 %v3762
    %v3764 = vpop.xlane.xlu0 %3763
    %v3765 = vsel %vm116, %v3749, 0.0
    %3766 = vadd.xlane.f32.xlu0 %v3765
    %v3767 = vpop.xlane.xlu0 %3766
    %v3768 = vsel %vm116, %v3750, 0.0
    %3769 = vadd.xlane.f32.xlu0 %v3768
    %v3770 = vpop.xlane.xlu0 %3769
    %v3771 = vsel %vm116, %v3751, 0.0
    %3772 = vadd.xlane.f32.xlu0 %v3771
    %v3773 = vpop.xlane.xlu0 %3772
    %v3774 = vsel %vm116, %v3752, 0.0
    %3775 = vadd.xlane.f32.xlu0 %v3774
    %v3776 = vpop.xlane.xlu0 %3775
    %v3777 = vsel %vm116, %v3753, 0.0
    %3778 = vadd.xlane.f32.xlu0 %v3777
    %v3779 = vpop.xlane.xlu0 %3778
    %v3780 = vsel %vm116, %v3754, 0.0
    %3781 = vadd.xlane.f32.xlu0 %v3780
    %v3782 = vpop.xlane.xlu0 %3781
    %v3783 = vsel %vm116, %v3755, 0.0
    %3784 = vadd.xlane.f32.xlu0 %v3783
    %v3785 = vpop.xlane.xlu0 %3784
    %v3786 = vsel %vm116, %v3756, 0.0
    %3787 = vadd.xlane.f32.xlu0 %v3786
    %v3788 = vpop.xlane.xlu0 %3787
    %v3789 = vsel %vm116, %v3757, 0.0
    %3790 = vadd.xlane.f32.xlu0 %v3789
    %v3791 = vpop.xlane.xlu0 %3790
    %v3792 = vsel %vm116, %v3758, 0.0
    %3793 = vadd.xlane.f32.xlu0 %v3792
    %v3794 = vpop.xlane.xlu0 %3793
    %v3795 = vld [vmem:[#allocation3] sm:$0x1]
    %v3797 = vlaneseq
    %v3798 = vshrl.u32 %v3797, 7
    %v3799 = vsub.s32 0, %v3798
    %v3800 = vrot.slane %v3795, %v3799
    %3801 = vset.pattern.permute.xlu0 0
    %3802 = vperm.xlu0 %3801, %v3800
    %v3803 = vpop.permute.xlu0 %3802
    %v3805 = vadd.f32 %v3761, %v3803
    %v3806 = vadd.f32 %v3764, %v3803
    %v3807 = vadd.f32 %v3767, %v3803
    %v3808 = vadd.f32 %v3770, %v3803
    %v3809 = vadd.f32 %v3773, %v3803
    %v3810 = vadd.f32 %v3776, %v3803
    %v3811 = vadd.f32 %v3779, %v3803
    %v3812 = vadd.f32 %v3782, %v3803
    %v3813 = vadd.f32 %v3785, %v3803
    %v3814 = vadd.f32 %v3788, %v3803
    %v3815 = vadd.f32 %v3791, %v3803
    %v3816 = vadd.f32 %v3794, %v3803
    %v3829 = vlaneseq
    %v3830 = vand.u32 %v3829, 127
    %v3831 = vlaneseq
    %v3832 = vshrl.u32 %v3831, 7
    %v3833 = vsub.s32 %v3830, %v3832
    %v3834 = vrot.slane %v3805, %v3833
    %v3835 = vlaneseq
    %v3836 = vshrl.u32 %v3835, 7
    %v3837 = vsub.s32 %v3830, %v3836
    %v3838 = vrot.slane %v3806, %v3837
    %v3839 = vlaneseq
    %v3840 = vshrl.u32 %v3839, 7
    %v3841 = vsub.s32 %v3830, %v3840
    %v3842 = vrot.slane %v3807, %v3841
    %v3843 = vlaneseq
    %v3844 = vshrl.u32 %v3843, 7
    %v3845 = vsub.s32 %v3830, %v3844
    %v3846 = vrot.slane %v3808, %v3845
    %v3847 = vlaneseq
    %v3848 = vshrl.u32 %v3847, 7
    %v3849 = vsub.s32 %v3830, %v3848
    %v3850 = vrot.slane %v3809, %v3849
    %v3851 = vlaneseq
    %v3852 = vshrl.u32 %v3851, 7
    %v3853 = vsub.s32 %v3830, %v3852
    %v3854 = vrot.slane %v3810, %v3853
    %v3855 = vlaneseq
    %v3856 = vshrl.u32 %v3855, 7
    %v3857 = vsub.s32 %v3830, %v3856
    %v3858 = vrot.slane %v3811, %v3857
    %v3859 = vlaneseq
    %v3860 = vshrl.u32 %v3859, 7
    %v3861 = vsub.s32 %v3830, %v3860
    %v3862 = vrot.slane %v3812, %v3861
    %v3863 = vlaneseq
    %v3864 = vshrl.u32 %v3863, 7
    %v3865 = vsub.s32 %v3830, %v3864
    %v3866 = vrot.slane %v3813, %v3865
    %v3867 = vlaneseq
    %v3868 = vshrl.u32 %v3867, 7
    %v3869 = vsub.s32 %v3830, %v3868
    %v3870 = vrot.slane %v3814, %v3869
    %v3871 = vlaneseq
    %v3872 = vshrl.u32 %v3871, 7
    %v3873 = vsub.s32 %v3830, %v3872
    %v3874 = vrot.slane %v3815, %v3873
    %v3875 = vlaneseq
    %v3876 = vshrl.u32 %v3875, 7
    %v3877 = vsub.s32 %v3830, %v3876
    %v3878 = vrot.slane %v3816, %v3877
    %vm3879 = vcmask 1041409
    %v3880 = vsel %vm3879, %v3838, %v3834
    %vm3881 = vcmask 1042434
    %v3882 = vsel %vm3881, %v3842, %v3880
    %vm3883 = vcmask 1043459
    %v3884 = vsel %vm3883, %v3846, %v3882
    %vm3885 = vcmask 1044484
    %v3886 = vsel %vm3885, %v3850, %v3884
    %vm3887 = vcmask 1045509
    %v3888 = vsel %vm3887, %v3854, %v3886
    %vm3889 = vcmask 1046534
    %v3890 = vsel %vm3889, %v3858, %v3888
    %vm3891 = vcmask 1047559
    %v3892 = vsel %vm3891, %v3862, %v3890
    %v3893 = vsel %vm3879, %v3870, %v3866
    %v3894 = vsel %vm3881, %v3874, %v3893
    %v3895 = vsel %vm3883, %v3878, %v3894
    %vm3898 = vcmask 64512
    %3899 = vst.msk [vmem:[%s9] sm:$0xff] %vm3898, %v3892
    %vm3900 = vcmask 60416
    %3901 = vst.msk [vmem:[%s9 + $0x8] sm:$0xf] %vm3900, %v3895
    // Predicated region
    $region58: #{tpu_custom_call.1} parent=1 // pred_check
      _
    $region59: #{tpu_custom_call.1} parent=1 // pred_check_branch
      %3903 = sbr.rel (0) target = $region61
    $region60: #{tpu_custom_call.1} parent=1 // pred_region
      _
    $region61: #{tpu_custom_call.1} parent=1 // pred_fallthru
      _
    // Predicated region
    $region62: #{tpu_custom_call.1} parent=1 // pred_check
      _
    $region63: #{tpu_custom_call.1} parent=1 // pred_check_branch
      %3905 = sbr.rel (0) target = $region65
    $region64: #{tpu_custom_call.1} parent=1 // pred_region
      _
    $region65: #{tpu_custom_call.1} parent=1 // pred_fallthru
      _
    %3906 = vsyncpa [#allocation5], 1
    %3907 = vsyncpa [#allocation7], 1
    %3908 = vsyncpa [#allocation10], 1

</llo_original>
